<compile_context>
chip_gen: v7x
topology: tpu7x:2x2x1
jax: 0.10.0
libtpu: 0.0.40
codegen_flags: <defaults>
</compile_context>

<pallas_src>
import functools
import math

import jax
import jax.numpy as jnp
from jax.experimental import pallas as pl
from jax.experimental.pallas import tpu as pltpu  # noqa: F401  (TPU backend import)

OUT_LANES = 128  # lane-dense output slab width


# ----------------------------------------------------------------------------
# Kernel
# ----------------------------------------------------------------------------
def _layernorm(x, w, b, eps=1e-5):
    mu = jnp.mean(x, axis=-1, keepdims=True)
    var = jnp.mean(jnp.square(x - mu), axis=-1, keepdims=True)
    return (x - mu) * jax.lax.rsqrt(var + eps) * w + b


def tabular_transformer_kernel(
    src_ref,        # (SB, 1)   row s*B+b = src[b, s-1], zero at cls rows (s==0)
    is_cls_ref,     # (SB, 1)   1.0 at cls rows
    pe_ref,         # (SB, D)   positional encoding (indexed by batch position)
    mask_ref,       # (SB, SB)  additive attention mask: 0 same token slot, -1e30 otherwise
    emb_w_ref,      # (1, D)
    emb_b_ref,      # (1, D)
    cls_ref,        # (1, D)
    qkv_wT_ref,     # (L, D, 3D)
    qkv_b_ref,      # (L, 1, 3D)
    out_wT_ref,     # (L, D, D)
    out_b_ref,      # (L, 1, D)
    ln1_w_ref,      # (L, 1, D)
    ln1_b_ref,      # (L, 1, D)
    ln2_w_ref,      # (L, 1, D)
    ln2_b_ref,      # (L, 1, D)
    ff1_wT_ref,     # (L, D, FF)
    ff1_b_ref,      # (L, 1, FF)
    ff2_wT_ref,     # (L, FF, D)
    ff2_b_ref,      # (L, 1, D)
    dec_wT_ref,     # (D, OUT_LANES)   decoder weight, zero-padded past num_classes
    dec_b_ref,      # (1, OUT_LANES)   decoder bias, zero-padded
    imp_wT_ref,     # (D, 1)
    imp_b_ref,      # (1, 1)
    sel_RT_ref,     # (B, F*B)         0/1 row-selection (picks rows with batch index b)
    place_tok_ref,  # (F*B, OUT_LANES) 0/1 placement into columns [C, C+F)
    out_ref,        # (B, OUT_LANES)   output slab
    *,
    num_layers,
    num_heads,
    batch,
):
    f32 = jnp.float32
    B = batch
    D = emb_w_ref.shape[1]
    H = num_heads
    hd = D // H
    scale = 1.0 / math.sqrt(hd)

    # ----- embedding (Linear(1, D)) + cls-token injection + positional encoding ----
    emb = src_ref[...] * emb_w_ref[...] + emb_b_ref[...]            # (SB, D)
    x = jnp.where(is_cls_ref[...] > 0.5, cls_ref[...], emb)         # cls rows = cls token
    x = x + pe_ref[...]                                             # (SB, D)

    mask = mask_ref[...]                                            # (SB, SB)

    for l in range(num_layers):
        # ----- self-attention (post-LN TransformerEncoderLayer) -----
        qkv = jnp.dot(x, qkv_wT_ref[l], preferred_element_type=f32) + qkv_b_ref[l]

        attn = None
        for h in range(H):
            qh = qkv[:, h * hd:(h + 1) * hd]                        # (SB, hd)
            kh = qkv[:, D + h * hd:D + (h + 1) * hd]                # (SB, hd)
            vh = qkv[:, 2 * D + h * hd:2 * D + (h + 1) * hd]        # (SB, hd)

            s = jnp.dot(qh, kh.T, preferred_element_type=f32) * scale + mask  # (SB, SB)
            m = jnp.max(s, axis=-1, keepdims=True)
            p = jnp.exp(s - m)
            denom = jnp.sum(p, axis=-1, keepdims=True)
            p = p * pl.reciprocal(denom, approx=True)
            oh = jnp.dot(p, vh, preferred_element_type=f32)         # (SB, hd)

            proj = jnp.dot(oh, out_wT_ref[l][h * hd:(h + 1) * hd, :],
                           preferred_element_type=f32)              # (SB, D)
            attn = proj if attn is None else attn + proj
        attn = attn + out_b_ref[l]

        y = _layernorm(x + attn, ln1_w_ref[l], ln1_b_ref[l])

        # ----- feed-forward -----
        h1 = jnp.maximum(
            jnp.dot(y, ff1_wT_ref[l], preferred_element_type=f32) + ff1_b_ref[l], 0.0)
        ff = jnp.dot(h1, ff2_wT_ref[l], preferred_element_type=f32) + ff2_b_ref[l]
        x = _layernorm(y + ff, ln2_w_ref[l], ln2_b_ref[l])

    # ----- heads: single lane-dense (B, 128) output slab -----
    cls_vec = x[0:B, :]                                             # (B, D)
    cls_part = jnp.dot(cls_vec, dec_wT_ref[...],
                       preferred_element_type=f32) + dec_b_ref[...]  # (B, 128)

    feat = x[B:, :]                                                 # (F*B, D)
    imp = jnp.dot(feat, imp_wT_ref[...],
                  preferred_element_type=f32) + imp_b_ref[...]      # (F*B, 1)
    # place importance of row (f*B + b) into column C+f of batch row b
    tok_part = jnp.dot(sel_RT_ref[...], imp * place_tok_ref[...],
                       preferred_element_type=f32)                  # (B, 128)

    out_ref[...] = cls_part + tok_part                              # full-lane store


# ----------------------------------------------------------------------------
# Host-side glue
# ----------------------------------------------------------------------------
def make_positional_encoding(n, d):
    position = jnp.arange(n, dtype=jnp.float32)[:, None]
    div_term = jnp.exp(jnp.arange(0, d, 2, dtype=jnp.float32) * (-math.log(10000.0) / d))
    pe = jnp.zeros((n, d), dtype=jnp.float32)
    pe = pe.at[:, 0::2].set(jnp.sin(position * div_term))
    pe = pe.at[:, 1::2].set(jnp.cos(position * div_term))
    return pe


def init_params(key, dim_model, num_heads, dim_ff, num_layers, num_classes):
    D, FF, L, C = dim_model, dim_ff, num_layers, num_classes
    ks = jax.random.split(key, 18)

    def r(k, shape, s=0.1):
        return (s * jax.random.normal(k, shape)).astype(jnp.float32)

    return dict(
        emb_w=r(ks[0], (D, 1)),
        emb_b=r(ks[1], (D,), 0.02),
        cls=r(ks[2], (1, 1, D), 0.02),
        qkv_w=r(ks[3], (L, 3 * D, D)),
        qkv_b=r(ks[4], (L, 3 * D), 0.02),
        out_w=r(ks[5], (L, D, D)),
        out_b=r(ks[6], (L, D), 0.02),
        ln1_w=1.0 + r(ks[7], (L, D), 0.02),
        ln1_b=r(ks[8], (L, D), 0.02),
        ln2_w=1.0 + r(ks[9], (L, D), 0.02),
        ln2_b=r(ks[10], (L, D), 0.02),
        ff1_w=r(ks[11], (L, FF, D)),
        ff1_b=r(ks[12], (L, FF), 0.02),
        ff2_w=r(ks[13], (L, D, FF)),
        ff2_b=r(ks[14], (L, D), 0.02),
        dec_w=r(ks[15], (C, D)),
        dec_b=r(ks[16], (C,), 0.02),
        imp_w=r(ks[17], (1, D)),
        imp_b=jnp.zeros((1,), jnp.float32),
    )


def tabular_transformer_forward(src, params, *, num_heads, num_layers):
    B, F = src.shape
    D = params['emb_w'].shape[0]
    C = params['dec_w'].shape[0]
    S = F + 1
    SB = S * B
    assert C + F <= OUT_LANES

    # flat (S*B, .) activation layout, token-slot major / batch minor
    src2d = jnp.zeros((S, B), jnp.float32).at[1:].set(src.T).reshape(SB, 1)
    is_cls2d = jnp.zeros((SB, 1), jnp.float32).at[:B].set(1.0)
    pe2d = jnp.tile(make_positional_encoding(B, D), (S, 1))          # (SB, D)

    # additive mask: attention only among rows sharing the same token slot s
    row_s = jnp.arange(SB, dtype=jnp.int32) // B
    attn_mask = jnp.where(row_s[:, None] == row_s[None, :], 0.0, -1e30).astype(jnp.float32)

    # lane-dense output-slab placement constants
    dec_wT_pad = jnp.zeros((D, OUT_LANES), jnp.float32).at[:, :C].set(params['dec_w'].T)
    dec_b_pad = jnp.zeros((1, OUT_LANES), jnp.float32).at[0, :C].set(params['dec_b'])
    r = jnp.arange(F * B)
    sel_RT = (r[None, :] % B == jnp.arange(B)[:, None]).astype(jnp.float32)   # (B, F*B)
    place_tok = jnp.zeros((F * B, OUT_LANES), jnp.float32).at[r, C + r // B].set(1.0)

    inputs = (
        src2d,
        is_cls2d,
        pe2d,
        attn_mask,
        params['emb_w'][:, 0][None, :],              # (1, D)
        params['emb_b'][None, :],                    # (1, D)
        params['cls'].reshape(1, D),                 # (1, D)
        jnp.transpose(params['qkv_w'], (0, 2, 1)),   # (L, D, 3D)
        params['qkv_b'][:, None, :],                 # (L, 1, 3D)
        jnp.transpose(params['out_w'], (0, 2, 1)),   # (L, D, D)
        params['out_b'][:, None, :],
        params['ln1_w'][:, None, :],
        params['ln1_b'][:, None, :],
        params['ln2_w'][:, None, :],
        params['ln2_b'][:, None, :],
        jnp.transpose(params['ff1_w'], (0, 2, 1)),   # (L, D, FF)
        params['ff1_b'][:, None, :],
        jnp.transpose(params['ff2_w'], (0, 2, 1)),   # (L, FF, D)
        params['ff2_b'][:, None, :],
        dec_wT_pad,                                  # (D, 128)
        dec_b_pad,                                   # (1, 128)
        params['imp_w'].T,                           # (D, 1)
        params['imp_b'][None, :],                    # (1, 1)
        sel_RT,                                      # (B, F*B)
        place_tok,                                   # (F*B, 128)
    )

    kernel = functools.partial(
        tabular_transformer_kernel,
        num_layers=num_layers, num_heads=num_heads, batch=B)

    slab = pl.pallas_call(
        kernel,
        out_shape=jax.ShapeDtypeStruct((B, OUT_LANES), jnp.float32),
    )(*inputs)

    cls_out = slab[:, :C]
    tokens = slab[:, C:C + F]
    return cls_out, tokens       # (B, C), (B, F) — matches PyTorch module outputs


# ----------------------------------------------------------------------------
# Pure-JAX reference (mirrors PyTorch semantics exactly, batch-first layout)
# ----------------------------------------------------------------------------
def reference_forward(src, params, *, num_heads, num_layers):
    B, F = src.shape
    D = params['emb_w'].shape[0]
    H, L = num_heads, num_layers
    hd = D // H
    S = F + 1

    x = src[:, :, None] * params['emb_w'][:, 0][None, None, :] + params['emb_b']
    cls = jnp.broadcast_to(params['cls'], (B, 1, D))
    x = jnp.concatenate([cls, x], axis=1)               # (B, S, D)
    pe = make_positional_encoding(B, D)
    x = x + pe[:, None, :]                               # pe indexed by batch position

    def ln(t, w, b, eps=1e-5):
        mu = t.mean(-1, keepdims=True)
        var = ((t - mu) ** 2).mean(-1, keepdims=True)
        return (t - mu) / jnp.sqrt(var + eps) * w + b

    for l in range(L):
        qkv = jnp.einsum('bsd,ed->bse', x, params['qkv_w'][l]) + params['qkv_b'][l]
        q, k, v = qkv[..., :D], qkv[..., D:2 * D], qkv[..., 2 * D:]
        qh = q.reshape(B, S, H, hd)
        kh = k.reshape(B, S, H, hd)
        vh = v.reshape(B, S, H, hd)
        # attention over the batch axis (seq-first encoder fed a batch-first tensor)
        scores = jnp.einsum('ishd,jshd->shij', qh, kh) / math.sqrt(hd)
        attn = jax.nn.softmax(scores, axis=-1)
        o = jnp.einsum('shij,jshd->ishd', attn, vh).reshape(B, S, D)
        o = jnp.einsum('bsd,ed->bse', o, params['out_w'][l]) + params['out_b'][l]
        x = ln(x + o, params['ln1_w'][l], params['ln1_b'][l])
        h1 = jax.nn.relu(jnp.einsum('bsd,fd->bsf', x, params['ff1_w'][l]) + params['ff1_b'][l])
        ff = jnp.einsum('bsf,df->bsd', h1, params['ff2_w'][l]) + params['ff2_b'][l]
        x = ln(x + ff, params['ln2_w'][l], params['ln2_b'][l])

    cls_out = x[:, 0, :] @ params['dec_w'].T + params['dec_b']
    tokens = jnp.einsum('bfd,od->bfo', x[:, 1:, :], params['imp_w'])[..., 0] + params['imp_b'][0]
    return cls_out, tokens


# ----------------------------------------------------------------------------
if __name__ == "__main__":
    # args: num_features=8, dim_model=32, num_head=4, dim_ff=64, num_layers=2,
    #       num_classes=3, batch_size=4
    B, NUM_FEATURES = 4, 8
    DIM_MODEL, NUM_HEAD, DIM_FF, NUM_LAYERS, NUM_CLASSES = 32, 4, 64, 2, 3

    key = jax.random.PRNGKey(0)
    k_src, k_par = jax.random.split(key)
    src = jax.random.normal(k_src, (B, NUM_FEATURES), dtype=jnp.float32)
    params = init_params(k_par, DIM_MODEL, NUM_HEAD, DIM_FF, NUM_LAYERS, NUM_CLASSES)

    cls_out, tokens = tabular_transformer_forward(
        src, params, num_heads=NUM_HEAD, num_layers=NUM_LAYERS)
    jax.block_until_ready((cls_out, tokens))

    ref_cls, ref_tok = reference_forward(
        src, params, num_heads=NUM_HEAD, num_layers=NUM_LAYERS)

    assert cls_out.shape == (B, NUM_CLASSES)
    assert tokens.shape == (B, NUM_FEATURES)
    assert bool(jnp.all(jnp.isfinite(cls_out))) and bool(jnp.all(jnp.isfinite(tokens)))
    assert jnp.allclose(cls_out, ref_cls, atol=2e-2, rtol=2e-2)
    assert jnp.allclose(tokens, ref_tok, atol=2e-2, rtol=2e-2)

    print("KERNEL_OK")
</pallas_src>

<mosaic_0001>
module attributes {stable_mosaic.version = 11 : i64} {
  func.func @tabular_transformer_kernel(%arg0: memref<36x1xf32, #tpu.memory_space<vmem>>, %arg1: memref<36x1xf32, #tpu.memory_space<vmem>>, %arg2: memref<36x32xf32, #tpu.memory_space<vmem>>, %arg3: memref<36x36xf32, #tpu.memory_space<vmem>>, %arg4: memref<1x32xf32, #tpu.memory_space<vmem>>, %arg5: memref<1x32xf32, #tpu.memory_space<vmem>>, %arg6: memref<1x32xf32, #tpu.memory_space<vmem>>, %arg7: memref<2x32x96xf32, #tpu.memory_space<vmem>>, %arg8: memref<2x1x96xf32, #tpu.memory_space<vmem>>, %arg9: memref<2x32x32xf32, #tpu.memory_space<vmem>>, %arg10: memref<2x1x32xf32, #tpu.memory_space<vmem>>, %arg11: memref<2x1x32xf32, #tpu.memory_space<vmem>>, %arg12: memref<2x1x32xf32, #tpu.memory_space<vmem>>, %arg13: memref<2x1x32xf32, #tpu.memory_space<vmem>>, %arg14: memref<2x1x32xf32, #tpu.memory_space<vmem>>, %arg15: memref<2x32x64xf32, #tpu.memory_space<vmem>>, %arg16: memref<2x1x64xf32, #tpu.memory_space<vmem>>, %arg17: memref<2x64x32xf32, #tpu.memory_space<vmem>>, %arg18: memref<2x1x32xf32, #tpu.memory_space<vmem>>, %arg19: memref<32x128xf32, #tpu.memory_space<vmem>>, %arg20: memref<1x128xf32, #tpu.memory_space<vmem>>, %arg21: memref<32x1xf32, #tpu.memory_space<vmem>>, %arg22: memref<1x1xf32, #tpu.memory_space<vmem>>, %arg23: memref<4x32xf32, #tpu.memory_space<vmem>>, %arg24: memref<32x128xf32, #tpu.memory_space<vmem>>, %arg25: memref<4x128xf32, #tpu.memory_space<vmem>>) attributes {dimension_semantics = [], scalar_prefetch = 0 : i64, scratch_operands = 0 : i64, tpu.core_type = #tpu.core_type<tc>} {
    %c0 = arith.constant 0 : index
    %c0_0 = arith.constant 0 : index
    %0 = vector.load %arg0[%c0, %c0_0] : memref<36x1xf32, #tpu.memory_space<vmem>>, vector<36x1xf32>
    %c0_1 = arith.constant 0 : index
    %c0_2 = arith.constant 0 : index
    %1 = vector.load %arg4[%c0_1, %c0_2] : memref<1x32xf32, #tpu.memory_space<vmem>>, vector<1x32xf32>
    %2 = vector.broadcast %0 : vector<36x1xf32> to vector<36x32xf32>
    %3 = vector.broadcast %1 : vector<1x32xf32> to vector<36x32xf32>
    %4 = arith.mulf %2, %3 : vector<36x32xf32>
    %c0_3 = arith.constant 0 : index
    %c0_4 = arith.constant 0 : index
    %5 = vector.load %arg5[%c0_3, %c0_4] : memref<1x32xf32, #tpu.memory_space<vmem>>, vector<1x32xf32>
    %6 = vector.broadcast %5 : vector<1x32xf32> to vector<36x32xf32>
    %7 = arith.addf %4, %6 : vector<36x32xf32>
    %c0_5 = arith.constant 0 : index
    %c0_6 = arith.constant 0 : index
    %8 = vector.load %arg1[%c0_5, %c0_6] : memref<36x1xf32, #tpu.memory_space<vmem>>, vector<36x1xf32>
    %cst = arith.constant 5.000000e-01 : f32
    %9 = vector.broadcast %cst : f32 to vector<36x1xf32>
    %10 = arith.cmpf ogt, %8, %9 : vector<36x1xf32>
    %c0_7 = arith.constant 0 : index
    %c0_8 = arith.constant 0 : index
    %11 = vector.load %arg6[%c0_7, %c0_8] : memref<1x32xf32, #tpu.memory_space<vmem>>, vector<1x32xf32>
    %12 = vector.shape_cast %10 : vector<36x1xi1> to vector<36x1xi1>
    %13 = vector.broadcast %12 : vector<36x1xi1> to vector<36x32xi1>
    %14 = vector.shape_cast %11 : vector<1x32xf32> to vector<1x32xf32>
    %15 = vector.broadcast %14 : vector<1x32xf32> to vector<36x32xf32>
    %16 = arith.select %13, %15, %7 : vector<36x32xi1>, vector<36x32xf32>
    %c0_9 = arith.constant 0 : index
    %c0_10 = arith.constant 0 : index
    %17 = vector.load %arg2[%c0_9, %c0_10] : memref<36x32xf32, #tpu.memory_space<vmem>>, vector<36x32xf32>
    %18 = arith.addf %16, %17 : vector<36x32xf32>
    %c0_11 = arith.constant 0 : index
    %c0_12 = arith.constant 0 : index
    %19 = vector.load %arg3[%c0_11, %c0_12] : memref<36x36xf32, #tpu.memory_space<vmem>>, vector<36x36xf32>
    %c0_13 = arith.constant 0 : index
    %c0_14 = arith.constant 0 : index
    %c0_15 = arith.constant 0 : index
    %20 = vector.load %arg7[%c0_13, %c0_14, %c0_15] : memref<2x32x96xf32, #tpu.memory_space<vmem>>, vector<1x32x96xf32>
    %21 = vector.shape_cast %20 : vector<1x32x96xf32> to vector<32x96xf32>
    %cst_16 = arith.constant dense<0.000000e+00> : vector<36x96xf32>
    %22 = tpu.matmul %18, %21, %cst_16 {dimension_numbers = #tpu.dot_dimension_numbers<[1], [0], [0], [1], [0, 0, 1, 1], [], []>} : vector<36x32xf32>, vector<32x96xf32>, vector<36x96xf32> -> vector<36x96xf32>
    %c0_17 = arith.constant 0 : index
    %c0_18 = arith.constant 0 : index
    %c0_19 = arith.constant 0 : index
    %23 = vector.load %arg8[%c0_17, %c0_18, %c0_19] : memref<2x1x96xf32, #tpu.memory_space<vmem>>, vector<1x1x96xf32>
    %24 = vector.shape_cast %23 : vector<1x1x96xf32> to vector<1x96xf32>
    %25 = vector.broadcast %24 : vector<1x96xf32> to vector<36x96xf32>
    %26 = arith.addf %22, %25 : vector<36x96xf32>
    %27 = vector.extract_strided_slice %26 {offsets = [0, 0], sizes = [36, 8], strides = [1, 1]} : vector<36x96xf32> to vector<36x8xf32>
    %28 = vector.extract_strided_slice %26 {offsets = [0, 32], sizes = [36, 8], strides = [1, 1]} : vector<36x96xf32> to vector<36x8xf32>
    %29 = vector.extract_strided_slice %26 {offsets = [0, 64], sizes = [36, 8], strides = [1, 1]} : vector<36x96xf32> to vector<36x8xf32>
    %30 = tpu.transpose %28, [1, 0] : vector<36x8xf32> -> vector<8x36xf32>
    %cst_20 = arith.constant dense<0.000000e+00> : vector<36x36xf32>
    %31 = tpu.matmul %27, %30, %cst_20 {dimension_numbers = #tpu.dot_dimension_numbers<[1], [0], [0], [1], [0, 0, 1, 1], [], []>} : vector<36x8xf32>, vector<8x36xf32>, vector<36x36xf32> -> vector<36x36xf32>
    %cst_21 = arith.constant 0.353553385 : f32
    %32 = vector.broadcast %cst_21 : f32 to vector<36x36xf32>
    %33 = arith.mulf %31, %32 : vector<36x36xf32>
    %34 = arith.addf %33, %19 : vector<36x36xf32>
    %cst_22 = arith.constant dense<0xFF800000> : vector<36xf32>
    %35 = vector.multi_reduction <maximumf>, %34, %cst_22 [1] : vector<36x36xf32> to vector<36xf32>
    %36 = vector.shape_cast %35 : vector<36xf32> to vector<36x1xf32>
    %37 = vector.broadcast %36 : vector<36x1xf32> to vector<36x36xf32>
    %38 = arith.subf %34, %37 : vector<36x36xf32>
    %39 = math.exp %38 : vector<36x36xf32>
    %cst_23 = arith.constant dense<0.000000e+00> : vector<36xf32>
    %40 = vector.multi_reduction <add>, %39, %cst_23 [1] : vector<36x36xf32> to vector<36xf32>
    %41 = vector.shape_cast %40 : vector<36xf32> to vector<36x1xf32>
    %42 = tpu.reciprocal %41 {approx = true} : vector<36x1xf32> -> vector<36x1xf32>
    %43 = vector.broadcast %42 : vector<36x1xf32> to vector<36x36xf32>
    %44 = arith.mulf %39, %43 : vector<36x36xf32>
    %cst_24 = arith.constant dense<0.000000e+00> : vector<36x8xf32>
    %45 = tpu.matmul %44, %29, %cst_24 {dimension_numbers = #tpu.dot_dimension_numbers<[1], [0], [0], [1], [0, 0, 1, 1], [], []>} : vector<36x36xf32>, vector<36x8xf32>, vector<36x8xf32> -> vector<36x8xf32>
    %c0_25 = arith.constant 0 : index
    %c0_26 = arith.constant 0 : index
    %c0_27 = arith.constant 0 : index
    %46 = vector.load %arg9[%c0_25, %c0_26, %c0_27] : memref<2x32x32xf32, #tpu.memory_space<vmem>>, vector<1x32x32xf32>
    %47 = vector.shape_cast %46 : vector<1x32x32xf32> to vector<32x32xf32>
    %48 = vector.extract_strided_slice %47 {offsets = [0, 0], sizes = [8, 32], strides = [1, 1]} : vector<32x32xf32> to vector<8x32xf32>
    %cst_28 = arith.constant dense<0.000000e+00> : vector<36x32xf32>
    %49 = tpu.matmul %45, %48, %cst_28 {dimension_numbers = #tpu.dot_dimension_numbers<[1], [0], [0], [1], [0, 0, 1, 1], [], []>} : vector<36x8xf32>, vector<8x32xf32>, vector<36x32xf32> -> vector<36x32xf32>
    %50 = vector.extract_strided_slice %26 {offsets = [0, 8], sizes = [36, 8], strides = [1, 1]} : vector<36x96xf32> to vector<36x8xf32>
    %51 = vector.extract_strided_slice %26 {offsets = [0, 40], sizes = [36, 8], strides = [1, 1]} : vector<36x96xf32> to vector<36x8xf32>
    %52 = vector.extract_strided_slice %26 {offsets = [0, 72], sizes = [36, 8], strides = [1, 1]} : vector<36x96xf32> to vector<36x8xf32>
    %53 = tpu.transpose %51, [1, 0] : vector<36x8xf32> -> vector<8x36xf32>
    %cst_29 = arith.constant dense<0.000000e+00> : vector<36x36xf32>
    %54 = tpu.matmul %50, %53, %cst_29 {dimension_numbers = #tpu.dot_dimension_numbers<[1], [0], [0], [1], [0, 0, 1, 1], [], []>} : vector<36x8xf32>, vector<8x36xf32>, vector<36x36xf32> -> vector<36x36xf32>
    %cst_30 = arith.constant 0.353553385 : f32
    %55 = vector.broadcast %cst_30 : f32 to vector<36x36xf32>
    %56 = arith.mulf %54, %55 : vector<36x36xf32>
    %57 = arith.addf %56, %19 : vector<36x36xf32>
    %cst_31 = arith.constant dense<0xFF800000> : vector<36xf32>
    %58 = vector.multi_reduction <maximumf>, %57, %cst_31 [1] : vector<36x36xf32> to vector<36xf32>
    %59 = vector.shape_cast %58 : vector<36xf32> to vector<36x1xf32>
    %60 = vector.broadcast %59 : vector<36x1xf32> to vector<36x36xf32>
    %61 = arith.subf %57, %60 : vector<36x36xf32>
    %62 = math.exp %61 : vector<36x36xf32>
    %cst_32 = arith.constant dense<0.000000e+00> : vector<36xf32>
    %63 = vector.multi_reduction <add>, %62, %cst_32 [1] : vector<36x36xf32> to vector<36xf32>
    %64 = vector.shape_cast %63 : vector<36xf32> to vector<36x1xf32>
    %65 = tpu.reciprocal %64 {approx = true} : vector<36x1xf32> -> vector<36x1xf32>
    %66 = vector.broadcast %65 : vector<36x1xf32> to vector<36x36xf32>
    %67 = arith.mulf %62, %66 : vector<36x36xf32>
    %cst_33 = arith.constant dense<0.000000e+00> : vector<36x8xf32>
    %68 = tpu.matmul %67, %52, %cst_33 {dimension_numbers = #tpu.dot_dimension_numbers<[1], [0], [0], [1], [0, 0, 1, 1], [], []>} : vector<36x36xf32>, vector<36x8xf32>, vector<36x8xf32> -> vector<36x8xf32>
    %c0_34 = arith.constant 0 : index
    %c0_35 = arith.constant 0 : index
    %c0_36 = arith.constant 0 : index
    %69 = vector.load %arg9[%c0_34, %c0_35, %c0_36] : memref<2x32x32xf32, #tpu.memory_space<vmem>>, vector<1x32x32xf32>
    %70 = vector.shape_cast %69 : vector<1x32x32xf32> to vector<32x32xf32>
    %71 = vector.extract_strided_slice %70 {offsets = [8, 0], sizes = [8, 32], strides = [1, 1]} : vector<32x32xf32> to vector<8x32xf32>
    %cst_37 = arith.constant dense<0.000000e+00> : vector<36x32xf32>
    %72 = tpu.matmul %68, %71, %cst_37 {dimension_numbers = #tpu.dot_dimension_numbers<[1], [0], [0], [1], [0, 0, 1, 1], [], []>} : vector<36x8xf32>, vector<8x32xf32>, vector<36x32xf32> -> vector<36x32xf32>
    %73 = arith.addf %49, %72 : vector<36x32xf32>
    %74 = vector.extract_strided_slice %26 {offsets = [0, 16], sizes = [36, 8], strides = [1, 1]} : vector<36x96xf32> to vector<36x8xf32>
    %75 = vector.extract_strided_slice %26 {offsets = [0, 48], sizes = [36, 8], strides = [1, 1]} : vector<36x96xf32> to vector<36x8xf32>
    %76 = vector.extract_strided_slice %26 {offsets = [0, 80], sizes = [36, 8], strides = [1, 1]} : vector<36x96xf32> to vector<36x8xf32>
    %77 = tpu.transpose %75, [1, 0] : vector<36x8xf32> -> vector<8x36xf32>
    %cst_38 = arith.constant dense<0.000000e+00> : vector<36x36xf32>
    %78 = tpu.matmul %74, %77, %cst_38 {dimension_numbers = #tpu.dot_dimension_numbers<[1], [0], [0], [1], [0, 0, 1, 1], [], []>} : vector<36x8xf32>, vector<8x36xf32>, vector<36x36xf32> -> vector<36x36xf32>
    %cst_39 = arith.constant 0.353553385 : f32
    %79 = vector.broadcast %cst_39 : f32 to vector<36x36xf32>
    %80 = arith.mulf %78, %79 : vector<36x36xf32>
    %81 = arith.addf %80, %19 : vector<36x36xf32>
    %cst_40 = arith.constant dense<0xFF800000> : vector<36xf32>
    %82 = vector.multi_reduction <maximumf>, %81, %cst_40 [1] : vector<36x36xf32> to vector<36xf32>
    %83 = vector.shape_cast %82 : vector<36xf32> to vector<36x1xf32>
    %84 = vector.broadcast %83 : vector<36x1xf32> to vector<36x36xf32>
    %85 = arith.subf %81, %84 : vector<36x36xf32>
    %86 = math.exp %85 : vector<36x36xf32>
    %cst_41 = arith.constant dense<0.000000e+00> : vector<36xf32>
    %87 = vector.multi_reduction <add>, %86, %cst_41 [1] : vector<36x36xf32> to vector<36xf32>
    %88 = vector.shape_cast %87 : vector<36xf32> to vector<36x1xf32>
    %89 = tpu.reciprocal %88 {approx = true} : vector<36x1xf32> -> vector<36x1xf32>
    %90 = vector.broadcast %89 : vector<36x1xf32> to vector<36x36xf32>
    %91 = arith.mulf %86, %90 : vector<36x36xf32>
    %cst_42 = arith.constant dense<0.000000e+00> : vector<36x8xf32>
    %92 = tpu.matmul %91, %76, %cst_42 {dimension_numbers = #tpu.dot_dimension_numbers<[1], [0], [0], [1], [0, 0, 1, 1], [], []>} : vector<36x36xf32>, vector<36x8xf32>, vector<36x8xf32> -> vector<36x8xf32>
    %c0_43 = arith.constant 0 : index
    %c0_44 = arith.constant 0 : index
    %c0_45 = arith.constant 0 : index
    %93 = vector.load %arg9[%c0_43, %c0_44, %c0_45] : memref<2x32x32xf32, #tpu.memory_space<vmem>>, vector<1x32x32xf32>
    %94 = vector.shape_cast %93 : vector<1x32x32xf32> to vector<32x32xf32>
    %95 = vector.extract_strided_slice %94 {offsets = [16, 0], sizes = [8, 32], strides = [1, 1]} : vector<32x32xf32> to vector<8x32xf32>
    %cst_46 = arith.constant dense<0.000000e+00> : vector<36x32xf32>
    %96 = tpu.matmul %92, %95, %cst_46 {dimension_numbers = #tpu.dot_dimension_numbers<[1], [0], [0], [1], [0, 0, 1, 1], [], []>} : vector<36x8xf32>, vector<8x32xf32>, vector<36x32xf32> -> vector<36x32xf32>
    %97 = arith.addf %73, %96 : vector<36x32xf32>
    %98 = vector.extract_strided_slice %26 {offsets = [0, 24], sizes = [36, 8], strides = [1, 1]} : vector<36x96xf32> to vector<36x8xf32>
    %99 = vector.extract_strided_slice %26 {offsets = [0, 56], sizes = [36, 8], strides = [1, 1]} : vector<36x96xf32> to vector<36x8xf32>
    %100 = vector.extract_strided_slice %26 {offsets = [0, 88], sizes = [36, 8], strides = [1, 1]} : vector<36x96xf32> to vector<36x8xf32>
    %101 = tpu.transpose %99, [1, 0] : vector<36x8xf32> -> vector<8x36xf32>
    %cst_47 = arith.constant dense<0.000000e+00> : vector<36x36xf32>
    %102 = tpu.matmul %98, %101, %cst_47 {dimension_numbers = #tpu.dot_dimension_numbers<[1], [0], [0], [1], [0, 0, 1, 1], [], []>} : vector<36x8xf32>, vector<8x36xf32>, vector<36x36xf32> -> vector<36x36xf32>
    %cst_48 = arith.constant 0.353553385 : f32
    %103 = vector.broadcast %cst_48 : f32 to vector<36x36xf32>
    %104 = arith.mulf %102, %103 : vector<36x36xf32>
    %105 = arith.addf %104, %19 : vector<36x36xf32>
    %cst_49 = arith.constant dense<0xFF800000> : vector<36xf32>
    %106 = vector.multi_reduction <maximumf>, %105, %cst_49 [1] : vector<36x36xf32> to vector<36xf32>
    %107 = vector.shape_cast %106 : vector<36xf32> to vector<36x1xf32>
    %108 = vector.broadcast %107 : vector<36x1xf32> to vector<36x36xf32>
    %109 = arith.subf %105, %108 : vector<36x36xf32>
    %110 = math.exp %109 : vector<36x36xf32>
    %cst_50 = arith.constant dense<0.000000e+00> : vector<36xf32>
    %111 = vector.multi_reduction <add>, %110, %cst_50 [1] : vector<36x36xf32> to vector<36xf32>
    %112 = vector.shape_cast %111 : vector<36xf32> to vector<36x1xf32>
    %113 = tpu.reciprocal %112 {approx = true} : vector<36x1xf32> -> vector<36x1xf32>
    %114 = vector.broadcast %113 : vector<36x1xf32> to vector<36x36xf32>
    %115 = arith.mulf %110, %114 : vector<36x36xf32>
    %cst_51 = arith.constant dense<0.000000e+00> : vector<36x8xf32>
    %116 = tpu.matmul %115, %100, %cst_51 {dimension_numbers = #tpu.dot_dimension_numbers<[1], [0], [0], [1], [0, 0, 1, 1], [], []>} : vector<36x36xf32>, vector<36x8xf32>, vector<36x8xf32> -> vector<36x8xf32>
    %c0_52 = arith.constant 0 : index
    %c0_53 = arith.constant 0 : index
    %c0_54 = arith.constant 0 : index
    %117 = vector.load %arg9[%c0_52, %c0_53, %c0_54] : memref<2x32x32xf32, #tpu.memory_space<vmem>>, vector<1x32x32xf32>
    %118 = vector.shape_cast %117 : vector<1x32x32xf32> to vector<32x32xf32>
    %119 = vector.extract_strided_slice %118 {offsets = [24, 0], sizes = [8, 32], strides = [1, 1]} : vector<32x32xf32> to vector<8x32xf32>
    %cst_55 = arith.constant dense<0.000000e+00> : vector<36x32xf32>
    %120 = tpu.matmul %116, %119, %cst_55 {dimension_numbers = #tpu.dot_dimension_numbers<[1], [0], [0], [1], [0, 0, 1, 1], [], []>} : vector<36x8xf32>, vector<8x32xf32>, vector<36x32xf32> -> vector<36x32xf32>
    %121 = arith.addf %97, %120 : vector<36x32xf32>
    %c0_56 = arith.constant 0 : index
    %c0_57 = arith.constant 0 : index
    %c0_58 = arith.constant 0 : index
    %122 = vector.load %arg10[%c0_56, %c0_57, %c0_58] : memref<2x1x32xf32, #tpu.memory_space<vmem>>, vector<1x1x32xf32>
    %123 = vector.shape_cast %122 : vector<1x1x32xf32> to vector<1x32xf32>
    %124 = vector.broadcast %123 : vector<1x32xf32> to vector<36x32xf32>
    %125 = arith.addf %121, %124 : vector<36x32xf32>
    %126 = arith.addf %18, %125 : vector<36x32xf32>
    %c0_59 = arith.constant 0 : index
    %c0_60 = arith.constant 0 : index
    %c0_61 = arith.constant 0 : index
    %127 = vector.load %arg11[%c0_59, %c0_60, %c0_61] : memref<2x1x32xf32, #tpu.memory_space<vmem>>, vector<1x1x32xf32>
    %128 = vector.shape_cast %127 : vector<1x1x32xf32> to vector<1x32xf32>
    %c0_62 = arith.constant 0 : index
    %c0_63 = arith.constant 0 : index
    %c0_64 = arith.constant 0 : index
    %129 = vector.load %arg12[%c0_62, %c0_63, %c0_64] : memref<2x1x32xf32, #tpu.memory_space<vmem>>, vector<1x1x32xf32>
    %130 = vector.shape_cast %129 : vector<1x1x32xf32> to vector<1x32xf32>
    %cst_65 = arith.constant dense<0.000000e+00> : vector<36xf32>
    %131 = vector.multi_reduction <add>, %126, %cst_65 [1] : vector<36x32xf32> to vector<36xf32>
    %132 = vector.shape_cast %131 : vector<36xf32> to vector<36x1xf32>
    %cst_66 = arith.constant 3.200000e+01 : f32
    %133 = vector.broadcast %cst_66 : f32 to vector<36x1xf32>
    %134 = arith.divf %132, %133 : vector<36x1xf32>
    %135 = vector.broadcast %134 : vector<36x1xf32> to vector<36x32xf32>
    %136 = arith.subf %126, %135 : vector<36x32xf32>
    %137 = arith.mulf %136, %136 : vector<36x32xf32>
    %cst_67 = arith.constant dense<0.000000e+00> : vector<36xf32>
    %138 = vector.multi_reduction <add>, %137, %cst_67 [1] : vector<36x32xf32> to vector<36xf32>
    %139 = vector.shape_cast %138 : vector<36xf32> to vector<36x1xf32>
    %cst_68 = arith.constant 3.200000e+01 : f32
    %140 = vector.broadcast %cst_68 : f32 to vector<36x1xf32>
    %141 = arith.divf %139, %140 : vector<36x1xf32>
    %142 = vector.broadcast %134 : vector<36x1xf32> to vector<36x32xf32>
    %143 = arith.subf %126, %142 : vector<36x32xf32>
    %cst_69 = arith.constant 9.99999974E-6 : f32
    %144 = vector.broadcast %cst_69 : f32 to vector<36x1xf32>
    %145 = arith.addf %141, %144 : vector<36x1xf32>
    %146 = math.rsqrt %145 : vector<36x1xf32>
    %147 = vector.broadcast %146 : vector<36x1xf32> to vector<36x32xf32>
    %148 = arith.mulf %143, %147 : vector<36x32xf32>
    %149 = vector.broadcast %128 : vector<1x32xf32> to vector<36x32xf32>
    %150 = arith.mulf %148, %149 : vector<36x32xf32>
    %151 = vector.broadcast %130 : vector<1x32xf32> to vector<36x32xf32>
    %152 = arith.addf %150, %151 : vector<36x32xf32>
    %c0_70 = arith.constant 0 : index
    %c0_71 = arith.constant 0 : index
    %c0_72 = arith.constant 0 : index
    %153 = vector.load %arg15[%c0_70, %c0_71, %c0_72] : memref<2x32x64xf32, #tpu.memory_space<vmem>>, vector<1x32x64xf32>
    %154 = vector.shape_cast %153 : vector<1x32x64xf32> to vector<32x64xf32>
    %cst_73 = arith.constant dense<0.000000e+00> : vector<36x64xf32>
    %155 = tpu.matmul %152, %154, %cst_73 {dimension_numbers = #tpu.dot_dimension_numbers<[1], [0], [0], [1], [0, 0, 1, 1], [], []>} : vector<36x32xf32>, vector<32x64xf32>, vector<36x64xf32> -> vector<36x64xf32>
    %c0_74 = arith.constant 0 : index
    %c0_75 = arith.constant 0 : index
    %c0_76 = arith.constant 0 : index
    %156 = vector.load %arg16[%c0_74, %c0_75, %c0_76] : memref<2x1x64xf32, #tpu.memory_space<vmem>>, vector<1x1x64xf32>
    %157 = vector.shape_cast %156 : vector<1x1x64xf32> to vector<1x64xf32>
    %158 = vector.broadcast %157 : vector<1x64xf32> to vector<36x64xf32>
    %159 = arith.addf %155, %158 : vector<36x64xf32>
    %cst_77 = arith.constant 0.000000e+00 : f32
    %160 = vector.broadcast %cst_77 : f32 to vector<36x64xf32>
    %161 = arith.maximumf %159, %160 : vector<36x64xf32>
    %c0_78 = arith.constant 0 : index
    %c0_79 = arith.constant 0 : index
    %c0_80 = arith.constant 0 : index
    %162 = vector.load %arg17[%c0_78, %c0_79, %c0_80] : memref<2x64x32xf32, #tpu.memory_space<vmem>>, vector<1x64x32xf32>
    %163 = vector.shape_cast %162 : vector<1x64x32xf32> to vector<64x32xf32>
    %cst_81 = arith.constant dense<0.000000e+00> : vector<36x32xf32>
    %164 = tpu.matmul %161, %163, %cst_81 {dimension_numbers = #tpu.dot_dimension_numbers<[1], [0], [0], [1], [0, 0, 1, 1], [], []>} : vector<36x64xf32>, vector<64x32xf32>, vector<36x32xf32> -> vector<36x32xf32>
    %c0_82 = arith.constant 0 : index
    %c0_83 = arith.constant 0 : index
    %c0_84 = arith.constant 0 : index
    %165 = vector.load %arg18[%c0_82, %c0_83, %c0_84] : memref<2x1x32xf32, #tpu.memory_space<vmem>>, vector<1x1x32xf32>
    %166 = vector.shape_cast %165 : vector<1x1x32xf32> to vector<1x32xf32>
    %167 = vector.broadcast %166 : vector<1x32xf32> to vector<36x32xf32>
    %168 = arith.addf %164, %167 : vector<36x32xf32>
    %169 = arith.addf %152, %168 : vector<36x32xf32>
    %c0_85 = arith.constant 0 : index
    %c0_86 = arith.constant 0 : index
    %c0_87 = arith.constant 0 : index
    %170 = vector.load %arg13[%c0_85, %c0_86, %c0_87] : memref<2x1x32xf32, #tpu.memory_space<vmem>>, vector<1x1x32xf32>
    %171 = vector.shape_cast %170 : vector<1x1x32xf32> to vector<1x32xf32>
    %c0_88 = arith.constant 0 : index
    %c0_89 = arith.constant 0 : index
    %c0_90 = arith.constant 0 : index
    %172 = vector.load %arg14[%c0_88, %c0_89, %c0_90] : memref<2x1x32xf32, #tpu.memory_space<vmem>>, vector<1x1x32xf32>
    %173 = vector.shape_cast %172 : vector<1x1x32xf32> to vector<1x32xf32>
    %cst_91 = arith.constant dense<0.000000e+00> : vector<36xf32>
    %174 = vector.multi_reduction <add>, %169, %cst_91 [1] : vector<36x32xf32> to vector<36xf32>
    %175 = vector.shape_cast %174 : vector<36xf32> to vector<36x1xf32>
    %cst_92 = arith.constant 3.200000e+01 : f32
    %176 = vector.broadcast %cst_92 : f32 to vector<36x1xf32>
    %177 = arith.divf %175, %176 : vector<36x1xf32>
    %178 = vector.broadcast %177 : vector<36x1xf32> to vector<36x32xf32>
    %179 = arith.subf %169, %178 : vector<36x32xf32>
    %180 = arith.mulf %179, %179 : vector<36x32xf32>
    %cst_93 = arith.constant dense<0.000000e+00> : vector<36xf32>
    %181 = vector.multi_reduction <add>, %180, %cst_93 [1] : vector<36x32xf32> to vector<36xf32>
    %182 = vector.shape_cast %181 : vector<36xf32> to vector<36x1xf32>
    %cst_94 = arith.constant 3.200000e+01 : f32
    %183 = vector.broadcast %cst_94 : f32 to vector<36x1xf32>
    %184 = arith.divf %182, %183 : vector<36x1xf32>
    %185 = vector.broadcast %177 : vector<36x1xf32> to vector<36x32xf32>
    %186 = arith.subf %169, %185 : vector<36x32xf32>
    %cst_95 = arith.constant 9.99999974E-6 : f32
    %187 = vector.broadcast %cst_95 : f32 to vector<36x1xf32>
    %188 = arith.addf %184, %187 : vector<36x1xf32>
    %189 = math.rsqrt %188 : vector<36x1xf32>
    %190 = vector.broadcast %189 : vector<36x1xf32> to vector<36x32xf32>
    %191 = arith.mulf %186, %190 : vector<36x32xf32>
    %192 = vector.broadcast %171 : vector<1x32xf32> to vector<36x32xf32>
    %193 = arith.mulf %191, %192 : vector<36x32xf32>
    %194 = vector.broadcast %173 : vector<1x32xf32> to vector<36x32xf32>
    %195 = arith.addf %193, %194 : vector<36x32xf32>
    %c1 = arith.constant 1 : index
    %c0_96 = arith.constant 0 : index
    %c0_97 = arith.constant 0 : index
    %196 = vector.load %arg7[%c1, %c0_96, %c0_97] : memref<2x32x96xf32, #tpu.memory_space<vmem>>, vector<1x32x96xf32>
    %197 = vector.shape_cast %196 : vector<1x32x96xf32> to vector<32x96xf32>
    %cst_98 = arith.constant dense<0.000000e+00> : vector<36x96xf32>
    %198 = tpu.matmul %195, %197, %cst_98 {dimension_numbers = #tpu.dot_dimension_numbers<[1], [0], [0], [1], [0, 0, 1, 1], [], []>} : vector<36x32xf32>, vector<32x96xf32>, vector<36x96xf32> -> vector<36x96xf32>
    %c1_99 = arith.constant 1 : index
    %c0_100 = arith.constant 0 : index
    %c0_101 = arith.constant 0 : index
    %199 = vector.load %arg8[%c1_99, %c0_100, %c0_101] : memref<2x1x96xf32, #tpu.memory_space<vmem>>, vector<1x1x96xf32>
    %200 = vector.shape_cast %199 : vector<1x1x96xf32> to vector<1x96xf32>
    %201 = vector.broadcast %200 : vector<1x96xf32> to vector<36x96xf32>
    %202 = arith.addf %198, %201 : vector<36x96xf32>
    %203 = vector.extract_strided_slice %202 {offsets = [0, 0], sizes = [36, 8], strides = [1, 1]} : vector<36x96xf32> to vector<36x8xf32>
    %204 = vector.extract_strided_slice %202 {offsets = [0, 32], sizes = [36, 8], strides = [1, 1]} : vector<36x96xf32> to vector<36x8xf32>
    %205 = vector.extract_strided_slice %202 {offsets = [0, 64], sizes = [36, 8], strides = [1, 1]} : vector<36x96xf32> to vector<36x8xf32>
    %206 = tpu.transpose %204, [1, 0] : vector<36x8xf32> -> vector<8x36xf32>
    %cst_102 = arith.constant dense<0.000000e+00> : vector<36x36xf32>
    %207 = tpu.matmul %203, %206, %cst_102 {dimension_numbers = #tpu.dot_dimension_numbers<[1], [0], [0], [1], [0, 0, 1, 1], [], []>} : vector<36x8xf32>, vector<8x36xf32>, vector<36x36xf32> -> vector<36x36xf32>
    %cst_103 = arith.constant 0.353553385 : f32
    %208 = vector.broadcast %cst_103 : f32 to vector<36x36xf32>
    %209 = arith.mulf %207, %208 : vector<36x36xf32>
    %210 = arith.addf %209, %19 : vector<36x36xf32>
    %cst_104 = arith.constant dense<0xFF800000> : vector<36xf32>
    %211 = vector.multi_reduction <maximumf>, %210, %cst_104 [1] : vector<36x36xf32> to vector<36xf32>
    %212 = vector.shape_cast %211 : vector<36xf32> to vector<36x1xf32>
    %213 = vector.broadcast %212 : vector<36x1xf32> to vector<36x36xf32>
    %214 = arith.subf %210, %213 : vector<36x36xf32>
    %215 = math.exp %214 : vector<36x36xf32>
    %cst_105 = arith.constant dense<0.000000e+00> : vector<36xf32>
    %216 = vector.multi_reduction <add>, %215, %cst_105 [1] : vector<36x36xf32> to vector<36xf32>
    %217 = vector.shape_cast %216 : vector<36xf32> to vector<36x1xf32>
    %218 = tpu.reciprocal %217 {approx = true} : vector<36x1xf32> -> vector<36x1xf32>
    %219 = vector.broadcast %218 : vector<36x1xf32> to vector<36x36xf32>
    %220 = arith.mulf %215, %219 : vector<36x36xf32>
    %cst_106 = arith.constant dense<0.000000e+00> : vector<36x8xf32>
    %221 = tpu.matmul %220, %205, %cst_106 {dimension_numbers = #tpu.dot_dimension_numbers<[1], [0], [0], [1], [0, 0, 1, 1], [], []>} : vector<36x36xf32>, vector<36x8xf32>, vector<36x8xf32> -> vector<36x8xf32>
    %c1_107 = arith.constant 1 : index
    %c0_108 = arith.constant 0 : index
    %c0_109 = arith.constant 0 : index
    %222 = vector.load %arg9[%c1_107, %c0_108, %c0_109] : memref<2x32x32xf32, #tpu.memory_space<vmem>>, vector<1x32x32xf32>
    %223 = vector.shape_cast %222 : vector<1x32x32xf32> to vector<32x32xf32>
    %224 = vector.extract_strided_slice %223 {offsets = [0, 0], sizes = [8, 32], strides = [1, 1]} : vector<32x32xf32> to vector<8x32xf32>
    %cst_110 = arith.constant dense<0.000000e+00> : vector<36x32xf32>
    %225 = tpu.matmul %221, %224, %cst_110 {dimension_numbers = #tpu.dot_dimension_numbers<[1], [0], [0], [1], [0, 0, 1, 1], [], []>} : vector<36x8xf32>, vector<8x32xf32>, vector<36x32xf32> -> vector<36x32xf32>
    %226 = vector.extract_strided_slice %202 {offsets = [0, 8], sizes = [36, 8], strides = [1, 1]} : vector<36x96xf32> to vector<36x8xf32>
    %227 = vector.extract_strided_slice %202 {offsets = [0, 40], sizes = [36, 8], strides = [1, 1]} : vector<36x96xf32> to vector<36x8xf32>
    %228 = vector.extract_strided_slice %202 {offsets = [0, 72], sizes = [36, 8], strides = [1, 1]} : vector<36x96xf32> to vector<36x8xf32>
    %229 = tpu.transpose %227, [1, 0] : vector<36x8xf32> -> vector<8x36xf32>
    %cst_111 = arith.constant dense<0.000000e+00> : vector<36x36xf32>
    %230 = tpu.matmul %226, %229, %cst_111 {dimension_numbers = #tpu.dot_dimension_numbers<[1], [0], [0], [1], [0, 0, 1, 1], [], []>} : vector<36x8xf32>, vector<8x36xf32>, vector<36x36xf32> -> vector<36x36xf32>
    %cst_112 = arith.constant 0.353553385 : f32
    %231 = vector.broadcast %cst_112 : f32 to vector<36x36xf32>
    %232 = arith.mulf %230, %231 : vector<36x36xf32>
    %233 = arith.addf %232, %19 : vector<36x36xf32>
    %cst_113 = arith.constant dense<0xFF800000> : vector<36xf32>
    %234 = vector.multi_reduction <maximumf>, %233, %cst_113 [1] : vector<36x36xf32> to vector<36xf32>
    %235 = vector.shape_cast %234 : vector<36xf32> to vector<36x1xf32>
    %236 = vector.broadcast %235 : vector<36x1xf32> to vector<36x36xf32>
    %237 = arith.subf %233, %236 : vector<36x36xf32>
    %238 = math.exp %237 : vector<36x36xf32>
    %cst_114 = arith.constant dense<0.000000e+00> : vector<36xf32>
    %239 = vector.multi_reduction <add>, %238, %cst_114 [1] : vector<36x36xf32> to vector<36xf32>
    %240 = vector.shape_cast %239 : vector<36xf32> to vector<36x1xf32>
    %241 = tpu.reciprocal %240 {approx = true} : vector<36x1xf32> -> vector<36x1xf32>
    %242 = vector.broadcast %241 : vector<36x1xf32> to vector<36x36xf32>
    %243 = arith.mulf %238, %242 : vector<36x36xf32>
    %cst_115 = arith.constant dense<0.000000e+00> : vector<36x8xf32>
    %244 = tpu.matmul %243, %228, %cst_115 {dimension_numbers = #tpu.dot_dimension_numbers<[1], [0], [0], [1], [0, 0, 1, 1], [], []>} : vector<36x36xf32>, vector<36x8xf32>, vector<36x8xf32> -> vector<36x8xf32>
    %c1_116 = arith.constant 1 : index
    %c0_117 = arith.constant 0 : index
    %c0_118 = arith.constant 0 : index
    %245 = vector.load %arg9[%c1_116, %c0_117, %c0_118] : memref<2x32x32xf32, #tpu.memory_space<vmem>>, vector<1x32x32xf32>
    %246 = vector.shape_cast %245 : vector<1x32x32xf32> to vector<32x32xf32>
    %247 = vector.extract_strided_slice %246 {offsets = [8, 0], sizes = [8, 32], strides = [1, 1]} : vector<32x32xf32> to vector<8x32xf32>
    %cst_119 = arith.constant dense<0.000000e+00> : vector<36x32xf32>
    %248 = tpu.matmul %244, %247, %cst_119 {dimension_numbers = #tpu.dot_dimension_numbers<[1], [0], [0], [1], [0, 0, 1, 1], [], []>} : vector<36x8xf32>, vector<8x32xf32>, vector<36x32xf32> -> vector<36x32xf32>
    %249 = arith.addf %225, %248 : vector<36x32xf32>
    %250 = vector.extract_strided_slice %202 {offsets = [0, 16], sizes = [36, 8], strides = [1, 1]} : vector<36x96xf32> to vector<36x8xf32>
    %251 = vector.extract_strided_slice %202 {offsets = [0, 48], sizes = [36, 8], strides = [1, 1]} : vector<36x96xf32> to vector<36x8xf32>
    %252 = vector.extract_strided_slice %202 {offsets = [0, 80], sizes = [36, 8], strides = [1, 1]} : vector<36x96xf32> to vector<36x8xf32>
    %253 = tpu.transpose %251, [1, 0] : vector<36x8xf32> -> vector<8x36xf32>
    %cst_120 = arith.constant dense<0.000000e+00> : vector<36x36xf32>
    %254 = tpu.matmul %250, %253, %cst_120 {dimension_numbers = #tpu.dot_dimension_numbers<[1], [0], [0], [1], [0, 0, 1, 1], [], []>} : vector<36x8xf32>, vector<8x36xf32>, vector<36x36xf32> -> vector<36x36xf32>
    %cst_121 = arith.constant 0.353553385 : f32
    %255 = vector.broadcast %cst_121 : f32 to vector<36x36xf32>
    %256 = arith.mulf %254, %255 : vector<36x36xf32>
    %257 = arith.addf %256, %19 : vector<36x36xf32>
    %cst_122 = arith.constant dense<0xFF800000> : vector<36xf32>
    %258 = vector.multi_reduction <maximumf>, %257, %cst_122 [1] : vector<36x36xf32> to vector<36xf32>
    %259 = vector.shape_cast %258 : vector<36xf32> to vector<36x1xf32>
    %260 = vector.broadcast %259 : vector<36x1xf32> to vector<36x36xf32>
    %261 = arith.subf %257, %260 : vector<36x36xf32>
    %262 = math.exp %261 : vector<36x36xf32>
    %cst_123 = arith.constant dense<0.000000e+00> : vector<36xf32>
    %263 = vector.multi_reduction <add>, %262, %cst_123 [1] : vector<36x36xf32> to vector<36xf32>
    %264 = vector.shape_cast %263 : vector<36xf32> to vector<36x1xf32>
    %265 = tpu.reciprocal %264 {approx = true} : vector<36x1xf32> -> vector<36x1xf32>
    %266 = vector.broadcast %265 : vector<36x1xf32> to vector<36x36xf32>
    %267 = arith.mulf %262, %266 : vector<36x36xf32>
    %cst_124 = arith.constant dense<0.000000e+00> : vector<36x8xf32>
    %268 = tpu.matmul %267, %252, %cst_124 {dimension_numbers = #tpu.dot_dimension_numbers<[1], [0], [0], [1], [0, 0, 1, 1], [], []>} : vector<36x36xf32>, vector<36x8xf32>, vector<36x8xf32> -> vector<36x8xf32>
    %c1_125 = arith.constant 1 : index
    %c0_126 = arith.constant 0 : index
    %c0_127 = arith.constant 0 : index
    %269 = vector.load %arg9[%c1_125, %c0_126, %c0_127] : memref<2x32x32xf32, #tpu.memory_space<vmem>>, vector<1x32x32xf32>
    %270 = vector.shape_cast %269 : vector<1x32x32xf32> to vector<32x32xf32>
    %271 = vector.extract_strided_slice %270 {offsets = [16, 0], sizes = [8, 32], strides = [1, 1]} : vector<32x32xf32> to vector<8x32xf32>
    %cst_128 = arith.constant dense<0.000000e+00> : vector<36x32xf32>
    %272 = tpu.matmul %268, %271, %cst_128 {dimension_numbers = #tpu.dot_dimension_numbers<[1], [0], [0], [1], [0, 0, 1, 1], [], []>} : vector<36x8xf32>, vector<8x32xf32>, vector<36x32xf32> -> vector<36x32xf32>
    %273 = arith.addf %249, %272 : vector<36x32xf32>
    %274 = vector.extract_strided_slice %202 {offsets = [0, 24], sizes = [36, 8], strides = [1, 1]} : vector<36x96xf32> to vector<36x8xf32>
    %275 = vector.extract_strided_slice %202 {offsets = [0, 56], sizes = [36, 8], strides = [1, 1]} : vector<36x96xf32> to vector<36x8xf32>
    %276 = vector.extract_strided_slice %202 {offsets = [0, 88], sizes = [36, 8], strides = [1, 1]} : vector<36x96xf32> to vector<36x8xf32>
    %277 = tpu.transpose %275, [1, 0] : vector<36x8xf32> -> vector<8x36xf32>
    %cst_129 = arith.constant dense<0.000000e+00> : vector<36x36xf32>
    %278 = tpu.matmul %274, %277, %cst_129 {dimension_numbers = #tpu.dot_dimension_numbers<[1], [0], [0], [1], [0, 0, 1, 1], [], []>} : vector<36x8xf32>, vector<8x36xf32>, vector<36x36xf32> -> vector<36x36xf32>
    %cst_130 = arith.constant 0.353553385 : f32
    %279 = vector.broadcast %cst_130 : f32 to vector<36x36xf32>
    %280 = arith.mulf %278, %279 : vector<36x36xf32>
    %281 = arith.addf %280, %19 : vector<36x36xf32>
    %cst_131 = arith.constant dense<0xFF800000> : vector<36xf32>
    %282 = vector.multi_reduction <maximumf>, %281, %cst_131 [1] : vector<36x36xf32> to vector<36xf32>
    %283 = vector.shape_cast %282 : vector<36xf32> to vector<36x1xf32>
    %284 = vector.broadcast %283 : vector<36x1xf32> to vector<36x36xf32>
    %285 = arith.subf %281, %284 : vector<36x36xf32>
    %286 = math.exp %285 : vector<36x36xf32>
    %cst_132 = arith.constant dense<0.000000e+00> : vector<36xf32>
    %287 = vector.multi_reduction <add>, %286, %cst_132 [1] : vector<36x36xf32> to vector<36xf32>
    %288 = vector.shape_cast %287 : vector<36xf32> to vector<36x1xf32>
    %289 = tpu.reciprocal %288 {approx = true} : vector<36x1xf32> -> vector<36x1xf32>
    %290 = vector.broadcast %289 : vector<36x1xf32> to vector<36x36xf32>
    %291 = arith.mulf %286, %290 : vector<36x36xf32>
    %cst_133 = arith.constant dense<0.000000e+00> : vector<36x8xf32>
    %292 = tpu.matmul %291, %276, %cst_133 {dimension_numbers = #tpu.dot_dimension_numbers<[1], [0], [0], [1], [0, 0, 1, 1], [], []>} : vector<36x36xf32>, vector<36x8xf32>, vector<36x8xf32> -> vector<36x8xf32>
    %c1_134 = arith.constant 1 : index
    %c0_135 = arith.constant 0 : index
    %c0_136 = arith.constant 0 : index
    %293 = vector.load %arg9[%c1_134, %c0_135, %c0_136] : memref<2x32x32xf32, #tpu.memory_space<vmem>>, vector<1x32x32xf32>
    %294 = vector.shape_cast %293 : vector<1x32x32xf32> to vector<32x32xf32>
    %295 = vector.extract_strided_slice %294 {offsets = [24, 0], sizes = [8, 32], strides = [1, 1]} : vector<32x32xf32> to vector<8x32xf32>
    %cst_137 = arith.constant dense<0.000000e+00> : vector<36x32xf32>
    %296 = tpu.matmul %292, %295, %cst_137 {dimension_numbers = #tpu.dot_dimension_numbers<[1], [0], [0], [1], [0, 0, 1, 1], [], []>} : vector<36x8xf32>, vector<8x32xf32>, vector<36x32xf32> -> vector<36x32xf32>
    %297 = arith.addf %273, %296 : vector<36x32xf32>
    %c1_138 = arith.constant 1 : index
    %c0_139 = arith.constant 0 : index
    %c0_140 = arith.constant 0 : index
    %298 = vector.load %arg10[%c1_138, %c0_139, %c0_140] : memref<2x1x32xf32, #tpu.memory_space<vmem>>, vector<1x1x32xf32>
    %299 = vector.shape_cast %298 : vector<1x1x32xf32> to vector<1x32xf32>
    %300 = vector.broadcast %299 : vector<1x32xf32> to vector<36x32xf32>
    %301 = arith.addf %297, %300 : vector<36x32xf32>
    %302 = arith.addf %195, %301 : vector<36x32xf32>
    %c1_141 = arith.constant 1 : index
    %c0_142 = arith.constant 0 : index
    %c0_143 = arith.constant 0 : index
    %303 = vector.load %arg11[%c1_141, %c0_142, %c0_143] : memref<2x1x32xf32, #tpu.memory_space<vmem>>, vector<1x1x32xf32>
    %304 = vector.shape_cast %303 : vector<1x1x32xf32> to vector<1x32xf32>
    %c1_144 = arith.constant 1 : index
    %c0_145 = arith.constant 0 : index
    %c0_146 = arith.constant 0 : index
    %305 = vector.load %arg12[%c1_144, %c0_145, %c0_146] : memref<2x1x32xf32, #tpu.memory_space<vmem>>, vector<1x1x32xf32>
    %306 = vector.shape_cast %305 : vector<1x1x32xf32> to vector<1x32xf32>
    %cst_147 = arith.constant dense<0.000000e+00> : vector<36xf32>
    %307 = vector.multi_reduction <add>, %302, %cst_147 [1] : vector<36x32xf32> to vector<36xf32>
    %308 = vector.shape_cast %307 : vector<36xf32> to vector<36x1xf32>
    %cst_148 = arith.constant 3.200000e+01 : f32
    %309 = vector.broadcast %cst_148 : f32 to vector<36x1xf32>
    %310 = arith.divf %308, %309 : vector<36x1xf32>
    %311 = vector.broadcast %310 : vector<36x1xf32> to vector<36x32xf32>
    %312 = arith.subf %302, %311 : vector<36x32xf32>
    %313 = arith.mulf %312, %312 : vector<36x32xf32>
    %cst_149 = arith.constant dense<0.000000e+00> : vector<36xf32>
    %314 = vector.multi_reduction <add>, %313, %cst_149 [1] : vector<36x32xf32> to vector<36xf32>
    %315 = vector.shape_cast %314 : vector<36xf32> to vector<36x1xf32>
    %cst_150 = arith.constant 3.200000e+01 : f32
    %316 = vector.broadcast %cst_150 : f32 to vector<36x1xf32>
    %317 = arith.divf %315, %316 : vector<36x1xf32>
    %318 = vector.broadcast %310 : vector<36x1xf32> to vector<36x32xf32>
    %319 = arith.subf %302, %318 : vector<36x32xf32>
    %cst_151 = arith.constant 9.99999974E-6 : f32
    %320 = vector.broadcast %cst_151 : f32 to vector<36x1xf32>
    %321 = arith.addf %317, %320 : vector<36x1xf32>
    %322 = math.rsqrt %321 : vector<36x1xf32>
    %323 = vector.broadcast %322 : vector<36x1xf32> to vector<36x32xf32>
    %324 = arith.mulf %319, %323 : vector<36x32xf32>
    %325 = vector.broadcast %304 : vector<1x32xf32> to vector<36x32xf32>
    %326 = arith.mulf %324, %325 : vector<36x32xf32>
    %327 = vector.broadcast %306 : vector<1x32xf32> to vector<36x32xf32>
    %328 = arith.addf %326, %327 : vector<36x32xf32>
    %c1_152 = arith.constant 1 : index
    %c0_153 = arith.constant 0 : index
    %c0_154 = arith.constant 0 : index
    %329 = vector.load %arg15[%c1_152, %c0_153, %c0_154] : memref<2x32x64xf32, #tpu.memory_space<vmem>>, vector<1x32x64xf32>
    %330 = vector.shape_cast %329 : vector<1x32x64xf32> to vector<32x64xf32>
    %cst_155 = arith.constant dense<0.000000e+00> : vector<36x64xf32>
    %331 = tpu.matmul %328, %330, %cst_155 {dimension_numbers = #tpu.dot_dimension_numbers<[1], [0], [0], [1], [0, 0, 1, 1], [], []>} : vector<36x32xf32>, vector<32x64xf32>, vector<36x64xf32> -> vector<36x64xf32>
    %c1_156 = arith.constant 1 : index
    %c0_157 = arith.constant 0 : index
    %c0_158 = arith.constant 0 : index
    %332 = vector.load %arg16[%c1_156, %c0_157, %c0_158] : memref<2x1x64xf32, #tpu.memory_space<vmem>>, vector<1x1x64xf32>
    %333 = vector.shape_cast %332 : vector<1x1x64xf32> to vector<1x64xf32>
    %334 = vector.broadcast %333 : vector<1x64xf32> to vector<36x64xf32>
    %335 = arith.addf %331, %334 : vector<36x64xf32>
    %cst_159 = arith.constant 0.000000e+00 : f32
    %336 = vector.broadcast %cst_159 : f32 to vector<36x64xf32>
    %337 = arith.maximumf %335, %336 : vector<36x64xf32>
    %c1_160 = arith.constant 1 : index
    %c0_161 = arith.constant 0 : index
    %c0_162 = arith.constant 0 : index
    %338 = vector.load %arg17[%c1_160, %c0_161, %c0_162] : memref<2x64x32xf32, #tpu.memory_space<vmem>>, vector<1x64x32xf32>
    %339 = vector.shape_cast %338 : vector<1x64x32xf32> to vector<64x32xf32>
    %cst_163 = arith.constant dense<0.000000e+00> : vector<36x32xf32>
    %340 = tpu.matmul %337, %339, %cst_163 {dimension_numbers = #tpu.dot_dimension_numbers<[1], [0], [0], [1], [0, 0, 1, 1], [], []>} : vector<36x64xf32>, vector<64x32xf32>, vector<36x32xf32> -> vector<36x32xf32>
    %c1_164 = arith.constant 1 : index
    %c0_165 = arith.constant 0 : index
    %c0_166 = arith.constant 0 : index
    %341 = vector.load %arg18[%c1_164, %c0_165, %c0_166] : memref<2x1x32xf32, #tpu.memory_space<vmem>>, vector<1x1x32xf32>
    %342 = vector.shape_cast %341 : vector<1x1x32xf32> to vector<1x32xf32>
    %343 = vector.broadcast %342 : vector<1x32xf32> to vector<36x32xf32>
    %344 = arith.addf %340, %343 : vector<36x32xf32>
    %345 = arith.addf %328, %344 : vector<36x32xf32>
    %c1_167 = arith.constant 1 : index
    %c0_168 = arith.constant 0 : index
    %c0_169 = arith.constant 0 : index
    %346 = vector.load %arg13[%c1_167, %c0_168, %c0_169] : memref<2x1x32xf32, #tpu.memory_space<vmem>>, vector<1x1x32xf32>
    %347 = vector.shape_cast %346 : vector<1x1x32xf32> to vector<1x32xf32>
    %c1_170 = arith.constant 1 : index
    %c0_171 = arith.constant 0 : index
    %c0_172 = arith.constant 0 : index
    %348 = vector.load %arg14[%c1_170, %c0_171, %c0_172] : memref<2x1x32xf32, #tpu.memory_space<vmem>>, vector<1x1x32xf32>
    %349 = vector.shape_cast %348 : vector<1x1x32xf32> to vector<1x32xf32>
    %cst_173 = arith.constant dense<0.000000e+00> : vector<36xf32>
    %350 = vector.multi_reduction <add>, %345, %cst_173 [1] : vector<36x32xf32> to vector<36xf32>
    %351 = vector.shape_cast %350 : vector<36xf32> to vector<36x1xf32>
    %cst_174 = arith.constant 3.200000e+01 : f32
    %352 = vector.broadcast %cst_174 : f32 to vector<36x1xf32>
    %353 = arith.divf %351, %352 : vector<36x1xf32>
    %354 = vector.broadcast %353 : vector<36x1xf32> to vector<36x32xf32>
    %355 = arith.subf %345, %354 : vector<36x32xf32>
    %356 = arith.mulf %355, %355 : vector<36x32xf32>
    %cst_175 = arith.constant dense<0.000000e+00> : vector<36xf32>
    %357 = vector.multi_reduction <add>, %356, %cst_175 [1] : vector<36x32xf32> to vector<36xf32>
    %358 = vector.shape_cast %357 : vector<36xf32> to vector<36x1xf32>
    %cst_176 = arith.constant 3.200000e+01 : f32
    %359 = vector.broadcast %cst_176 : f32 to vector<36x1xf32>
    %360 = arith.divf %358, %359 : vector<36x1xf32>
    %361 = vector.broadcast %353 : vector<36x1xf32> to vector<36x32xf32>
    %362 = arith.subf %345, %361 : vector<36x32xf32>
    %cst_177 = arith.constant 9.99999974E-6 : f32
    %363 = vector.broadcast %cst_177 : f32 to vector<36x1xf32>
    %364 = arith.addf %360, %363 : vector<36x1xf32>
    %365 = math.rsqrt %364 : vector<36x1xf32>
    %366 = vector.broadcast %365 : vector<36x1xf32> to vector<36x32xf32>
    %367 = arith.mulf %362, %366 : vector<36x32xf32>
    %368 = vector.broadcast %347 : vector<1x32xf32> to vector<36x32xf32>
    %369 = arith.mulf %367, %368 : vector<36x32xf32>
    %370 = vector.broadcast %349 : vector<1x32xf32> to vector<36x32xf32>
    %371 = arith.addf %369, %370 : vector<36x32xf32>
    %372 = vector.extract_strided_slice %371 {offsets = [0, 0], sizes = [4, 32], strides = [1, 1]} : vector<36x32xf32> to vector<4x32xf32>
    %c0_178 = arith.constant 0 : index
    %c0_179 = arith.constant 0 : index
    %373 = vector.load %arg19[%c0_178, %c0_179] : memref<32x128xf32, #tpu.memory_space<vmem>>, vector<32x128xf32>
    %cst_180 = arith.constant dense<0.000000e+00> : vector<4x128xf32>
    %374 = tpu.matmul %372, %373, %cst_180 {dimension_numbers = #tpu.dot_dimension_numbers<[1], [0], [0], [1], [0, 0, 1, 1], [], []>} : vector<4x32xf32>, vector<32x128xf32>, vector<4x128xf32> -> vector<4x128xf32>
    %c0_181 = arith.constant 0 : index
    %c0_182 = arith.constant 0 : index
    %375 = vector.load %arg20[%c0_181, %c0_182] : memref<1x128xf32, #tpu.memory_space<vmem>>, vector<1x128xf32>
    %376 = vector.broadcast %375 : vector<1x128xf32> to vector<4x128xf32>
    %377 = arith.addf %374, %376 : vector<4x128xf32>
    %378 = vector.extract_strided_slice %371 {offsets = [4, 0], sizes = [32, 32], strides = [1, 1]} : vector<36x32xf32> to vector<32x32xf32>
    %c0_183 = arith.constant 0 : index
    %c0_184 = arith.constant 0 : index
    %379 = vector.load %arg21[%c0_183, %c0_184] : memref<32x1xf32, #tpu.memory_space<vmem>>, vector<32x1xf32>
    %cst_185 = arith.constant dense<0.000000e+00> : vector<32x1xf32>
    %380 = tpu.matmul %378, %379, %cst_185 {dimension_numbers = #tpu.dot_dimension_numbers<[1], [0], [0], [1], [0, 0, 1, 1], [], []>} : vector<32x32xf32>, vector<32x1xf32>, vector<32x1xf32> -> vector<32x1xf32>
    %c0_186 = arith.constant 0 : index
    %c0_187 = arith.constant 0 : index
    %381 = vector.load %arg22[%c0_186, %c0_187] : memref<1x1xf32, #tpu.memory_space<vmem>>, vector<1x1xf32>
    %382 = vector.broadcast %381 : vector<1x1xf32> to vector<32x1xf32>
    %383 = arith.addf %380, %382 : vector<32x1xf32>
    %c0_188 = arith.constant 0 : index
    %c0_189 = arith.constant 0 : index
    %384 = vector.load %arg23[%c0_188, %c0_189] : memref<4x32xf32, #tpu.memory_space<vmem>>, vector<4x32xf32>
    %c0_190 = arith.constant 0 : index
    %c0_191 = arith.constant 0 : index
    %385 = vector.load %arg24[%c0_190, %c0_191] : memref<32x128xf32, #tpu.memory_space<vmem>>, vector<32x128xf32>
    %386 = vector.broadcast %383 : vector<32x1xf32> to vector<32x128xf32>
    %387 = arith.mulf %386, %385 : vector<32x128xf32>
    %cst_192 = arith.constant dense<0.000000e+00> : vector<4x128xf32>
    %388 = tpu.matmul %384, %387, %cst_192 {dimension_numbers = #tpu.dot_dimension_numbers<[1], [0], [0], [1], [0, 0, 1, 1], [], []>} : vector<4x32xf32>, vector<32x128xf32>, vector<4x128xf32> -> vector<4x128xf32>
    %389 = arith.addf %377, %388 : vector<4x128xf32>
    %c0_193 = arith.constant 0 : index
    %c0_194 = arith.constant 0 : index
    %390 = vector.load %arg25[%c0_193, %c0_194] : memref<4x128xf32, #tpu.memory_space<vmem>>, vector<4x128xf32>
    tpu.vector_store %arg25[%c0_193, %c0_194], %389 {strides = array<i32>} : memref<4x128xf32, #tpu.memory_space<vmem>>, vector<4x128xf32>,
    return
  }
}

</mosaic_0001>

<llo_original>
// kernel: tpu_custom_call.1
$region0: #{tpu_custom_call.1}
  #allocation0 [shape = 'u32[]', space=smem, size = 0x4, offset = 0x4, fixed_abs, tag = 'smem constant byte address 0x4 - core index']
  #allocation1 [shape = 'u32[144,128]{1,0:T(1,128)}', space=vmem, size = 0x12000, scoped, tag = 'internal scratch']
  #allocation2 [shape = 'f32[1,1]{1,0:T(1,128)S(1)}', space=vmem, size = 0x200, scoped, tag = 'scoped memory for tpu_custom_call.1']
  %s0 = inlined_call_operand.vmem [shape: f32[36,1], index: 0, kind: input, shape index: {}]
  %s1 = inlined_call_operand.vmem [shape: f32[36,1], index: 1, kind: input, shape index: {}]
  %s2 = inlined_call_operand.vmem [shape: f32[36,32], index: 2, kind: input, shape index: {}]
  %s3 = inlined_call_operand.vmem [shape: f32[36,36], index: 3, kind: input, shape index: {}]
  %s4 = inlined_call_operand.vmem [shape: f32[1,32], index: 4, kind: input, shape index: {}]
  %s5 = inlined_call_operand.vmem [shape: f32[1,32], index: 5, kind: input, shape index: {}]
  %s6 = inlined_call_operand.vmem [shape: f32[1,32], index: 6, kind: input, shape index: {}]
  %s7 = inlined_call_operand.vmem [shape: f32[2,32,96], index: 7, kind: input, shape index: {}]
  %s8 = inlined_call_operand.vmem [shape: f32[2,1,96], index: 8, kind: input, shape index: {}]
  %s9 = inlined_call_operand.vmem [shape: f32[2,32,32], index: 9, kind: input, shape index: {}]
  %s10 = inlined_call_operand.vmem [shape: f32[2,1,32], index: 10, kind: input, shape index: {}]
  %s11 = inlined_call_operand.vmem [shape: f32[2,1,32], index: 11, kind: input, shape index: {}]
  %s12 = inlined_call_operand.vmem [shape: f32[2,1,32], index: 12, kind: input, shape index: {}]
  %s13 = inlined_call_operand.vmem [shape: f32[2,1,32], index: 13, kind: input, shape index: {}]
  %s14 = inlined_call_operand.vmem [shape: f32[2,1,32], index: 14, kind: input, shape index: {}]
  %s15 = inlined_call_operand.vmem [shape: f32[2,32,64], index: 15, kind: input, shape index: {}]
  %s16 = inlined_call_operand.vmem [shape: f32[2,1,64], index: 16, kind: input, shape index: {}]
  %s17 = inlined_call_operand.vmem [shape: f32[2,64,32], index: 17, kind: input, shape index: {}]
  %s18 = inlined_call_operand.vmem [shape: f32[2,1,32], index: 18, kind: input, shape index: {}]
  %s19 = inlined_call_operand.vmem [shape: f32[32,128], index: 19, kind: input, shape index: {}]
  %s20 = inlined_call_operand.vmem [shape: f32[1,128], index: 20, kind: input, shape index: {}]
  %s21 = inlined_call_operand.vmem [shape: f32[32,1], index: 21, kind: input, shape index: {}]
  %s22 = inlined_call_operand.<no memory space> [shape: f32[1,1], index: 22, kind: input, shape index: {}]
  %s23 = inlined_call_operand.vmem [shape: f32[4,32], index: 23, kind: input, shape index: {}]
  %s24 = inlined_call_operand.vmem [shape: f32[32,128], index: 24, kind: input, shape index: {}]
  %s25 = inlined_call_operand.hbm [shape: f32[4,128], index: 25, kind: output, shape index: {}]
  %s26 = sld [smem:[#allocation0]]
  $region110: #{tpu_custom_call.1} parent=0
    _
  %s28 = ssub.s32 1, %s26
  %s29 = scalar_select 0, %s28, %s26
  %v30 = vstv %s22
  %31 = vst [vmem:[#allocation2] sm:$0x1] %v30
  $region1: #{tpu_custom_call.1} parent=0
    #allocation3 [shape = 'u8[2048]{0}', space=vmem, size = 0x800, scoped, tag = 'output window, operand 0, single buffered']
    #allocation4 [shape = 's32[1]{0}', space=sflag, size = 0x4, scoped, tag = 'scoped memory for tpu_custom_call.1']
    %32 = vsyncpa [#allocation4], 0
    // Predicated region
    $region2: #{tpu_custom_call.1} parent=1 // pred_check
      _
    $region3: #{tpu_custom_call.1} parent=1 // pred_check_branch
      %34 = sbr.rel (0) target = $region5
    $region4: #{tpu_custom_call.1} parent=1 // pred_region
      _
    $region5: #{tpu_custom_call.1} parent=1 // pred_fallthru
      _
    // Predicated region
    $region6: #{tpu_custom_call.1} parent=1 // pred_check
      _
    $region7: #{tpu_custom_call.1} parent=1 // pred_check_branch
      %36 = sbr.rel (0) target = $region9
    $region8: #{tpu_custom_call.1} parent=1 // pred_region
      _
    $region9: #{tpu_custom_call.1} parent=1 // pred_fallthru
      _
    // Predicated region
    $region10: #{tpu_custom_call.1} parent=1 // pred_check
      _
    $region11: #{tpu_custom_call.1} parent=1 // pred_check_branch
      %38 = sbr.rel (0) target = $region13
    $region12: #{tpu_custom_call.1} parent=1 // pred_region
      _
    $region13: #{tpu_custom_call.1} parent=1 // pred_fallthru
      _
    // Predicated region
    $region14: #{tpu_custom_call.1} parent=1 // pred_check
      _
    $region15: #{tpu_custom_call.1} parent=1 // pred_check_branch
      %40 = sbr.rel (0) target = $region17
    $region16: #{tpu_custom_call.1} parent=1 // pred_region
      _
    $region17: #{tpu_custom_call.1} parent=1 // pred_fallthru
      _
    // Predicated region
    $region18: #{tpu_custom_call.1} parent=1 // pred_check
      _
    $region19: #{tpu_custom_call.1} parent=1 // pred_check_branch
      %42 = sbr.rel (0) target = $region21
    $region20: #{tpu_custom_call.1} parent=1 // pred_region
      _
    $region21: #{tpu_custom_call.1} parent=1 // pred_fallthru
      _
    // Predicated region
    $region22: #{tpu_custom_call.1} parent=1 // pred_check
      _
    $region23: #{tpu_custom_call.1} parent=1 // pred_check_branch
      %44 = sbr.rel (0) target = $region25
    $region24: #{tpu_custom_call.1} parent=1 // pred_region
      _
    $region25: #{tpu_custom_call.1} parent=1 // pred_fallthru
      _
    // Predicated region
    $region26: #{tpu_custom_call.1} parent=1 // pred_check
      _
    $region27: #{tpu_custom_call.1} parent=1 // pred_check_branch
      %46 = sbr.rel (0) target = $region29
    $region28: #{tpu_custom_call.1} parent=1 // pred_region
      _
    $region29: #{tpu_custom_call.1} parent=1 // pred_fallthru
      _
    // Predicated region
    $region30: #{tpu_custom_call.1} parent=1 // pred_check
      _
    $region31: #{tpu_custom_call.1} parent=1 // pred_check_branch
      %48 = sbr.rel (0) target = $region33
    $region32: #{tpu_custom_call.1} parent=1 // pred_region
      _
    $region33: #{tpu_custom_call.1} parent=1 // pred_fallthru
      _
    // Predicated region
    $region34: #{tpu_custom_call.1} parent=1 // pred_check
      _
    $region35: #{tpu_custom_call.1} parent=1 // pred_check_branch
      %50 = sbr.rel (0) target = $region37
    $region36: #{tpu_custom_call.1} parent=1 // pred_region
      _
    $region37: #{tpu_custom_call.1} parent=1 // pred_fallthru
      _
    // Predicated region
    $region38: #{tpu_custom_call.1} parent=1 // pred_check
      _
    $region39: #{tpu_custom_call.1} parent=1 // pred_check_branch
      %52 = sbr.rel (0) target = $region41
    $region40: #{tpu_custom_call.1} parent=1 // pred_region
      _
    $region41: #{tpu_custom_call.1} parent=1 // pred_fallthru
      _
    // Predicated region
    $region42: #{tpu_custom_call.1} parent=1 // pred_check
      _
    $region43: #{tpu_custom_call.1} parent=1 // pred_check_branch
      %54 = sbr.rel (0) target = $region45
    $region44: #{tpu_custom_call.1} parent=1 // pred_region
      _
    $region45: #{tpu_custom_call.1} parent=1 // pred_fallthru
      _
    // Predicated region
    $region46: #{tpu_custom_call.1} parent=1 // pred_check
      _
    $region47: #{tpu_custom_call.1} parent=1 // pred_check_branch
      %56 = sbr.rel (0) target = $region49
    $region48: #{tpu_custom_call.1} parent=1 // pred_region
      _
    $region49: #{tpu_custom_call.1} parent=1 // pred_fallthru
      _
    // Predicated region
    $region50: #{tpu_custom_call.1} parent=1 // pred_check
      _
    $region51: #{tpu_custom_call.1} parent=1 // pred_check_branch
      %58 = sbr.rel (0) target = $region53
    $region52: #{tpu_custom_call.1} parent=1 // pred_region
      _
    $region53: #{tpu_custom_call.1} parent=1 // pred_fallthru
      _
    // Predicated region
    $region54: #{tpu_custom_call.1} parent=1 // pred_check
      _
    $region55: #{tpu_custom_call.1} parent=1 // pred_check_branch
      %60 = sbr.rel (0) target = $region57
    $region56: #{tpu_custom_call.1} parent=1 // pred_region
      _
    $region57: #{tpu_custom_call.1} parent=1 // pred_fallthru
      _
    // Predicated region
    $region58: #{tpu_custom_call.1} parent=1 // pred_check
      _
    $region59: #{tpu_custom_call.1} parent=1 // pred_check_branch
      %62 = sbr.rel (0) target = $region61
    $region60: #{tpu_custom_call.1} parent=1 // pred_region
      _
    $region61: #{tpu_custom_call.1} parent=1 // pred_fallthru
      _
    // Predicated region
    $region62: #{tpu_custom_call.1} parent=1 // pred_check
      _
    $region63: #{tpu_custom_call.1} parent=1 // pred_check_branch
      %64 = sbr.rel (0) target = $region65
    $region64: #{tpu_custom_call.1} parent=1 // pred_region
      _
    $region65: #{tpu_custom_call.1} parent=1 // pred_fallthru
      _
    // Predicated region
    $region66: #{tpu_custom_call.1} parent=1 // pred_check
      _
    $region67: #{tpu_custom_call.1} parent=1 // pred_check_branch
      %66 = sbr.rel (0) target = $region69
    $region68: #{tpu_custom_call.1} parent=1 // pred_region
      _
    $region69: #{tpu_custom_call.1} parent=1 // pred_fallthru
      _
    // Predicated region
    $region70: #{tpu_custom_call.1} parent=1 // pred_check
      _
    $region71: #{tpu_custom_call.1} parent=1 // pred_check_branch
      %68 = sbr.rel (0) target = $region73
    $region72: #{tpu_custom_call.1} parent=1 // pred_region
      _
    $region73: #{tpu_custom_call.1} parent=1 // pred_fallthru
      _
    // Predicated region
    $region74: #{tpu_custom_call.1} parent=1 // pred_check
      _
    $region75: #{tpu_custom_call.1} parent=1 // pred_check_branch
      %70 = sbr.rel (0) target = $region77
    $region76: #{tpu_custom_call.1} parent=1 // pred_region
      _
    $region77: #{tpu_custom_call.1} parent=1 // pred_fallthru
      _
    // Predicated region
    $region78: #{tpu_custom_call.1} parent=1 // pred_check
      _
    $region79: #{tpu_custom_call.1} parent=1 // pred_check_branch
      %72 = sbr.rel (0) target = $region81
    $region80: #{tpu_custom_call.1} parent=1 // pred_region
      _
    $region81: #{tpu_custom_call.1} parent=1 // pred_fallthru
      _
    // Predicated region
    $region82: #{tpu_custom_call.1} parent=1 // pred_check
      _
    $region83: #{tpu_custom_call.1} parent=1 // pred_check_branch
      %74 = sbr.rel (0) target = $region85
    $region84: #{tpu_custom_call.1} parent=1 // pred_region
      _
    $region85: #{tpu_custom_call.1} parent=1 // pred_fallthru
      _
    // Predicated region
    $region86: #{tpu_custom_call.1} parent=1 // pred_check
      _
    $region87: #{tpu_custom_call.1} parent=1 // pred_check_branch
      %76 = sbr.rel (0) target = $region89
    $region88: #{tpu_custom_call.1} parent=1 // pred_region
      _
    $region89: #{tpu_custom_call.1} parent=1 // pred_fallthru
      _
    // Predicated region
    $region90: #{tpu_custom_call.1} parent=1 // pred_check
      _
    $region91: #{tpu_custom_call.1} parent=1 // pred_check_branch
      %78 = sbr.rel (0) target = $region93
    $region92: #{tpu_custom_call.1} parent=1 // pred_region
      _
    $region93: #{tpu_custom_call.1} parent=1 // pred_fallthru
      _
    // Predicated region
    $region94: #{tpu_custom_call.1} parent=1 // pred_check
      _
    $region95: #{tpu_custom_call.1} parent=1 // pred_check_branch
      %80 = sbr.rel (0) target = $region97
    $region96: #{tpu_custom_call.1} parent=1 // pred_region
      _
    $region97: #{tpu_custom_call.1} parent=1 // pred_fallthru
      _
    // Predicated region
    $region98: #{tpu_custom_call.1} parent=1 // pred_check
      _
    $region99: #{tpu_custom_call.1} parent=1 // pred_check_branch
      %82 = sbr.rel (0) target = $region101
    $region100: #{tpu_custom_call.1} parent=1 // pred_region
      _
    $region101: #{tpu_custom_call.1} parent=1 // pred_fallthru
      _
    %v83 = vld [vmem:[%s0] sm:$0xff]
    %v84 = vld [vmem:[%s0 + $0x8] sm:$0xff]
    %v85 = vld [vmem:[%s0 + $0x10] sm:$0xff]
    %v86 = vld [vmem:[%s0 + $0x18] sm:$0xff]
    %v87 = vld [vmem:[%s0 + $0x20] sm:$0xf]
    %v88 = vld [vmem:[%s4] sm:$0x1]
    %90 = vset.pattern.permute.xlu0 0
    %91 = vperm.xlu0 %90, %v83
    %v92 = vpop.permute.xlu0 %91
    %95 = vset.pattern.permute.xlu0 0
    %96 = vperm.xlu0 %95, %v84
    %v97 = vpop.permute.xlu0 %96
    %100 = vset.pattern.permute.xlu0 0
    %101 = vperm.xlu0 %100, %v85
    %v102 = vpop.permute.xlu0 %101
    %105 = vset.pattern.permute.xlu0 0
    %106 = vperm.xlu0 %105, %v86
    %v107 = vpop.permute.xlu0 %106
    %110 = vset.pattern.permute.xlu0 0
    %111 = vperm.xlu0 %110, %v87
    %v112 = vpop.permute.xlu0 %111
    %v115 = vlaneseq
    %v116 = vshrl.u32 %v115, 7
    %v117 = vsub.s32 0, %v116
    %v118 = vrot.slane %v88, %v117
    %v120 = vmul.f32 %v92, %v118
    %v121 = vmul.f32 %v97, %v118
    %v122 = vmul.f32 %v102, %v118
    %v123 = vmul.f32 %v107, %v118
    %v124 = vmul.f32 %v112, %v118
    %v125 = vld [vmem:[%s5] sm:$0x1]
    %v127 = vlaneseq
    %v128 = vshrl.u32 %v127, 7
    %v129 = vsub.s32 0, %v128
    %v130 = vrot.slane %v125, %v129
    %v132 = vadd.f32 %v120, %v130
    %v133 = vadd.f32 %v121, %v130
    %v134 = vadd.f32 %v122, %v130
    %v135 = vadd.f32 %v123, %v130
    %v136 = vadd.f32 %v124, %v130
    %v137 = vld [vmem:[%s1] sm:$0xff]
    %v138 = vld [vmem:[%s1 + $0x8] sm:$0xff]
    %v139 = vld [vmem:[%s1 + $0x10] sm:$0xff]
    %v140 = vld [vmem:[%s1 + $0x18] sm:$0xff]
    %v141 = vld [vmem:[%s1 + $0x20] sm:$0xf]
    %vm142 = vcmp.gt.f32.partialorder %v137, 0.5
    %vm143 = vcmp.gt.f32.partialorder %v138, 0.5
    %vm144 = vcmp.gt.f32.partialorder %v139, 0.5
    %vm145 = vcmp.gt.f32.partialorder %v140, 0.5
    %vm146 = vcmp.gt.f32.partialorder %v141, 0.5
    %v147 = vld [vmem:[%s6] sm:$0x1]
    %v148 = vsel %vm142, 1, 0
    %v149 = vsel %vm143, 1, 0
    %v150 = vsel %vm144, 1, 0
    %v151 = vsel %vm145, 1, 0
    %v152 = vsel %vm146, 1, 0
    %153 = vset.pattern.permute.xlu0 0
    %154 = vperm.xlu0 %153, %v148
    %v155 = vpop.permute.xlu0 %154
    %156 = vset.pattern.permute.xlu0 0
    %157 = vperm.xlu0 %156, %v149
    %v158 = vpop.permute.xlu0 %157
    %159 = vset.pattern.permute.xlu0 0
    %160 = vperm.xlu0 %159, %v150
    %v161 = vpop.permute.xlu0 %160
    %162 = vset.pattern.permute.xlu0 0
    %163 = vperm.xlu0 %162, %v151
    %v164 = vpop.permute.xlu0 %163
    %165 = vset.pattern.permute.xlu0 0
    %166 = vperm.xlu0 %165, %v152
    %v167 = vpop.permute.xlu0 %166
    %vm168 = vcmp.eq.s32.totalorder %v155, 1
    %vm169 = vcmp.eq.s32.totalorder %v158, 1
    %vm170 = vcmp.eq.s32.totalorder %v161, 1
    %vm171 = vcmp.eq.s32.totalorder %v164, 1
    %vm172 = vcmp.eq.s32.totalorder %v167, 1
    %v174 = vlaneseq
    %v175 = vshrl.u32 %v174, 7
    %v176 = vsub.s32 0, %v175
    %v177 = vrot.slane %v147, %v176
    %v179 = vsel %vm168, %v177, %v132
    %v180 = vsel %vm169, %v177, %v133
    %v181 = vsel %vm170, %v177, %v134
    %v182 = vsel %vm171, %v177, %v135
    %v183 = vsel %vm172, %v177, %v136
    %v184 = vld [vmem:[%s2] sm:$0xff]
    %v185 = vld [vmem:[%s2 + $0x8] sm:$0xff]
    %v186 = vld [vmem:[%s2 + $0x10] sm:$0xff]
    %v187 = vld [vmem:[%s2 + $0x18] sm:$0xff]
    %v188 = vld [vmem:[%s2 + $0x20] sm:$0xf]
    %v189 = vadd.f32 %v179, %v184
    %v190 = vadd.f32 %v180, %v185
    %v191 = vadd.f32 %v181, %v186
    %v192 = vadd.f32 %v182, %v187
    %v193 = vadd.f32 %v183, %v188
    %v194 = vld [vmem:[%s3] sm:$0xff]
    %v195 = vld [vmem:[%s3 + $0x8] sm:$0xff]
    %v196 = vld [vmem:[%s3 + $0x10] sm:$0xff]
    %v197 = vld [vmem:[%s3 + $0x18] sm:$0xff]
    %v198 = vld [vmem:[%s3 + $0x20] sm:$0xf]
    %v199 = vld [vmem:[%s7] sm:$0xff]
    %v200 = vld [vmem:[%s7 + $0x8] sm:$0xff]
    %v201 = vld [vmem:[%s7 + $0x10] sm:$0xff]
    %v202 = vld [vmem:[%s7 + $0x18] sm:$0xff]
    %v203 = vld [vmem:[%s8] sm:$0x1]
    %v205 = vlaneseq
    %v206 = vshrl.u32 %v205, 7
    %v207 = vsub.s32 0, %v206
    %v208 = vrot.slane %v203, %v207
    %vm210 = vcmask 261120
    %v212 = vsel %vm210, %v189, 0
    %v215 = vsel %vm210, %v190, 0
    %v218 = vsel %vm210, %v191, 0
    %v221 = vsel %vm210, %v192, 0
    %v224 = vsel %vm210, %v193, 0
    %226 = vmatprep.subr.mxu0 0.0
    %227 = vmatpush1.msra.mxu0 %v199
    %228 = vmatprep.subr.mxu0 0.0
    %229 = vmatpush1.msra.mxu0 %v200
    %230 = vmatprep.subr.mxu0 0.0
    %231 = vmatpush1.msra.mxu0 %v201
    %232 = vmatprep.subr.mxu0 0.0
    %233 = vmatpush1.msra.mxu0 %v202
    %234 = vmatprep.subr.mxu0 0.0
    %235 = vmatpush1.msra.mxu0 0.0
    %236 = vmatprep.subr.mxu0 0.0
    %237 = vmatpush1.msra.mxu0 0.0
    %238 = vmatprep.subr.mxu0 0.0
    %239 = vmatpush1.msra.mxu0 0.0
    %240 = vmatprep.subr.mxu0 0.0
    %241 = vmatpush1.msra.mxu0 0.0
    %242 = vmatprep.subr.mxu0 0.0
    %243 = vmatpush1.msra.mxu0 0.0
    %244 = vmatprep.subr.mxu0 0.0
    %245 = vmatpush1.msra.mxu0 0.0
    %246 = vmatprep.subr.mxu0 0.0
    %247 = vmatpush1.msra.mxu0 0.0
    %248 = vmatprep.subr.mxu0 0.0
    %249 = vmatpush1.msra.mxu0 0.0
    %250 = vmatprep.subr.mxu0 0.0
    %251 = vmatpush1.msra.mxu0 0.0
    %252 = vmatprep.subr.mxu0 0.0
    %253 = vmatpush1.msra.mxu0 0.0
    %254 = vmatprep.subr.mxu0 0.0
    %255 = vmatpush1.msra.mxu0 0.0
    %256 = vmatprep.subr.mxu0 0.0
    %257 = vmatpush1.msra.mxu0 0.0
    %258 = vmatprep.subr.mxu0 0.0
    %259 = vmatpush1.msra.mxu0 0.0
    %260 = vmatprep.subr.mxu0 0.0
    %261 = vmatpush1.msra.mxu0 0.0
    %262 = vmatprep.subr.mxu0 0.0
    %263 = vmatpush1.msra.mxu0 0.0
    %264 = vmatprep.subr.mxu0 0.0
    %265 = vmatpush1.msra.mxu0 0.0
    %266 = vmatprep.subr.mxu0 0.0
    %267 = vmatpush1.msra.mxu0 0.0
    %268 = vmatprep.subr.mxu0 0.0
    %269 = vmatpush1.msra.mxu0 0.0
    %270 = vmatprep.subr.mxu0 0.0
    %271 = vmatpush1.msra.mxu0 0.0
    %272 = vmatprep.subr.mxu0 0.0
    %273 = vmatpush1.msra.mxu0 0.0
    %274 = vmatprep.subr.mxu0 0.0
    %275 = vmatpush1.msra.mxu0 0.0
    %276 = vmatprep.subr.mxu0 0.0
    %277 = vmatpush1.msra.mxu0 0.0
    %278 = vmatprep.subr.mxu0 0.0
    %279 = vmatpush1.msra.mxu0 0.0
    %280 = vmatprep.subr.mxu0 0.0
    %281 = vmatpush1.msra.mxu0 0.0
    %282 = vmatprep.subr.mxu0 0.0
    %283 = vmatpush1.msra.mxu0 0.0
    %284 = vmatprep.subr.mxu0 0.0
    %285 = vmatpush1.msra.mxu0 0.0
    %286 = vmatprep.subr.mxu0 0.0
    %287 = vmatpush1.msra.mxu0 0.0
    %288 = vmatprep.subr.mxu0 0.0
    %289 = vmatpush1.msra.mxu0 0.0
    %290 = vmatprep.mubr.f32.mxu0 0.0
    %291 = vmatmul.mubr.f32.gmra.mrb[0].mxu0 %v212
    %v292 = vpop.f32.mrb[0].mxu0
    %v293 = vadd.f32 %v208, %v292
    %v294 = vpop.f32.mrb[0].mxu0
    %295 = vmatprep.mubr.f32.mxu0 0.0
    %296 = vmatmul.mubr.f32.gmra.mrb[0].mxu0 %v215
    %v297 = vpop.f32.mrb[0].mxu0
    %v298 = vadd.f32 %v208, %v297
    %v299 = vpop.f32.mrb[0].mxu0
    %300 = vmatprep.mubr.f32.mxu0 0.0
    %301 = vmatmul.mubr.f32.gmra.mrb[0].mxu0 %v218
    %v302 = vpop.f32.mrb[0].mxu0
    %v303 = vadd.f32 %v208, %v302
    %v304 = vpop.f32.mrb[0].mxu0
    %305 = vmatprep.mubr.f32.mxu0 0.0
    %306 = vmatmul.mubr.f32.gmra.mrb[0].mxu0 %v221
    %v307 = vpop.f32.mrb[0].mxu0
    %v308 = vadd.f32 %v208, %v307
    %v309 = vpop.f32.mrb[0].mxu0
    %310 = vmatprep.mubr.f32.mxu0 0.0
    %311 = vmatmul.mubr.f32.gmra.mrb[0].mxu0 %v224
    %v312 = vpop.f32.mrb[0].mxu0
    %v313 = vadd.f32 %v208, %v312
    %v314 = vpop.f32.mrb[0].mxu0
    %315 = vdwg.mxu0
    %321 = vrot.lane.b32.xlu0 %v293, 96
    %v322 = vpop.permute.xlu0 %321
    %323 = vrot.lane.b32.xlu0 %v298, 96
    %v324 = vpop.permute.xlu0 %323
    %325 = vrot.lane.b32.xlu0 %v303, 96
    %v326 = vpop.permute.xlu0 %325
    %327 = vrot.lane.b32.xlu0 %v308, 96
    %v328 = vpop.permute.xlu0 %327
    %329 = vrot.lane.b32.xlu0 %v313, 96
    %v330 = vpop.permute.xlu0 %329
    %vm331 = vcmask 64512
    %v332 = vsel %vm331, %v293, 0
    %v334 = vsel %vm331, %v298, 0
    %v336 = vsel %vm331, %v303, 0
    %v338 = vsel %vm331, %v308, 0
    %v340 = vsel %vm331, %v313, 0
    %v342 = vsel %vm331, %v322, 0
    %v344 = vsel %vm331, %v324, 0
    %v346 = vsel %vm331, %v326, 0
    %v348 = vsel %vm331, %v328, 0
    %v350 = vsel %vm331, %v330, 0
    %352 = vmatprep.subr.mxu0 0.0
    %353 = vmatpush1.xpose.msra.mxu0 %v342
    %354 = vmatprep.subr.mxu0 0.0
    %355 = vmatpush1.xpose.msra.mxu0 %v344
    %356 = vmatprep.subr.mxu0 0.0
    %357 = vmatpush1.xpose.msra.mxu0 %v346
    %358 = vmatprep.subr.mxu0 0.0
    %359 = vmatpush1.xpose.msra.mxu0 %v348
    %360 = vmatprep.subr.mxu0 0.0
    %361 = vmatpush1.xpose.msra.mxu0 %v350
    %362 = vmatprep.subr.mxu0 0.0
    %363 = vmatpush1.xpose.msra.mxu0 0.0
    %364 = vmatprep.subr.mxu0 0.0
    %365 = vmatpush1.xpose.msra.mxu0 0.0
    %366 = vmatprep.subr.mxu0 0.0
    %367 = vmatpush1.xpose.msra.mxu0 0.0
    %368 = vmatprep.subr.mxu0 0.0
    %369 = vmatpush1.xpose.msra.mxu0 0.0
    %370 = vmatprep.subr.mxu0 0.0
    %371 = vmatpush1.xpose.msra.mxu0 0.0
    %372 = vmatprep.subr.mxu0 0.0
    %373 = vmatpush1.xpose.msra.mxu0 0.0
    %374 = vmatprep.subr.mxu0 0.0
    %375 = vmatpush1.xpose.msra.mxu0 0.0
    %376 = vmatprep.subr.mxu0 0.0
    %377 = vmatpush1.xpose.msra.mxu0 0.0
    %378 = vmatprep.subr.mxu0 0.0
    %379 = vmatpush1.xpose.msra.mxu0 0.0
    %380 = vmatprep.subr.mxu0 0.0
    %381 = vmatpush1.xpose.msra.mxu0 0.0
    %382 = vmatprep.subr.mxu0 0.0
    %383 = vmatpush1.xpose.msra.mxu0 0.0
    %384 = vmatprep.subr.mxu0 0.0
    %385 = vmatpush1.xpose.msra.mxu0 0.0
    %386 = vmatprep.subr.mxu0 0.0
    %387 = vmatpush1.xpose.msra.mxu0 0.0
    %388 = vmatprep.subr.mxu0 0.0
    %389 = vmatpush1.xpose.msra.mxu0 0.0
    %390 = vmatprep.subr.mxu0 0.0
    %391 = vmatpush1.xpose.msra.mxu0 0.0
    %392 = vmatprep.subr.mxu0 0.0
    %393 = vmatpush1.xpose.msra.mxu0 0.0
    %394 = vmatprep.subr.mxu0 0.0
    %395 = vmatpush1.xpose.msra.mxu0 0.0
    %396 = vmatprep.subr.mxu0 0.0
    %397 = vmatpush1.xpose.msra.mxu0 0.0
    %398 = vmatprep.subr.mxu0 0.0
    %399 = vmatpush1.xpose.msra.mxu0 0.0
    %400 = vmatprep.subr.mxu0 0.0
    %401 = vmatpush1.xpose.msra.mxu0 0.0
    %402 = vmatprep.subr.mxu0 0.0
    %403 = vmatpush1.xpose.msra.mxu0 0.0
    %404 = vmatprep.subr.mxu0 0.0
    %405 = vmatpush1.xpose.msra.mxu0 0.0
    %406 = vmatprep.subr.mxu0 0.0
    %407 = vmatpush1.xpose.msra.mxu0 0.0
    %408 = vmatprep.subr.mxu0 0.0
    %409 = vmatpush1.xpose.msra.mxu0 0.0
    %410 = vmatprep.subr.mxu0 0.0
    %411 = vmatpush1.xpose.msra.mxu0 0.0
    %412 = vmatprep.subr.mxu0 0.0
    %413 = vmatpush1.xpose.msra.mxu0 0.0
    %414 = vmatprep.subr.mxu0 0.0
    %415 = vmatpush1.xpose.msra.mxu0 0.0
    %416 = vmatprep.mubr.f32.mxu0 0.0
    %417 = vmatmul.mubr.f32.gmra.mrb[0].mxu0 %v332
    %v418 = vpop.f32.mrb[0].mxu0
    %v419 = vadd.f32 0.0, %v418
    %v420 = vpop.f32.mrb[0].mxu0
    %421 = vmatprep.mubr.f32.mxu0 0.0
    %422 = vmatmul.mubr.f32.gmra.mrb[0].mxu0 %v334
    %v423 = vpop.f32.mrb[0].mxu0
    %v424 = vadd.f32 0.0, %v423
    %v425 = vpop.f32.mrb[0].mxu0
    %426 = vmatprep.mubr.f32.mxu0 0.0
    %427 = vmatmul.mubr.f32.gmra.mrb[0].mxu0 %v336
    %v428 = vpop.f32.mrb[0].mxu0
    %v429 = vadd.f32 0.0, %v428
    %v430 = vpop.f32.mrb[0].mxu0
    %431 = vmatprep.mubr.f32.mxu0 0.0
    %432 = vmatmul.mubr.f32.gmra.mrb[0].mxu0 %v338
    %v433 = vpop.f32.mrb[0].mxu0
    %v434 = vadd.f32 0.0, %v433
    %v435 = vpop.f32.mrb[0].mxu0
    %436 = vmatprep.mubr.f32.mxu0 0.0
    %437 = vmatmul.mubr.f32.gmra.mrb[0].mxu0 %v340
    %v438 = vpop.f32.mrb[0].mxu0
    %v439 = vadd.f32 0.0, %v438
    %v440 = vpop.f32.mrb[0].mxu0
    %441 = vdwg.mxu0
    %v442 = vmul.f32 %v419, 0.35355338
    %v443 = vmul.f32 %v424, 0.35355338
    %v444 = vmul.f32 %v429, 0.35355338
    %v445 = vmul.f32 %v434, 0.35355338
    %v446 = vmul.f32 %v439, 0.35355338
    %v447 = vadd.f32 %v442, %v194
    %v448 = vadd.f32 %v443, %v195
    %v449 = vadd.f32 %v444, %v196
    %v450 = vadd.f32 %v445, %v197
    %v451 = vadd.f32 %v446, %v198
    %vm452 = vcmask 293888
    %v453 = vsel %vm452, %v447, -inf
    %454 = vmax.xlane.f32.xlu0 %v453
    %v455 = vpop.xlane.xlu0 %454
    %v456 = vsel %vm452, %v448, -inf
    %457 = vmax.xlane.f32.xlu0 %v456
    %v458 = vpop.xlane.xlu0 %457
    %v459 = vsel %vm452, %v449, -inf
    %460 = vmax.xlane.f32.xlu0 %v459
    %v461 = vpop.xlane.xlu0 %460
    %v462 = vsel %vm452, %v450, -inf
    %463 = vmax.xlane.f32.xlu0 %v462
    %v464 = vpop.xlane.xlu0 %463
    %vm465 = vcmask 289792
    %v466 = vsel %vm465, %v451, -inf
    %467 = vmax.xlane.f32.xlu0 %v466
    %v468 = vpop.xlane.xlu0 %467
    %v469 = vsub.f32 %v447, %v455
    %v470 = vsub.f32 %v448, %v458
    %v471 = vsub.f32 %v449, %v461
    %v472 = vsub.f32 %v450, %v464
    %v473 = vsub.f32 %v451, %v468
    %v474 = vmul.f32 %v469, 1.442695
    %v475 = vpow.pop %v474
    %v476 = vmul.f32 %v470, 1.442695
    %v477 = vpow.pop %v476
    %v478 = vmul.f32 %v471, 1.442695
    %v479 = vpow.pop %v478
    %v480 = vmul.f32 %v472, 1.442695
    %v481 = vpow.pop %v480
    %v482 = vmul.f32 %v473, 1.442695
    %v483 = vpow.pop %v482
    %v484 = vsel %vm452, %v475, 0.0
    %485 = vadd.xlane.f32.xlu0 %v484
    %v486 = vpop.xlane.xlu0 %485
    %v487 = vsel %vm452, %v477, 0.0
    %488 = vadd.xlane.f32.xlu0 %v487
    %v489 = vpop.xlane.xlu0 %488
    %v490 = vsel %vm452, %v479, 0.0
    %491 = vadd.xlane.f32.xlu0 %v490
    %v492 = vpop.xlane.xlu0 %491
    %v493 = vsel %vm452, %v481, 0.0
    %494 = vadd.xlane.f32.xlu0 %v493
    %v495 = vpop.xlane.xlu0 %494
    %v496 = vsel %vm465, %v483, 0.0
    %497 = vadd.xlane.f32.xlu0 %v496
    %v498 = vpop.xlane.xlu0 %497
    %v499 = vrcp.pop %v486
    %v500 = vrcp.pop %v489
    %v501 = vrcp.pop %v492
    %v502 = vrcp.pop %v495
    %v503 = vrcp.pop %v498
    %v504 = vmul.f32 %v475, %v499
    %v505 = vmul.f32 %v477, %v500
    %v506 = vmul.f32 %v479, %v501
    %v507 = vmul.f32 %v481, %v502
    %v508 = vmul.f32 %v483, %v503
    %509 = vrot.lane.b32.xlu0 %v293, 64
    %v510 = vpop.permute.xlu0 %509
    %511 = vrot.lane.b32.xlu0 %v298, 64
    %v512 = vpop.permute.xlu0 %511
    %513 = vrot.lane.b32.xlu0 %v303, 64
    %v514 = vpop.permute.xlu0 %513
    %515 = vrot.lane.b32.xlu0 %v308, 64
    %v516 = vpop.permute.xlu0 %515
    %517 = vrot.lane.b32.xlu0 %v313, 64
    %v518 = vpop.permute.xlu0 %517
    %v524 = vsel %vm452, %v504, 0
    %v527 = vsel %vm452, %v505, 0
    %v530 = vsel %vm452, %v506, 0
    %v533 = vsel %vm452, %v507, 0
    %v536 = vsel %vm452, %v508, 0
    %vm538 = vcmask 1043456
    %v539 = vsel %vm538, %v518, 0
    %541 = vmatprep.subr.mxu0 0.0
    %542 = vmatpush1.msra.mxu0 %v510
    %543 = vmatprep.subr.mxu0 0.0
    %544 = vmatpush1.msra.mxu0 %v512
    %545 = vmatprep.subr.mxu0 0.0
    %546 = vmatpush1.msra.mxu0 %v514
    %547 = vmatprep.subr.mxu0 0.0
    %548 = vmatpush1.msra.mxu0 %v516
    %549 = vmatprep.subr.mxu0 0.0
    %550 = vmatpush1.msra.mxu0 %v539
    %551 = vmatprep.subr.mxu0 0.0
    %552 = vmatpush1.msra.mxu0 0.0
    %553 = vmatprep.subr.mxu0 0.0
    %554 = vmatpush1.msra.mxu0 0.0
    %555 = vmatprep.subr.mxu0 0.0
    %556 = vmatpush1.msra.mxu0 0.0
    %557 = vmatprep.subr.mxu0 0.0
    %558 = vmatpush1.msra.mxu0 0.0
    %559 = vmatprep.subr.mxu0 0.0
    %560 = vmatpush1.msra.mxu0 0.0
    %561 = vmatprep.subr.mxu0 0.0
    %562 = vmatpush1.msra.mxu0 0.0
    %563 = vmatprep.subr.mxu0 0.0
    %564 = vmatpush1.msra.mxu0 0.0
    %565 = vmatprep.subr.mxu0 0.0
    %566 = vmatpush1.msra.mxu0 0.0
    %567 = vmatprep.subr.mxu0 0.0
    %568 = vmatpush1.msra.mxu0 0.0
    %569 = vmatprep.subr.mxu0 0.0
    %570 = vmatpush1.msra.mxu0 0.0
    %571 = vmatprep.subr.mxu0 0.0
    %572 = vmatpush1.msra.mxu0 0.0
    %573 = vmatprep.subr.mxu0 0.0
    %574 = vmatpush1.msra.mxu0 0.0
    %575 = vmatprep.subr.mxu0 0.0
    %576 = vmatpush1.msra.mxu0 0.0
    %577 = vmatprep.subr.mxu0 0.0
    %578 = vmatpush1.msra.mxu0 0.0
    %579 = vmatprep.subr.mxu0 0.0
    %580 = vmatpush1.msra.mxu0 0.0
    %581 = vmatprep.subr.mxu0 0.0
    %582 = vmatpush1.msra.mxu0 0.0
    %583 = vmatprep.subr.mxu0 0.0
    %584 = vmatpush1.msra.mxu0 0.0
    %585 = vmatprep.subr.mxu0 0.0
    %586 = vmatpush1.msra.mxu0 0.0
    %587 = vmatprep.subr.mxu0 0.0
    %588 = vmatpush1.msra.mxu0 0.0
    %589 = vmatprep.subr.mxu0 0.0
    %590 = vmatpush1.msra.mxu0 0.0
    %591 = vmatprep.subr.mxu0 0.0
    %592 = vmatpush1.msra.mxu0 0.0
    %593 = vmatprep.subr.mxu0 0.0
    %594 = vmatpush1.msra.mxu0 0.0
    %595 = vmatprep.subr.mxu0 0.0
    %596 = vmatpush1.msra.mxu0 0.0
    %597 = vmatprep.subr.mxu0 0.0
    %598 = vmatpush1.msra.mxu0 0.0
    %599 = vmatprep.subr.mxu0 0.0
    %600 = vmatpush1.msra.mxu0 0.0
    %601 = vmatprep.subr.mxu0 0.0
    %602 = vmatpush1.msra.mxu0 0.0
    %603 = vmatprep.subr.mxu0 0.0
    %604 = vmatpush1.msra.mxu0 0.0
    %605 = vmatprep.mubr.f32.mxu0 0.0
    %606 = vmatmul.mubr.f32.gmra.mrb[0].mxu0 %v524
    %v607 = vpop.f32.mrb[0].mxu0
    %v608 = vadd.f32 0.0, %v607
    %v609 = vpop.f32.mrb[0].mxu0
    %610 = vmatprep.mubr.f32.mxu0 0.0
    %611 = vmatmul.mubr.f32.gmra.mrb[0].mxu0 %v527
    %v612 = vpop.f32.mrb[0].mxu0
    %v613 = vadd.f32 0.0, %v612
    %v614 = vpop.f32.mrb[0].mxu0
    %615 = vmatprep.mubr.f32.mxu0 0.0
    %616 = vmatmul.mubr.f32.gmra.mrb[0].mxu0 %v530
    %v617 = vpop.f32.mrb[0].mxu0
    %v618 = vadd.f32 0.0, %v617
    %v619 = vpop.f32.mrb[0].mxu0
    %620 = vmatprep.mubr.f32.mxu0 0.0
    %621 = vmatmul.mubr.f32.gmra.mrb[0].mxu0 %v533
    %v622 = vpop.f32.mrb[0].mxu0
    %v623 = vadd.f32 0.0, %v622
    %v624 = vpop.f32.mrb[0].mxu0
    %625 = vmatprep.mubr.f32.mxu0 0.0
    %626 = vmatmul.mubr.f32.gmra.mrb[0].mxu0 %v536
    %v627 = vpop.f32.mrb[0].mxu0
    %v628 = vadd.f32 0.0, %v627
    %v629 = vpop.f32.mrb[0].mxu0
    %630 = vdwg.mxu0
    %v631 = vld [vmem:[%s9] sm:$0xff]
    %v632 = vld [vmem:[%s9 + $0x8] sm:$0xff]
    %v633 = vld [vmem:[%s9 + $0x10] sm:$0xff]
    %v634 = vld [vmem:[%s9 + $0x18] sm:$0xff]
    %635 = vrot.lane.b32.xlu0 %v293, 120
    %v636 = vpop.permute.xlu0 %635
    %637 = vrot.lane.b32.xlu0 %v298, 120
    %v638 = vpop.permute.xlu0 %637
    %639 = vrot.lane.b32.xlu0 %v303, 120
    %v640 = vpop.permute.xlu0 %639
    %641 = vrot.lane.b32.xlu0 %v308, 120
    %v642 = vpop.permute.xlu0 %641
    %643 = vrot.lane.b32.xlu0 %v313, 120
    %v644 = vpop.permute.xlu0 %643
    %645 = vrot.lane.b32.xlu0 %v293, 88
    %v646 = vpop.permute.xlu0 %645
    %647 = vrot.lane.b32.xlu0 %v298, 88
    %v648 = vpop.permute.xlu0 %647
    %649 = vrot.lane.b32.xlu0 %v303, 88
    %v650 = vpop.permute.xlu0 %649
    %651 = vrot.lane.b32.xlu0 %v308, 88
    %v652 = vpop.permute.xlu0 %651
    %653 = vrot.lane.b32.xlu0 %v313, 88
    %v654 = vpop.permute.xlu0 %653
    %v655 = vsel %vm331, %v636, 0
    %v657 = vsel %vm331, %v638, 0
    %v659 = vsel %vm331, %v640, 0
    %v661 = vsel %vm331, %v642, 0
    %v663 = vsel %vm331, %v644, 0
    %v665 = vsel %vm331, %v646, 0
    %v667 = vsel %vm331, %v648, 0
    %v669 = vsel %vm331, %v650, 0
    %v671 = vsel %vm331, %v652, 0
    %v673 = vsel %vm331, %v654, 0
    %675 = vmatprep.subr.mxu0 0.0
    %676 = vmatpush1.xpose.msra.mxu0 %v665
    %677 = vmatprep.subr.mxu0 0.0
    %678 = vmatpush1.xpose.msra.mxu0 %v667
    %679 = vmatprep.subr.mxu0 0.0
    %680 = vmatpush1.xpose.msra.mxu0 %v669
    %681 = vmatprep.subr.mxu0 0.0
    %682 = vmatpush1.xpose.msra.mxu0 %v671
    %683 = vmatprep.subr.mxu0 0.0
    %684 = vmatpush1.xpose.msra.mxu0 %v673
    %685 = vmatprep.subr.mxu0 0.0
    %686 = vmatpush1.xpose.msra.mxu0 0.0
    %687 = vmatprep.subr.mxu0 0.0
    %688 = vmatpush1.xpose.msra.mxu0 0.0
    %689 = vmatprep.subr.mxu0 0.0
    %690 = vmatpush1.xpose.msra.mxu0 0.0
    %691 = vmatprep.subr.mxu0 0.0
    %692 = vmatpush1.xpose.msra.mxu0 0.0
    %693 = vmatprep.subr.mxu0 0.0
    %694 = vmatpush1.xpose.msra.mxu0 0.0
    %695 = vmatprep.subr.mxu0 0.0
    %696 = vmatpush1.xpose.msra.mxu0 0.0
    %697 = vmatprep.subr.mxu0 0.0
    %698 = vmatpush1.xpose.msra.mxu0 0.0
    %699 = vmatprep.subr.mxu0 0.0
    %700 = vmatpush1.xpose.msra.mxu0 0.0
    %701 = vmatprep.subr.mxu0 0.0
    %702 = vmatpush1.xpose.msra.mxu0 0.0
    %703 = vmatprep.subr.mxu0 0.0
    %704 = vmatpush1.xpose.msra.mxu0 0.0
    %705 = vmatprep.subr.mxu0 0.0
    %706 = vmatpush1.xpose.msra.mxu0 0.0
    %707 = vmatprep.subr.mxu0 0.0
    %708 = vmatpush1.xpose.msra.mxu0 0.0
    %709 = vmatprep.subr.mxu0 0.0
    %710 = vmatpush1.xpose.msra.mxu0 0.0
    %711 = vmatprep.subr.mxu0 0.0
    %712 = vmatpush1.xpose.msra.mxu0 0.0
    %713 = vmatprep.subr.mxu0 0.0
    %714 = vmatpush1.xpose.msra.mxu0 0.0
    %715 = vmatprep.subr.mxu0 0.0
    %716 = vmatpush1.xpose.msra.mxu0 0.0
    %717 = vmatprep.subr.mxu0 0.0
    %718 = vmatpush1.xpose.msra.mxu0 0.0
    %719 = vmatprep.subr.mxu0 0.0
    %720 = vmatpush1.xpose.msra.mxu0 0.0
    %721 = vmatprep.subr.mxu0 0.0
    %722 = vmatpush1.xpose.msra.mxu0 0.0
    %723 = vmatprep.subr.mxu0 0.0
    %724 = vmatpush1.xpose.msra.mxu0 0.0
    %725 = vmatprep.subr.mxu0 0.0
    %726 = vmatpush1.xpose.msra.mxu0 0.0
    %727 = vmatprep.subr.mxu0 0.0
    %728 = vmatpush1.xpose.msra.mxu0 0.0
    %729 = vmatprep.subr.mxu0 0.0
    %730 = vmatpush1.xpose.msra.mxu0 0.0
    %731 = vmatprep.subr.mxu0 0.0
    %732 = vmatpush1.xpose.msra.mxu0 0.0
    %733 = vmatprep.subr.mxu0 0.0
    %734 = vmatpush1.xpose.msra.mxu0 0.0
    %735 = vmatprep.subr.mxu0 0.0
    %736 = vmatpush1.xpose.msra.mxu0 0.0
    %737 = vmatprep.subr.mxu0 0.0
    %738 = vmatpush1.xpose.msra.mxu0 0.0
    %739 = vmatprep.mubr.f32.mxu0 0.0
    %740 = vmatmul.mubr.f32.gmra.mrb[0].mxu0 %v655
    %v741 = vpop.f32.mrb[0].mxu0
    %v742 = vadd.f32 0.0, %v741
    %v743 = vpop.f32.mrb[0].mxu0
    %744 = vmatprep.mubr.f32.mxu0 0.0
    %745 = vmatmul.mubr.f32.gmra.mrb[0].mxu0 %v657
    %v746 = vpop.f32.mrb[0].mxu0
    %v747 = vadd.f32 0.0, %v746
    %v748 = vpop.f32.mrb[0].mxu0
    %749 = vmatprep.mubr.f32.mxu0 0.0
    %750 = vmatmul.mubr.f32.gmra.mrb[0].mxu0 %v659
    %v751 = vpop.f32.mrb[0].mxu0
    %v752 = vadd.f32 0.0, %v751
    %v753 = vpop.f32.mrb[0].mxu0
    %754 = vmatprep.mubr.f32.mxu0 0.0
    %755 = vmatmul.mubr.f32.gmra.mrb[0].mxu0 %v661
    %v756 = vpop.f32.mrb[0].mxu0
    %v757 = vadd.f32 0.0, %v756
    %v758 = vpop.f32.mrb[0].mxu0
    %759 = vmatprep.mubr.f32.mxu0 0.0
    %760 = vmatmul.mubr.f32.gmra.mrb[0].mxu0 %v663
    %v761 = vpop.f32.mrb[0].mxu0
    %v762 = vadd.f32 0.0, %v761
    %v763 = vpop.f32.mrb[0].mxu0
    %764 = vdwg.mxu0
    %v765 = vmul.f32 %v742, 0.35355338
    %v766 = vmul.f32 %v747, 0.35355338
    %v767 = vmul.f32 %v752, 0.35355338
    %v768 = vmul.f32 %v757, 0.35355338
    %v769 = vmul.f32 %v762, 0.35355338
    %v770 = vadd.f32 %v765, %v194
    %v771 = vadd.f32 %v766, %v195
    %v772 = vadd.f32 %v767, %v196
    %v773 = vadd.f32 %v768, %v197
    %v774 = vadd.f32 %v769, %v198
    %v775 = vsel %vm452, %v770, -inf
    %776 = vmax.xlane.f32.xlu0 %v775
    %v777 = vpop.xlane.xlu0 %776
    %v778 = vsel %vm452, %v771, -inf
    %779 = vmax.xlane.f32.xlu0 %v778
    %v780 = vpop.xlane.xlu0 %779
    %v781 = vsel %vm452, %v772, -inf
    %782 = vmax.xlane.f32.xlu0 %v781
    %v783 = vpop.xlane.xlu0 %782
    %v784 = vsel %vm452, %v773, -inf
    %785 = vmax.xlane.f32.xlu0 %v784
    %v786 = vpop.xlane.xlu0 %785
    %v787 = vsel %vm465, %v774, -inf
    %788 = vmax.xlane.f32.xlu0 %v787
    %v789 = vpop.xlane.xlu0 %788
    %v790 = vsub.f32 %v770, %v777
    %v791 = vsub.f32 %v771, %v780
    %v792 = vsub.f32 %v772, %v783
    %v793 = vsub.f32 %v773, %v786
    %v794 = vsub.f32 %v774, %v789
    %v795 = vmul.f32 %v790, 1.442695
    %v796 = vpow.pop %v795
    %v797 = vmul.f32 %v791, 1.442695
    %v798 = vpow.pop %v797
    %v799 = vmul.f32 %v792, 1.442695
    %v800 = vpow.pop %v799
    %v801 = vmul.f32 %v793, 1.442695
    %v802 = vpow.pop %v801
    %v803 = vmul.f32 %v794, 1.442695
    %v804 = vpow.pop %v803
    %v805 = vsel %vm452, %v796, 0.0
    %806 = vadd.xlane.f32.xlu0 %v805
    %v807 = vpop.xlane.xlu0 %806
    %v808 = vsel %vm452, %v798, 0.0
    %809 = vadd.xlane.f32.xlu0 %v808
    %v810 = vpop.xlane.xlu0 %809
    %v811 = vsel %vm452, %v800, 0.0
    %812 = vadd.xlane.f32.xlu0 %v811
    %v813 = vpop.xlane.xlu0 %812
    %v814 = vsel %vm452, %v802, 0.0
    %815 = vadd.xlane.f32.xlu0 %v814
    %v816 = vpop.xlane.xlu0 %815
    %v817 = vsel %vm465, %v804, 0.0
    %818 = vadd.xlane.f32.xlu0 %v817
    %v819 = vpop.xlane.xlu0 %818
    %v820 = vrcp.pop %v807
    %v821 = vrcp.pop %v810
    %v822 = vrcp.pop %v813
    %v823 = vrcp.pop %v816
    %v824 = vrcp.pop %v819
    %v825 = vmul.f32 %v796, %v820
    %v826 = vmul.f32 %v798, %v821
    %v827 = vmul.f32 %v800, %v822
    %v828 = vmul.f32 %v802, %v823
    %v829 = vmul.f32 %v804, %v824
    %830 = vrot.lane.b32.xlu0 %v293, 56
    %v831 = vpop.permute.xlu0 %830
    %832 = vrot.lane.b32.xlu0 %v298, 56
    %v833 = vpop.permute.xlu0 %832
    %834 = vrot.lane.b32.xlu0 %v303, 56
    %v835 = vpop.permute.xlu0 %834
    %836 = vrot.lane.b32.xlu0 %v308, 56
    %v837 = vpop.permute.xlu0 %836
    %838 = vrot.lane.b32.xlu0 %v313, 56
    %v839 = vpop.permute.xlu0 %838
    %v845 = vsel %vm452, %v825, 0
    %v848 = vsel %vm452, %v826, 0
    %v851 = vsel %vm452, %v827, 0
    %v854 = vsel %vm452, %v828, 0
    %v857 = vsel %vm452, %v829, 0
    %v859 = vsel %vm538, %v839, 0
    %861 = vmatprep.subr.mxu0 0.0
    %862 = vmatpush1.msra.mxu0 %v831
    %863 = vmatprep.subr.mxu0 0.0
    %864 = vmatpush1.msra.mxu0 %v833
    %865 = vmatprep.subr.mxu0 0.0
    %866 = vmatpush1.msra.mxu0 %v835
    %867 = vmatprep.subr.mxu0 0.0
    %868 = vmatpush1.msra.mxu0 %v837
    %869 = vmatprep.subr.mxu0 0.0
    %870 = vmatpush1.msra.mxu0 %v859
    %871 = vmatprep.subr.mxu0 0.0
    %872 = vmatpush1.msra.mxu0 0.0
    %873 = vmatprep.subr.mxu0 0.0
    %874 = vmatpush1.msra.mxu0 0.0
    %875 = vmatprep.subr.mxu0 0.0
    %876 = vmatpush1.msra.mxu0 0.0
    %877 = vmatprep.subr.mxu0 0.0
    %878 = vmatpush1.msra.mxu0 0.0
    %879 = vmatprep.subr.mxu0 0.0
    %880 = vmatpush1.msra.mxu0 0.0
    %881 = vmatprep.subr.mxu0 0.0
    %882 = vmatpush1.msra.mxu0 0.0
    %883 = vmatprep.subr.mxu0 0.0
    %884 = vmatpush1.msra.mxu0 0.0
    %885 = vmatprep.subr.mxu0 0.0
    %886 = vmatpush1.msra.mxu0 0.0
    %887 = vmatprep.subr.mxu0 0.0
    %888 = vmatpush1.msra.mxu0 0.0
    %889 = vmatprep.subr.mxu0 0.0
    %890 = vmatpush1.msra.mxu0 0.0
    %891 = vmatprep.subr.mxu0 0.0
    %892 = vmatpush1.msra.mxu0 0.0
    %893 = vmatprep.subr.mxu0 0.0
    %894 = vmatpush1.msra.mxu0 0.0
    %895 = vmatprep.subr.mxu0 0.0
    %896 = vmatpush1.msra.mxu0 0.0
    %897 = vmatprep.subr.mxu0 0.0
    %898 = vmatpush1.msra.mxu0 0.0
    %899 = vmatprep.subr.mxu0 0.0
    %900 = vmatpush1.msra.mxu0 0.0
    %901 = vmatprep.subr.mxu0 0.0
    %902 = vmatpush1.msra.mxu0 0.0
    %903 = vmatprep.subr.mxu0 0.0
    %904 = vmatpush1.msra.mxu0 0.0
    %905 = vmatprep.subr.mxu0 0.0
    %906 = vmatpush1.msra.mxu0 0.0
    %907 = vmatprep.subr.mxu0 0.0
    %908 = vmatpush1.msra.mxu0 0.0
    %909 = vmatprep.subr.mxu0 0.0
    %910 = vmatpush1.msra.mxu0 0.0
    %911 = vmatprep.subr.mxu0 0.0
    %912 = vmatpush1.msra.mxu0 0.0
    %913 = vmatprep.subr.mxu0 0.0
    %914 = vmatpush1.msra.mxu0 0.0
    %915 = vmatprep.subr.mxu0 0.0
    %916 = vmatpush1.msra.mxu0 0.0
    %917 = vmatprep.subr.mxu0 0.0
    %918 = vmatpush1.msra.mxu0 0.0
    %919 = vmatprep.subr.mxu0 0.0
    %920 = vmatpush1.msra.mxu0 0.0
    %921 = vmatprep.subr.mxu0 0.0
    %922 = vmatpush1.msra.mxu0 0.0
    %923 = vmatprep.subr.mxu0 0.0
    %924 = vmatpush1.msra.mxu0 0.0
    %925 = vmatprep.mubr.f32.mxu0 0.0
    %926 = vmatmul.mubr.f32.gmra.mrb[0].mxu0 %v845
    %v927 = vpop.f32.mrb[0].mxu0
    %v928 = vadd.f32 0.0, %v927
    %v929 = vpop.f32.mrb[0].mxu0
    %930 = vmatprep.mubr.f32.mxu0 0.0
    %931 = vmatmul.mubr.f32.gmra.mrb[0].mxu0 %v848
    %v932 = vpop.f32.mrb[0].mxu0
    %v933 = vadd.f32 0.0, %v932
    %v934 = vpop.f32.mrb[0].mxu0
    %935 = vmatprep.mubr.f32.mxu0 0.0
    %936 = vmatmul.mubr.f32.gmra.mrb[0].mxu0 %v851
    %v937 = vpop.f32.mrb[0].mxu0
    %v938 = vadd.f32 0.0, %v937
    %v939 = vpop.f32.mrb[0].mxu0
    %940 = vmatprep.mubr.f32.mxu0 0.0
    %941 = vmatmul.mubr.f32.gmra.mrb[0].mxu0 %v854
    %v942 = vpop.f32.mrb[0].mxu0
    %v943 = vadd.f32 0.0, %v942
    %v944 = vpop.f32.mrb[0].mxu0
    %945 = vmatprep.mubr.f32.mxu0 0.0
    %946 = vmatmul.mubr.f32.gmra.mrb[0].mxu0 %v857
    %v947 = vpop.f32.mrb[0].mxu0
    %v948 = vadd.f32 0.0, %v947
    %v949 = vpop.f32.mrb[0].mxu0
    %950 = vdwg.mxu0
    %v952 = vsel %vm331, %v928, 0
    %v955 = vsel %vm331, %v933, 0
    %v958 = vsel %vm331, %v938, 0
    %v961 = vsel %vm331, %v943, 0
    %v964 = vsel %vm331, %v948, 0
    %966 = vmatprep.subr.mxu0 0.0
    %967 = vmatpush1.msra.mxu0 %v632
    %968 = vmatprep.subr.mxu0 0.0
    %969 = vmatpush1.msra.mxu0 0.0
    %970 = vmatprep.subr.mxu0 0.0
    %971 = vmatpush1.msra.mxu0 0.0
    %972 = vmatprep.subr.mxu0 0.0
    %973 = vmatpush1.msra.mxu0 0.0
    %974 = vmatprep.subr.mxu0 0.0
    %975 = vmatpush1.msra.mxu0 0.0
    %976 = vmatprep.subr.mxu0 0.0
    %977 = vmatpush1.msra.mxu0 0.0
    %978 = vmatprep.subr.mxu0 0.0
    %979 = vmatpush1.msra.mxu0 0.0
    %980 = vmatprep.subr.mxu0 0.0
    %981 = vmatpush1.msra.mxu0 0.0
    %982 = vmatprep.subr.mxu0 0.0
    %983 = vmatpush1.msra.mxu0 0.0
    %984 = vmatprep.subr.mxu0 0.0
    %985 = vmatpush1.msra.mxu0 0.0
    %986 = vmatprep.subr.mxu0 0.0
    %987 = vmatpush1.msra.mxu0 0.0
    %988 = vmatprep.subr.mxu0 0.0
    %989 = vmatpush1.msra.mxu0 0.0
    %990 = vmatprep.subr.mxu0 0.0
    %991 = vmatpush1.msra.mxu0 0.0
    %992 = vmatprep.subr.mxu0 0.0
    %993 = vmatpush1.msra.mxu0 0.0
    %994 = vmatprep.subr.mxu0 0.0
    %995 = vmatpush1.msra.mxu0 0.0
    %996 = vmatprep.subr.mxu0 0.0
    %997 = vmatpush1.msra.mxu0 0.0
    %998 = vmatprep.subr.mxu0 0.0
    %999 = vmatpush1.msra.mxu0 0.0
    %1000 = vmatprep.subr.mxu0 0.0
    %1001 = vmatpush1.msra.mxu0 0.0
    %1002 = vmatprep.subr.mxu0 0.0
    %1003 = vmatpush1.msra.mxu0 0.0
    %1004 = vmatprep.subr.mxu0 0.0
    %1005 = vmatpush1.msra.mxu0 0.0
    %1006 = vmatprep.subr.mxu0 0.0
    %1007 = vmatpush1.msra.mxu0 0.0
    %1008 = vmatprep.subr.mxu0 0.0
    %1009 = vmatpush1.msra.mxu0 0.0
    %1010 = vmatprep.subr.mxu0 0.0
    %1011 = vmatpush1.msra.mxu0 0.0
    %1012 = vmatprep.subr.mxu0 0.0
    %1013 = vmatpush1.msra.mxu0 0.0
    %1014 = vmatprep.subr.mxu0 0.0
    %1015 = vmatpush1.msra.mxu0 0.0
    %1016 = vmatprep.subr.mxu0 0.0
    %1017 = vmatpush1.msra.mxu0 0.0
    %1018 = vmatprep.subr.mxu0 0.0
    %1019 = vmatpush1.msra.mxu0 0.0
    %1020 = vmatprep.subr.mxu0 0.0
    %1021 = vmatpush1.msra.mxu0 0.0
    %1022 = vmatprep.subr.mxu0 0.0
    %1023 = vmatpush1.msra.mxu0 0.0
    %1024 = vmatprep.subr.mxu0 0.0
    %1025 = vmatpush1.msra.mxu0 0.0
    %1026 = vmatprep.subr.mxu0 0.0
    %1027 = vmatpush1.msra.mxu0 0.0
    %1028 = vmatprep.subr.mxu0 0.0
    %1029 = vmatpush1.msra.mxu0 0.0
    %1030 = vmatprep.mubr.f32.mxu0 0.0
    %1031 = vmatmul.mubr.f32.gmra.mrb[0].mxu0 %v952
    %v1032 = vpop.f32.mrb[0].mxu0
    %v1033 = vadd.f32 0.0, %v1032
    %v1034 = vpop.f32.mrb[0].mxu0
    %1035 = vmatprep.mubr.f32.mxu0 0.0
    %1036 = vmatmul.mubr.f32.gmra.mrb[0].mxu0 %v955
    %v1037 = vpop.f32.mrb[0].mxu0
    %v1038 = vadd.f32 0.0, %v1037
    %v1039 = vpop.f32.mrb[0].mxu0
    %1040 = vmatprep.mubr.f32.mxu0 0.0
    %1041 = vmatmul.mubr.f32.gmra.mrb[0].mxu0 %v958
    %v1042 = vpop.f32.mrb[0].mxu0
    %v1043 = vadd.f32 0.0, %v1042
    %v1044 = vpop.f32.mrb[0].mxu0
    %1045 = vmatprep.mubr.f32.mxu0 0.0
    %1046 = vmatmul.mubr.f32.gmra.mrb[0].mxu0 %v961
    %v1047 = vpop.f32.mrb[0].mxu0
    %v1048 = vadd.f32 0.0, %v1047
    %v1049 = vpop.f32.mrb[0].mxu0
    %1050 = vmatprep.mubr.f32.mxu0 0.0
    %1051 = vmatmul.mubr.f32.gmra.mrb[0].mxu0 %v964
    %v1052 = vpop.f32.mrb[0].mxu0
    %v1053 = vadd.f32 0.0, %v1052
    %v1054 = vpop.f32.mrb[0].mxu0
    %1055 = vdwg.mxu0
    %v1057 = vsel %vm331, %v608, 0
    %v1060 = vsel %vm331, %v613, 0
    %v1063 = vsel %vm331, %v618, 0
    %v1066 = vsel %vm331, %v623, 0
    %v1069 = vsel %vm331, %v628, 0
    %1071 = vmatprep.subr.mxu0 0.0
    %1072 = vmatpush1.msra.mxu0 %v631
    %1073 = vmatprep.subr.mxu0 0.0
    %1074 = vmatpush1.msra.mxu0 0.0
    %1075 = vmatprep.subr.mxu0 0.0
    %1076 = vmatpush1.msra.mxu0 0.0
    %1077 = vmatprep.subr.mxu0 0.0
    %1078 = vmatpush1.msra.mxu0 0.0
    %1079 = vmatprep.subr.mxu0 0.0
    %1080 = vmatpush1.msra.mxu0 0.0
    %1081 = vmatprep.subr.mxu0 0.0
    %1082 = vmatpush1.msra.mxu0 0.0
    %1083 = vmatprep.subr.mxu0 0.0
    %1084 = vmatpush1.msra.mxu0 0.0
    %1085 = vmatprep.subr.mxu0 0.0
    %1086 = vmatpush1.msra.mxu0 0.0
    %1087 = vmatprep.subr.mxu0 0.0
    %1088 = vmatpush1.msra.mxu0 0.0
    %1089 = vmatprep.subr.mxu0 0.0
    %1090 = vmatpush1.msra.mxu0 0.0
    %1091 = vmatprep.subr.mxu0 0.0
    %1092 = vmatpush1.msra.mxu0 0.0
    %1093 = vmatprep.subr.mxu0 0.0
    %1094 = vmatpush1.msra.mxu0 0.0
    %1095 = vmatprep.subr.mxu0 0.0
    %1096 = vmatpush1.msra.mxu0 0.0
    %1097 = vmatprep.subr.mxu0 0.0
    %1098 = vmatpush1.msra.mxu0 0.0
    %1099 = vmatprep.subr.mxu0 0.0
    %1100 = vmatpush1.msra.mxu0 0.0
    %1101 = vmatprep.subr.mxu0 0.0
    %1102 = vmatpush1.msra.mxu0 0.0
    %1103 = vmatprep.subr.mxu0 0.0
    %1104 = vmatpush1.msra.mxu0 0.0
    %1105 = vmatprep.subr.mxu0 0.0
    %1106 = vmatpush1.msra.mxu0 0.0
    %1107 = vmatprep.subr.mxu0 0.0
    %1108 = vmatpush1.msra.mxu0 0.0
    %1109 = vmatprep.subr.mxu0 0.0
    %1110 = vmatpush1.msra.mxu0 0.0
    %1111 = vmatprep.subr.mxu0 0.0
    %1112 = vmatpush1.msra.mxu0 0.0
    %1113 = vmatprep.subr.mxu0 0.0
    %1114 = vmatpush1.msra.mxu0 0.0
    %1115 = vmatprep.subr.mxu0 0.0
    %1116 = vmatpush1.msra.mxu0 0.0
    %1117 = vmatprep.subr.mxu0 0.0
    %1118 = vmatpush1.msra.mxu0 0.0
    %1119 = vmatprep.subr.mxu0 0.0
    %1120 = vmatpush1.msra.mxu0 0.0
    %1121 = vmatprep.subr.mxu0 0.0
    %1122 = vmatpush1.msra.mxu0 0.0
    %1123 = vmatprep.subr.mxu0 0.0
    %1124 = vmatpush1.msra.mxu0 0.0
    %1125 = vmatprep.subr.mxu0 0.0
    %1126 = vmatpush1.msra.mxu0 0.0
    %1127 = vmatprep.subr.mxu0 0.0
    %1128 = vmatpush1.msra.mxu0 0.0
    %1129 = vmatprep.subr.mxu0 0.0
    %1130 = vmatpush1.msra.mxu0 0.0
    %1131 = vmatprep.subr.mxu0 0.0
    %1132 = vmatpush1.msra.mxu0 0.0
    %1133 = vmatprep.subr.mxu0 0.0
    %1134 = vmatpush1.msra.mxu0 0.0
    %1135 = vmatprep.mubr.f32.mxu0 0.0
    %1136 = vmatmul.mubr.f32.gmra.mrb[0].mxu0 %v1057
    %v1137 = vpop.f32.mrb[0].mxu0
    %v1138 = vadd.f32 %v1033, %v1137
    %v1139 = vpop.f32.mrb[0].mxu0
    %1140 = vmatprep.mubr.f32.mxu0 0.0
    %1141 = vmatmul.mubr.f32.gmra.mrb[0].mxu0 %v1060
    %v1142 = vpop.f32.mrb[0].mxu0
    %v1143 = vadd.f32 %v1038, %v1142
    %v1144 = vpop.f32.mrb[0].mxu0
    %1145 = vmatprep.mubr.f32.mxu0 0.0
    %1146 = vmatmul.mubr.f32.gmra.mrb[0].mxu0 %v1063
    %v1147 = vpop.f32.mrb[0].mxu0
    %v1148 = vadd.f32 %v1043, %v1147
    %v1149 = vpop.f32.mrb[0].mxu0
    %1150 = vmatprep.mubr.f32.mxu0 0.0
    %1151 = vmatmul.mubr.f32.gmra.mrb[0].mxu0 %v1066
    %v1152 = vpop.f32.mrb[0].mxu0
    %v1153 = vadd.f32 %v1048, %v1152
    %v1154 = vpop.f32.mrb[0].mxu0
    %1155 = vmatprep.mubr.f32.mxu0 0.0
    %1156 = vmatmul.mubr.f32.gmra.mrb[0].mxu0 %v1069
    %v1157 = vpop.f32.mrb[0].mxu0
    %v1158 = vadd.f32 %v1053, %v1157
    %v1159 = vpop.f32.mrb[0].mxu0
    %1160 = vdwg.mxu0
    %1161 = vrot.lane.b32.xlu0 %v293, 112
    %v1162 = vpop.permute.xlu0 %1161
    %1163 = vrot.lane.b32.xlu0 %v298, 112
    %v1164 = vpop.permute.xlu0 %1163
    %1165 = vrot.lane.b32.xlu0 %v303, 112
    %v1166 = vpop.permute.xlu0 %1165
    %1167 = vrot.lane.b32.xlu0 %v308, 112
    %v1168 = vpop.permute.xlu0 %1167
    %1169 = vrot.lane.b32.xlu0 %v313, 112
    %v1170 = vpop.permute.xlu0 %1169
    %1171 = vrot.lane.b32.xlu0 %v293, 80
    %v1172 = vpop.permute.xlu0 %1171
    %1173 = vrot.lane.b32.xlu0 %v298, 80
    %v1174 = vpop.permute.xlu0 %1173
    %1175 = vrot.lane.b32.xlu0 %v303, 80
    %v1176 = vpop.permute.xlu0 %1175
    %1177 = vrot.lane.b32.xlu0 %v308, 80
    %v1178 = vpop.permute.xlu0 %1177
    %1179 = vrot.lane.b32.xlu0 %v313, 80
    %v1180 = vpop.permute.xlu0 %1179
    %v1181 = vsel %vm331, %v1162, 0
    %v1183 = vsel %vm331, %v1164, 0
    %v1185 = vsel %vm331, %v1166, 0
    %v1187 = vsel %vm331, %v1168, 0
    %v1189 = vsel %vm331, %v1170, 0
    %v1191 = vsel %vm331, %v1172, 0
    %v1193 = vsel %vm331, %v1174, 0
    %v1195 = vsel %vm331, %v1176, 0
    %v1197 = vsel %vm331, %v1178, 0
    %v1199 = vsel %vm331, %v1180, 0
    %1201 = vmatprep.subr.mxu0 0.0
    %1202 = vmatpush1.xpose.msra.mxu0 %v1191
    %1203 = vmatprep.subr.mxu0 0.0
    %1204 = vmatpush1.xpose.msra.mxu0 %v1193
    %1205 = vmatprep.subr.mxu0 0.0
    %1206 = vmatpush1.xpose.msra.mxu0 %v1195
    %1207 = vmatprep.subr.mxu0 0.0
    %1208 = vmatpush1.xpose.msra.mxu0 %v1197
    %1209 = vmatprep.subr.mxu0 0.0
    %1210 = vmatpush1.xpose.msra.mxu0 %v1199
    %1211 = vmatprep.subr.mxu0 0.0
    %1212 = vmatpush1.xpose.msra.mxu0 0.0
    %1213 = vmatprep.subr.mxu0 0.0
    %1214 = vmatpush1.xpose.msra.mxu0 0.0
    %1215 = vmatprep.subr.mxu0 0.0
    %1216 = vmatpush1.xpose.msra.mxu0 0.0
    %1217 = vmatprep.subr.mxu0 0.0
    %1218 = vmatpush1.xpose.msra.mxu0 0.0
    %1219 = vmatprep.subr.mxu0 0.0
    %1220 = vmatpush1.xpose.msra.mxu0 0.0
    %1221 = vmatprep.subr.mxu0 0.0
    %1222 = vmatpush1.xpose.msra.mxu0 0.0
    %1223 = vmatprep.subr.mxu0 0.0
    %1224 = vmatpush1.xpose.msra.mxu0 0.0
    %1225 = vmatprep.subr.mxu0 0.0
    %1226 = vmatpush1.xpose.msra.mxu0 0.0
    %1227 = vmatprep.subr.mxu0 0.0
    %1228 = vmatpush1.xpose.msra.mxu0 0.0
    %1229 = vmatprep.subr.mxu0 0.0
    %1230 = vmatpush1.xpose.msra.mxu0 0.0
    %1231 = vmatprep.subr.mxu0 0.0
    %1232 = vmatpush1.xpose.msra.mxu0 0.0
    %1233 = vmatprep.subr.mxu0 0.0
    %1234 = vmatpush1.xpose.msra.mxu0 0.0
    %1235 = vmatprep.subr.mxu0 0.0
    %1236 = vmatpush1.xpose.msra.mxu0 0.0
    %1237 = vmatprep.subr.mxu0 0.0
    %1238 = vmatpush1.xpose.msra.mxu0 0.0
    %1239 = vmatprep.subr.mxu0 0.0
    %1240 = vmatpush1.xpose.msra.mxu0 0.0
    %1241 = vmatprep.subr.mxu0 0.0
    %1242 = vmatpush1.xpose.msra.mxu0 0.0
    %1243 = vmatprep.subr.mxu0 0.0
    %1244 = vmatpush1.xpose.msra.mxu0 0.0
    %1245 = vmatprep.subr.mxu0 0.0
    %1246 = vmatpush1.xpose.msra.mxu0 0.0
    %1247 = vmatprep.subr.mxu0 0.0
    %1248 = vmatpush1.xpose.msra.mxu0 0.0
    %1249 = vmatprep.subr.mxu0 0.0
    %1250 = vmatpush1.xpose.msra.mxu0 0.0
    %1251 = vmatprep.subr.mxu0 0.0
    %1252 = vmatpush1.xpose.msra.mxu0 0.0
    %1253 = vmatprep.subr.mxu0 0.0
    %1254 = vmatpush1.xpose.msra.mxu0 0.0
    %1255 = vmatprep.subr.mxu0 0.0
    %1256 = vmatpush1.xpose.msra.mxu0 0.0
    %1257 = vmatprep.subr.mxu0 0.0
    %1258 = vmatpush1.xpose.msra.mxu0 0.0
    %1259 = vmatprep.subr.mxu0 0.0
    %1260 = vmatpush1.xpose.msra.mxu0 0.0
    %1261 = vmatprep.subr.mxu0 0.0
    %1262 = vmatpush1.xpose.msra.mxu0 0.0
    %1263 = vmatprep.subr.mxu0 0.0
    %1264 = vmatpush1.xpose.msra.mxu0 0.0
    %1265 = vmatprep.mubr.f32.mxu0 0.0
    %1266 = vmatmul.mubr.f32.gmra.mrb[0].mxu0 %v1181
    %v1267 = vpop.f32.mrb[0].mxu0
    %v1268 = vadd.f32 0.0, %v1267
    %v1269 = vpop.f32.mrb[0].mxu0
    %1270 = vmatprep.mubr.f32.mxu0 0.0
    %1271 = vmatmul.mubr.f32.gmra.mrb[0].mxu0 %v1183
    %v1272 = vpop.f32.mrb[0].mxu0
    %v1273 = vadd.f32 0.0, %v1272
    %v1274 = vpop.f32.mrb[0].mxu0
    %1275 = vmatprep.mubr.f32.mxu0 0.0
    %1276 = vmatmul.mubr.f32.gmra.mrb[0].mxu0 %v1185
    %v1277 = vpop.f32.mrb[0].mxu0
    %v1278 = vadd.f32 0.0, %v1277
    %v1279 = vpop.f32.mrb[0].mxu0
    %1280 = vmatprep.mubr.f32.mxu0 0.0
    %1281 = vmatmul.mubr.f32.gmra.mrb[0].mxu0 %v1187
    %v1282 = vpop.f32.mrb[0].mxu0
    %v1283 = vadd.f32 0.0, %v1282
    %v1284 = vpop.f32.mrb[0].mxu0
    %1285 = vmatprep.mubr.f32.mxu0 0.0
    %1286 = vmatmul.mubr.f32.gmra.mrb[0].mxu0 %v1189
    %v1287 = vpop.f32.mrb[0].mxu0
    %v1288 = vadd.f32 0.0, %v1287
    %v1289 = vpop.f32.mrb[0].mxu0
    %1290 = vdwg.mxu0
    %v1291 = vmul.f32 %v1268, 0.35355338
    %v1292 = vmul.f32 %v1273, 0.35355338
    %v1293 = vmul.f32 %v1278, 0.35355338
    %v1294 = vmul.f32 %v1283, 0.35355338
    %v1295 = vmul.f32 %v1288, 0.35355338
    %v1296 = vadd.f32 %v1291, %v194
    %v1297 = vadd.f32 %v1292, %v195
    %v1298 = vadd.f32 %v1293, %v196
    %v1299 = vadd.f32 %v1294, %v197
    %v1300 = vadd.f32 %v1295, %v198
    %v1301 = vsel %vm452, %v1296, -inf
    %1302 = vmax.xlane.f32.xlu0 %v1301
    %v1303 = vpop.xlane.xlu0 %1302
    %v1304 = vsel %vm452, %v1297, -inf
    %1305 = vmax.xlane.f32.xlu0 %v1304
    %v1306 = vpop.xlane.xlu0 %1305
    %v1307 = vsel %vm452, %v1298, -inf
    %1308 = vmax.xlane.f32.xlu0 %v1307
    %v1309 = vpop.xlane.xlu0 %1308
    %v1310 = vsel %vm452, %v1299, -inf
    %1311 = vmax.xlane.f32.xlu0 %v1310
    %v1312 = vpop.xlane.xlu0 %1311
    %v1313 = vsel %vm465, %v1300, -inf
    %1314 = vmax.xlane.f32.xlu0 %v1313
    %v1315 = vpop.xlane.xlu0 %1314
    %v1316 = vsub.f32 %v1296, %v1303
    %v1317 = vsub.f32 %v1297, %v1306
    %v1318 = vsub.f32 %v1298, %v1309
    %v1319 = vsub.f32 %v1299, %v1312
    %v1320 = vsub.f32 %v1300, %v1315
    %v1321 = vmul.f32 %v1316, 1.442695
    %v1322 = vpow.pop %v1321
    %v1323 = vmul.f32 %v1317, 1.442695
    %v1324 = vpow.pop %v1323
    %v1325 = vmul.f32 %v1318, 1.442695
    %v1326 = vpow.pop %v1325
    %v1327 = vmul.f32 %v1319, 1.442695
    %v1328 = vpow.pop %v1327
    %v1329 = vmul.f32 %v1320, 1.442695
    %v1330 = vpow.pop %v1329
    %v1331 = vsel %vm452, %v1322, 0.0
    %1332 = vadd.xlane.f32.xlu0 %v1331
    %v1333 = vpop.xlane.xlu0 %1332
    %v1334 = vsel %vm452, %v1324, 0.0
    %1335 = vadd.xlane.f32.xlu0 %v1334
    %v1336 = vpop.xlane.xlu0 %1335
    %v1337 = vsel %vm452, %v1326, 0.0
    %1338 = vadd.xlane.f32.xlu0 %v1337
    %v1339 = vpop.xlane.xlu0 %1338
    %v1340 = vsel %vm452, %v1328, 0.0
    %1341 = vadd.xlane.f32.xlu0 %v1340
    %v1342 = vpop.xlane.xlu0 %1341
    %v1343 = vsel %vm465, %v1330, 0.0
    %1344 = vadd.xlane.f32.xlu0 %v1343
    %v1345 = vpop.xlane.xlu0 %1344
    %v1346 = vrcp.pop %v1333
    %v1347 = vrcp.pop %v1336
    %v1348 = vrcp.pop %v1339
    %v1349 = vrcp.pop %v1342
    %v1350 = vrcp.pop %v1345
    %v1351 = vmul.f32 %v1322, %v1346
    %v1352 = vmul.f32 %v1324, %v1347
    %v1353 = vmul.f32 %v1326, %v1348
    %v1354 = vmul.f32 %v1328, %v1349
    %v1355 = vmul.f32 %v1330, %v1350
    %1356 = vrot.lane.b32.xlu0 %v293, 48
    %v1357 = vpop.permute.xlu0 %1356
    %1358 = vrot.lane.b32.xlu0 %v298, 48
    %v1359 = vpop.permute.xlu0 %1358
    %1360 = vrot.lane.b32.xlu0 %v303, 48
    %v1361 = vpop.permute.xlu0 %1360
    %1362 = vrot.lane.b32.xlu0 %v308, 48
    %v1363 = vpop.permute.xlu0 %1362
    %1364 = vrot.lane.b32.xlu0 %v313, 48
    %v1365 = vpop.permute.xlu0 %1364
    %v1371 = vsel %vm452, %v1351, 0
    %v1374 = vsel %vm452, %v1352, 0
    %v1377 = vsel %vm452, %v1353, 0
    %v1380 = vsel %vm452, %v1354, 0
    %v1383 = vsel %vm452, %v1355, 0
    %v1385 = vsel %vm538, %v1365, 0
    %1387 = vmatprep.subr.mxu0 0.0
    %1388 = vmatpush1.msra.mxu0 %v1357
    %1389 = vmatprep.subr.mxu0 0.0
    %1390 = vmatpush1.msra.mxu0 %v1359
    %1391 = vmatprep.subr.mxu0 0.0
    %1392 = vmatpush1.msra.mxu0 %v1361
    %1393 = vmatprep.subr.mxu0 0.0
    %1394 = vmatpush1.msra.mxu0 %v1363
    %1395 = vmatprep.subr.mxu0 0.0
    %1396 = vmatpush1.msra.mxu0 %v1385
    %1397 = vmatprep.subr.mxu0 0.0
    %1398 = vmatpush1.msra.mxu0 0.0
    %1399 = vmatprep.subr.mxu0 0.0
    %1400 = vmatpush1.msra.mxu0 0.0
    %1401 = vmatprep.subr.mxu0 0.0
    %1402 = vmatpush1.msra.mxu0 0.0
    %1403 = vmatprep.subr.mxu0 0.0
    %1404 = vmatpush1.msra.mxu0 0.0
    %1405 = vmatprep.subr.mxu0 0.0
    %1406 = vmatpush1.msra.mxu0 0.0
    %1407 = vmatprep.subr.mxu0 0.0
    %1408 = vmatpush1.msra.mxu0 0.0
    %1409 = vmatprep.subr.mxu0 0.0
    %1410 = vmatpush1.msra.mxu0 0.0
    %1411 = vmatprep.subr.mxu0 0.0
    %1412 = vmatpush1.msra.mxu0 0.0
    %1413 = vmatprep.subr.mxu0 0.0
    %1414 = vmatpush1.msra.mxu0 0.0
    %1415 = vmatprep.subr.mxu0 0.0
    %1416 = vmatpush1.msra.mxu0 0.0
    %1417 = vmatprep.subr.mxu0 0.0
    %1418 = vmatpush1.msra.mxu0 0.0
    %1419 = vmatprep.subr.mxu0 0.0
    %1420 = vmatpush1.msra.mxu0 0.0
    %1421 = vmatprep.subr.mxu0 0.0
    %1422 = vmatpush1.msra.mxu0 0.0
    %1423 = vmatprep.subr.mxu0 0.0
    %1424 = vmatpush1.msra.mxu0 0.0
    %1425 = vmatprep.subr.mxu0 0.0
    %1426 = vmatpush1.msra.mxu0 0.0
    %1427 = vmatprep.subr.mxu0 0.0
    %1428 = vmatpush1.msra.mxu0 0.0
    %1429 = vmatprep.subr.mxu0 0.0
    %1430 = vmatpush1.msra.mxu0 0.0
    %1431 = vmatprep.subr.mxu0 0.0
    %1432 = vmatpush1.msra.mxu0 0.0
    %1433 = vmatprep.subr.mxu0 0.0
    %1434 = vmatpush1.msra.mxu0 0.0
    %1435 = vmatprep.subr.mxu0 0.0
    %1436 = vmatpush1.msra.mxu0 0.0
    %1437 = vmatprep.subr.mxu0 0.0
    %1438 = vmatpush1.msra.mxu0 0.0
    %1439 = vmatprep.subr.mxu0 0.0
    %1440 = vmatpush1.msra.mxu0 0.0
    %1441 = vmatprep.subr.mxu0 0.0
    %1442 = vmatpush1.msra.mxu0 0.0
    %1443 = vmatprep.subr.mxu0 0.0
    %1444 = vmatpush1.msra.mxu0 0.0
    %1445 = vmatprep.subr.mxu0 0.0
    %1446 = vmatpush1.msra.mxu0 0.0
    %1447 = vmatprep.subr.mxu0 0.0
    %1448 = vmatpush1.msra.mxu0 0.0
    %1449 = vmatprep.subr.mxu0 0.0
    %1450 = vmatpush1.msra.mxu0 0.0
    %1451 = vmatprep.mubr.f32.mxu0 0.0
    %1452 = vmatmul.mubr.f32.gmra.mrb[0].mxu0 %v1371
    %v1453 = vpop.f32.mrb[0].mxu0
    %v1454 = vadd.f32 0.0, %v1453
    %v1455 = vpop.f32.mrb[0].mxu0
    %1456 = vmatprep.mubr.f32.mxu0 0.0
    %1457 = vmatmul.mubr.f32.gmra.mrb[0].mxu0 %v1374
    %v1458 = vpop.f32.mrb[0].mxu0
    %v1459 = vadd.f32 0.0, %v1458
    %v1460 = vpop.f32.mrb[0].mxu0
    %1461 = vmatprep.mubr.f32.mxu0 0.0
    %1462 = vmatmul.mubr.f32.gmra.mrb[0].mxu0 %v1377
    %v1463 = vpop.f32.mrb[0].mxu0
    %v1464 = vadd.f32 0.0, %v1463
    %v1465 = vpop.f32.mrb[0].mxu0
    %1466 = vmatprep.mubr.f32.mxu0 0.0
    %1467 = vmatmul.mubr.f32.gmra.mrb[0].mxu0 %v1380
    %v1468 = vpop.f32.mrb[0].mxu0
    %v1469 = vadd.f32 0.0, %v1468
    %v1470 = vpop.f32.mrb[0].mxu0
    %1471 = vmatprep.mubr.f32.mxu0 0.0
    %1472 = vmatmul.mubr.f32.gmra.mrb[0].mxu0 %v1383
    %v1473 = vpop.f32.mrb[0].mxu0
    %v1474 = vadd.f32 0.0, %v1473
    %v1475 = vpop.f32.mrb[0].mxu0
    %1476 = vdwg.mxu0
    %v1478 = vsel %vm331, %v1454, 0
    %v1481 = vsel %vm331, %v1459, 0
    %v1484 = vsel %vm331, %v1464, 0
    %v1487 = vsel %vm331, %v1469, 0
    %v1490 = vsel %vm331, %v1474, 0
    %1492 = vmatprep.subr.mxu0 0.0
    %1493 = vmatpush1.msra.mxu0 %v633
    %1494 = vmatprep.subr.mxu0 0.0
    %1495 = vmatpush1.msra.mxu0 0.0
    %1496 = vmatprep.subr.mxu0 0.0
    %1497 = vmatpush1.msra.mxu0 0.0
    %1498 = vmatprep.subr.mxu0 0.0
    %1499 = vmatpush1.msra.mxu0 0.0
    %1500 = vmatprep.subr.mxu0 0.0
    %1501 = vmatpush1.msra.mxu0 0.0
    %1502 = vmatprep.subr.mxu0 0.0
    %1503 = vmatpush1.msra.mxu0 0.0
    %1504 = vmatprep.subr.mxu0 0.0
    %1505 = vmatpush1.msra.mxu0 0.0
    %1506 = vmatprep.subr.mxu0 0.0
    %1507 = vmatpush1.msra.mxu0 0.0
    %1508 = vmatprep.subr.mxu0 0.0
    %1509 = vmatpush1.msra.mxu0 0.0
    %1510 = vmatprep.subr.mxu0 0.0
    %1511 = vmatpush1.msra.mxu0 0.0
    %1512 = vmatprep.subr.mxu0 0.0
    %1513 = vmatpush1.msra.mxu0 0.0
    %1514 = vmatprep.subr.mxu0 0.0
    %1515 = vmatpush1.msra.mxu0 0.0
    %1516 = vmatprep.subr.mxu0 0.0
    %1517 = vmatpush1.msra.mxu0 0.0
    %1518 = vmatprep.subr.mxu0 0.0
    %1519 = vmatpush1.msra.mxu0 0.0
    %1520 = vmatprep.subr.mxu0 0.0
    %1521 = vmatpush1.msra.mxu0 0.0
    %1522 = vmatprep.subr.mxu0 0.0
    %1523 = vmatpush1.msra.mxu0 0.0
    %1524 = vmatprep.subr.mxu0 0.0
    %1525 = vmatpush1.msra.mxu0 0.0
    %1526 = vmatprep.subr.mxu0 0.0
    %1527 = vmatpush1.msra.mxu0 0.0
    %1528 = vmatprep.subr.mxu0 0.0
    %1529 = vmatpush1.msra.mxu0 0.0
    %1530 = vmatprep.subr.mxu0 0.0
    %1531 = vmatpush1.msra.mxu0 0.0
    %1532 = vmatprep.subr.mxu0 0.0
    %1533 = vmatpush1.msra.mxu0 0.0
    %1534 = vmatprep.subr.mxu0 0.0
    %1535 = vmatpush1.msra.mxu0 0.0
    %1536 = vmatprep.subr.mxu0 0.0
    %1537 = vmatpush1.msra.mxu0 0.0
    %1538 = vmatprep.subr.mxu0 0.0
    %1539 = vmatpush1.msra.mxu0 0.0
    %1540 = vmatprep.subr.mxu0 0.0
    %1541 = vmatpush1.msra.mxu0 0.0
    %1542 = vmatprep.subr.mxu0 0.0
    %1543 = vmatpush1.msra.mxu0 0.0
    %1544 = vmatprep.subr.mxu0 0.0
    %1545 = vmatpush1.msra.mxu0 0.0
    %1546 = vmatprep.subr.mxu0 0.0
    %1547 = vmatpush1.msra.mxu0 0.0
    %1548 = vmatprep.subr.mxu0 0.0
    %1549 = vmatpush1.msra.mxu0 0.0
    %1550 = vmatprep.subr.mxu0 0.0
    %1551 = vmatpush1.msra.mxu0 0.0
    %1552 = vmatprep.subr.mxu0 0.0
    %1553 = vmatpush1.msra.mxu0 0.0
    %1554 = vmatprep.subr.mxu0 0.0
    %1555 = vmatpush1.msra.mxu0 0.0
    %1556 = vmatprep.mubr.f32.mxu0 0.0
    %1557 = vmatmul.mubr.f32.gmra.mrb[0].mxu0 %v1478
    %v1558 = vpop.f32.mrb[0].mxu0
    %v1559 = vadd.f32 0.0, %v1558
    %v1560 = vpop.f32.mrb[0].mxu0
    %1561 = vmatprep.mubr.f32.mxu0 0.0
    %1562 = vmatmul.mubr.f32.gmra.mrb[0].mxu0 %v1481
    %v1563 = vpop.f32.mrb[0].mxu0
    %v1564 = vadd.f32 0.0, %v1563
    %v1565 = vpop.f32.mrb[0].mxu0
    %1566 = vmatprep.mubr.f32.mxu0 0.0
    %1567 = vmatmul.mubr.f32.gmra.mrb[0].mxu0 %v1484
    %v1568 = vpop.f32.mrb[0].mxu0
    %v1569 = vadd.f32 0.0, %v1568
    %v1570 = vpop.f32.mrb[0].mxu0
    %1571 = vmatprep.mubr.f32.mxu0 0.0
    %1572 = vmatmul.mubr.f32.gmra.mrb[0].mxu0 %v1487
    %v1573 = vpop.f32.mrb[0].mxu0
    %v1574 = vadd.f32 0.0, %v1573
    %v1575 = vpop.f32.mrb[0].mxu0
    %1576 = vmatprep.mubr.f32.mxu0 0.0
    %1577 = vmatmul.mubr.f32.gmra.mrb[0].mxu0 %v1490
    %v1578 = vpop.f32.mrb[0].mxu0
    %v1579 = vadd.f32 0.0, %v1578
    %v1580 = vpop.f32.mrb[0].mxu0
    %1581 = vdwg.mxu0
    %v1582 = vadd.f32 %v1138, %v1559
    %v1583 = vadd.f32 %v1143, %v1564
    %v1584 = vadd.f32 %v1148, %v1569
    %v1585 = vadd.f32 %v1153, %v1574
    %v1586 = vadd.f32 %v1158, %v1579
    %1587 = vrot.lane.b32.xlu0 %v293, 104
    %v1588 = vpop.permute.xlu0 %1587
    %1589 = vrot.lane.b32.xlu0 %v298, 104
    %v1590 = vpop.permute.xlu0 %1589
    %1591 = vrot.lane.b32.xlu0 %v303, 104
    %v1592 = vpop.permute.xlu0 %1591
    %1593 = vrot.lane.b32.xlu0 %v308, 104
    %v1594 = vpop.permute.xlu0 %1593
    %1595 = vrot.lane.b32.xlu0 %v313, 104
    %v1596 = vpop.permute.xlu0 %1595
    %1597 = vrot.lane.b32.xlu0 %v293, 72
    %v1598 = vpop.permute.xlu0 %1597
    %1599 = vrot.lane.b32.xlu0 %v298, 72
    %v1600 = vpop.permute.xlu0 %1599
    %1601 = vrot.lane.b32.xlu0 %v303, 72
    %v1602 = vpop.permute.xlu0 %1601
    %1603 = vrot.lane.b32.xlu0 %v308, 72
    %v1604 = vpop.permute.xlu0 %1603
    %1605 = vrot.lane.b32.xlu0 %v313, 72
    %v1606 = vpop.permute.xlu0 %1605
    %v1607 = vsel %vm331, %v1588, 0
    %v1609 = vsel %vm331, %v1590, 0
    %v1611 = vsel %vm331, %v1592, 0
    %v1613 = vsel %vm331, %v1594, 0
    %v1615 = vsel %vm331, %v1596, 0
    %v1617 = vsel %vm331, %v1598, 0
    %v1619 = vsel %vm331, %v1600, 0
    %v1621 = vsel %vm331, %v1602, 0
    %v1623 = vsel %vm331, %v1604, 0
    %v1625 = vsel %vm331, %v1606, 0
    %1627 = vmatprep.subr.mxu0 0.0
    %1628 = vmatpush1.xpose.msra.mxu0 %v1617
    %1629 = vmatprep.subr.mxu0 0.0
    %1630 = vmatpush1.xpose.msra.mxu0 %v1619
    %1631 = vmatprep.subr.mxu0 0.0
    %1632 = vmatpush1.xpose.msra.mxu0 %v1621
    %1633 = vmatprep.subr.mxu0 0.0
    %1634 = vmatpush1.xpose.msra.mxu0 %v1623
    %1635 = vmatprep.subr.mxu0 0.0
    %1636 = vmatpush1.xpose.msra.mxu0 %v1625
    %1637 = vmatprep.subr.mxu0 0.0
    %1638 = vmatpush1.xpose.msra.mxu0 0.0
    %1639 = vmatprep.subr.mxu0 0.0
    %1640 = vmatpush1.xpose.msra.mxu0 0.0
    %1641 = vmatprep.subr.mxu0 0.0
    %1642 = vmatpush1.xpose.msra.mxu0 0.0
    %1643 = vmatprep.subr.mxu0 0.0
    %1644 = vmatpush1.xpose.msra.mxu0 0.0
    %1645 = vmatprep.subr.mxu0 0.0
    %1646 = vmatpush1.xpose.msra.mxu0 0.0
    %1647 = vmatprep.subr.mxu0 0.0
    %1648 = vmatpush1.xpose.msra.mxu0 0.0
    %1649 = vmatprep.subr.mxu0 0.0
    %1650 = vmatpush1.xpose.msra.mxu0 0.0
    %1651 = vmatprep.subr.mxu0 0.0
    %1652 = vmatpush1.xpose.msra.mxu0 0.0
    %1653 = vmatprep.subr.mxu0 0.0
    %1654 = vmatpush1.xpose.msra.mxu0 0.0
    %1655 = vmatprep.subr.mxu0 0.0
    %1656 = vmatpush1.xpose.msra.mxu0 0.0
    %1657 = vmatprep.subr.mxu0 0.0
    %1658 = vmatpush1.xpose.msra.mxu0 0.0
    %1659 = vmatprep.subr.mxu0 0.0
    %1660 = vmatpush1.xpose.msra.mxu0 0.0
    %1661 = vmatprep.subr.mxu0 0.0
    %1662 = vmatpush1.xpose.msra.mxu0 0.0
    %1663 = vmatprep.subr.mxu0 0.0
    %1664 = vmatpush1.xpose.msra.mxu0 0.0
    %1665 = vmatprep.subr.mxu0 0.0
    %1666 = vmatpush1.xpose.msra.mxu0 0.0
    %1667 = vmatprep.subr.mxu0 0.0
    %1668 = vmatpush1.xpose.msra.mxu0 0.0
    %1669 = vmatprep.subr.mxu0 0.0
    %1670 = vmatpush1.xpose.msra.mxu0 0.0
    %1671 = vmatprep.subr.mxu0 0.0
    %1672 = vmatpush1.xpose.msra.mxu0 0.0
    %1673 = vmatprep.subr.mxu0 0.0
    %1674 = vmatpush1.xpose.msra.mxu0 0.0
    %1675 = vmatprep.subr.mxu0 0.0
    %1676 = vmatpush1.xpose.msra.mxu0 0.0
    %1677 = vmatprep.subr.mxu0 0.0
    %1678 = vmatpush1.xpose.msra.mxu0 0.0
    %1679 = vmatprep.subr.mxu0 0.0
    %1680 = vmatpush1.xpose.msra.mxu0 0.0
    %1681 = vmatprep.subr.mxu0 0.0
    %1682 = vmatpush1.xpose.msra.mxu0 0.0
    %1683 = vmatprep.subr.mxu0 0.0
    %1684 = vmatpush1.xpose.msra.mxu0 0.0
    %1685 = vmatprep.subr.mxu0 0.0
    %1686 = vmatpush1.xpose.msra.mxu0 0.0
    %1687 = vmatprep.subr.mxu0 0.0
    %1688 = vmatpush1.xpose.msra.mxu0 0.0
    %1689 = vmatprep.subr.mxu0 0.0
    %1690 = vmatpush1.xpose.msra.mxu0 0.0
    %1691 = vmatprep.mubr.f32.mxu0 0.0
    %1692 = vmatmul.mubr.f32.gmra.mrb[0].mxu0 %v1607
    %v1693 = vpop.f32.mrb[0].mxu0
    %v1694 = vadd.f32 0.0, %v1693
    %v1695 = vpop.f32.mrb[0].mxu0
    %1696 = vmatprep.mubr.f32.mxu0 0.0
    %1697 = vmatmul.mubr.f32.gmra.mrb[0].mxu0 %v1609
    %v1698 = vpop.f32.mrb[0].mxu0
    %v1699 = vadd.f32 0.0, %v1698
    %v1700 = vpop.f32.mrb[0].mxu0
    %1701 = vmatprep.mubr.f32.mxu0 0.0
    %1702 = vmatmul.mubr.f32.gmra.mrb[0].mxu0 %v1611
    %v1703 = vpop.f32.mrb[0].mxu0
    %v1704 = vadd.f32 0.0, %v1703
    %v1705 = vpop.f32.mrb[0].mxu0
    %1706 = vmatprep.mubr.f32.mxu0 0.0
    %1707 = vmatmul.mubr.f32.gmra.mrb[0].mxu0 %v1613
    %v1708 = vpop.f32.mrb[0].mxu0
    %v1709 = vadd.f32 0.0, %v1708
    %v1710 = vpop.f32.mrb[0].mxu0
    %1711 = vmatprep.mubr.f32.mxu0 0.0
    %1712 = vmatmul.mubr.f32.gmra.mrb[0].mxu0 %v1615
    %v1713 = vpop.f32.mrb[0].mxu0
    %v1714 = vadd.f32 0.0, %v1713
    %v1715 = vpop.f32.mrb[0].mxu0
    %1716 = vdwg.mxu0
    %v1717 = vmul.f32 %v1694, 0.35355338
    %v1718 = vmul.f32 %v1699, 0.35355338
    %v1719 = vmul.f32 %v1704, 0.35355338
    %v1720 = vmul.f32 %v1709, 0.35355338
    %v1721 = vmul.f32 %v1714, 0.35355338
    %v1722 = vadd.f32 %v1717, %v194
    %v1723 = vadd.f32 %v1718, %v195
    %v1724 = vadd.f32 %v1719, %v196
    %v1725 = vadd.f32 %v1720, %v197
    %v1726 = vadd.f32 %v1721, %v198
    %v1727 = vsel %vm452, %v1722, -inf
    %1728 = vmax.xlane.f32.xlu0 %v1727
    %v1729 = vpop.xlane.xlu0 %1728
    %v1730 = vsel %vm452, %v1723, -inf
    %1731 = vmax.xlane.f32.xlu0 %v1730
    %v1732 = vpop.xlane.xlu0 %1731
    %v1733 = vsel %vm452, %v1724, -inf
    %1734 = vmax.xlane.f32.xlu0 %v1733
    %v1735 = vpop.xlane.xlu0 %1734
    %v1736 = vsel %vm452, %v1725, -inf
    %1737 = vmax.xlane.f32.xlu0 %v1736
    %v1738 = vpop.xlane.xlu0 %1737
    %v1739 = vsel %vm465, %v1726, -inf
    %1740 = vmax.xlane.f32.xlu0 %v1739
    %v1741 = vpop.xlane.xlu0 %1740
    %v1742 = vsub.f32 %v1722, %v1729
    %v1743 = vsub.f32 %v1723, %v1732
    %v1744 = vsub.f32 %v1724, %v1735
    %v1745 = vsub.f32 %v1725, %v1738
    %v1746 = vsub.f32 %v1726, %v1741
    %v1747 = vmul.f32 %v1742, 1.442695
    %v1748 = vpow.pop %v1747
    %v1749 = vmul.f32 %v1743, 1.442695
    %v1750 = vpow.pop %v1749
    %v1751 = vmul.f32 %v1744, 1.442695
    %v1752 = vpow.pop %v1751
    %v1753 = vmul.f32 %v1745, 1.442695
    %v1754 = vpow.pop %v1753
    %v1755 = vmul.f32 %v1746, 1.442695
    %v1756 = vpow.pop %v1755
    %v1757 = vsel %vm452, %v1748, 0.0
    %1758 = vadd.xlane.f32.xlu0 %v1757
    %v1759 = vpop.xlane.xlu0 %1758
    %v1760 = vsel %vm452, %v1750, 0.0
    %1761 = vadd.xlane.f32.xlu0 %v1760
    %v1762 = vpop.xlane.xlu0 %1761
    %v1763 = vsel %vm452, %v1752, 0.0
    %1764 = vadd.xlane.f32.xlu0 %v1763
    %v1765 = vpop.xlane.xlu0 %1764
    %v1766 = vsel %vm452, %v1754, 0.0
    %1767 = vadd.xlane.f32.xlu0 %v1766
    %v1768 = vpop.xlane.xlu0 %1767
    %v1769 = vsel %vm465, %v1756, 0.0
    %1770 = vadd.xlane.f32.xlu0 %v1769
    %v1771 = vpop.xlane.xlu0 %1770
    %v1772 = vrcp.pop %v1759
    %v1773 = vrcp.pop %v1762
    %v1774 = vrcp.pop %v1765
    %v1775 = vrcp.pop %v1768
    %v1776 = vrcp.pop %v1771
    %v1777 = vmul.f32 %v1748, %v1772
    %v1778 = vmul.f32 %v1750, %v1773
    %v1779 = vmul.f32 %v1752, %v1774
    %v1780 = vmul.f32 %v1754, %v1775
    %v1781 = vmul.f32 %v1756, %v1776
    %1782 = vrot.lane.b32.xlu0 %v293, 40
    %v1783 = vpop.permute.xlu0 %1782
    %1784 = vrot.lane.b32.xlu0 %v298, 40
    %v1785 = vpop.permute.xlu0 %1784
    %1786 = vrot.lane.b32.xlu0 %v303, 40
    %v1787 = vpop.permute.xlu0 %1786
    %1788 = vrot.lane.b32.xlu0 %v308, 40
    %v1789 = vpop.permute.xlu0 %1788
    %1790 = vrot.lane.b32.xlu0 %v313, 40
    %v1791 = vpop.permute.xlu0 %1790
    %v1797 = vsel %vm452, %v1777, 0
    %v1800 = vsel %vm452, %v1778, 0
    %v1803 = vsel %vm452, %v1779, 0
    %v1806 = vsel %vm452, %v1780, 0
    %v1809 = vsel %vm452, %v1781, 0
    %v1811 = vsel %vm538, %v1791, 0
    %1813 = vmatprep.subr.mxu0 0.0
    %1814 = vmatpush1.msra.mxu0 %v1783
    %1815 = vmatprep.subr.mxu0 0.0
    %1816 = vmatpush1.msra.mxu0 %v1785
    %1817 = vmatprep.subr.mxu0 0.0
    %1818 = vmatpush1.msra.mxu0 %v1787
    %1819 = vmatprep.subr.mxu0 0.0
    %1820 = vmatpush1.msra.mxu0 %v1789
    %1821 = vmatprep.subr.mxu0 0.0
    %1822 = vmatpush1.msra.mxu0 %v1811
    %1823 = vmatprep.subr.mxu0 0.0
    %1824 = vmatpush1.msra.mxu0 0.0
    %1825 = vmatprep.subr.mxu0 0.0
    %1826 = vmatpush1.msra.mxu0 0.0
    %1827 = vmatprep.subr.mxu0 0.0
    %1828 = vmatpush1.msra.mxu0 0.0
    %1829 = vmatprep.subr.mxu0 0.0
    %1830 = vmatpush1.msra.mxu0 0.0
    %1831 = vmatprep.subr.mxu0 0.0
    %1832 = vmatpush1.msra.mxu0 0.0
    %1833 = vmatprep.subr.mxu0 0.0
    %1834 = vmatpush1.msra.mxu0 0.0
    %1835 = vmatprep.subr.mxu0 0.0
    %1836 = vmatpush1.msra.mxu0 0.0
    %1837 = vmatprep.subr.mxu0 0.0
    %1838 = vmatpush1.msra.mxu0 0.0
    %1839 = vmatprep.subr.mxu0 0.0
    %1840 = vmatpush1.msra.mxu0 0.0
    %1841 = vmatprep.subr.mxu0 0.0
    %1842 = vmatpush1.msra.mxu0 0.0
    %1843 = vmatprep.subr.mxu0 0.0
    %1844 = vmatpush1.msra.mxu0 0.0
    %1845 = vmatprep.subr.mxu0 0.0
    %1846 = vmatpush1.msra.mxu0 0.0
    %1847 = vmatprep.subr.mxu0 0.0
    %1848 = vmatpush1.msra.mxu0 0.0
    %1849 = vmatprep.subr.mxu0 0.0
    %1850 = vmatpush1.msra.mxu0 0.0
    %1851 = vmatprep.subr.mxu0 0.0
    %1852 = vmatpush1.msra.mxu0 0.0
    %1853 = vmatprep.subr.mxu0 0.0
    %1854 = vmatpush1.msra.mxu0 0.0
    %1855 = vmatprep.subr.mxu0 0.0
    %1856 = vmatpush1.msra.mxu0 0.0
    %1857 = vmatprep.subr.mxu0 0.0
    %1858 = vmatpush1.msra.mxu0 0.0
    %1859 = vmatprep.subr.mxu0 0.0
    %1860 = vmatpush1.msra.mxu0 0.0
    %1861 = vmatprep.subr.mxu0 0.0
    %1862 = vmatpush1.msra.mxu0 0.0
    %1863 = vmatprep.subr.mxu0 0.0
    %1864 = vmatpush1.msra.mxu0 0.0
    %1865 = vmatprep.subr.mxu0 0.0
    %1866 = vmatpush1.msra.mxu0 0.0
    %1867 = vmatprep.subr.mxu0 0.0
    %1868 = vmatpush1.msra.mxu0 0.0
    %1869 = vmatprep.subr.mxu0 0.0
    %1870 = vmatpush1.msra.mxu0 0.0
    %1871 = vmatprep.subr.mxu0 0.0
    %1872 = vmatpush1.msra.mxu0 0.0
    %1873 = vmatprep.subr.mxu0 0.0
    %1874 = vmatpush1.msra.mxu0 0.0
    %1875 = vmatprep.subr.mxu0 0.0
    %1876 = vmatpush1.msra.mxu0 0.0
    %1877 = vmatprep.mubr.f32.mxu0 0.0
    %1878 = vmatmul.mubr.f32.gmra.mrb[0].mxu0 %v1797
    %v1879 = vpop.f32.mrb[0].mxu0
    %v1880 = vadd.f32 0.0, %v1879
    %v1881 = vpop.f32.mrb[0].mxu0
    %1882 = vmatprep.mubr.f32.mxu0 0.0
    %1883 = vmatmul.mubr.f32.gmra.mrb[0].mxu0 %v1800
    %v1884 = vpop.f32.mrb[0].mxu0
    %v1885 = vadd.f32 0.0, %v1884
    %v1886 = vpop.f32.mrb[0].mxu0
    %1887 = vmatprep.mubr.f32.mxu0 0.0
    %1888 = vmatmul.mubr.f32.gmra.mrb[0].mxu0 %v1803
    %v1889 = vpop.f32.mrb[0].mxu0
    %v1890 = vadd.f32 0.0, %v1889
    %v1891 = vpop.f32.mrb[0].mxu0
    %1892 = vmatprep.mubr.f32.mxu0 0.0
    %1893 = vmatmul.mubr.f32.gmra.mrb[0].mxu0 %v1806
    %v1894 = vpop.f32.mrb[0].mxu0
    %v1895 = vadd.f32 0.0, %v1894
    %v1896 = vpop.f32.mrb[0].mxu0
    %1897 = vmatprep.mubr.f32.mxu0 0.0
    %1898 = vmatmul.mubr.f32.gmra.mrb[0].mxu0 %v1809
    %v1899 = vpop.f32.mrb[0].mxu0
    %v1900 = vadd.f32 0.0, %v1899
    %v1901 = vpop.f32.mrb[0].mxu0
    %1902 = vdwg.mxu0
    %v1904 = vsel %vm331, %v1880, 0
    %v1907 = vsel %vm331, %v1885, 0
    %v1910 = vsel %vm331, %v1890, 0
    %v1913 = vsel %vm331, %v1895, 0
    %v1916 = vsel %vm331, %v1900, 0
    %1918 = vmatprep.subr.mxu0 0.0
    %1919 = vmatpush1.msra.mxu0 %v634
    %1920 = vmatprep.subr.mxu0 0.0
    %1921 = vmatpush1.msra.mxu0 0.0
    %1922 = vmatprep.subr.mxu0 0.0
    %1923 = vmatpush1.msra.mxu0 0.0
    %1924 = vmatprep.subr.mxu0 0.0
    %1925 = vmatpush1.msra.mxu0 0.0
    %1926 = vmatprep.subr.mxu0 0.0
    %1927 = vmatpush1.msra.mxu0 0.0
    %1928 = vmatprep.subr.mxu0 0.0
    %1929 = vmatpush1.msra.mxu0 0.0
    %1930 = vmatprep.subr.mxu0 0.0
    %1931 = vmatpush1.msra.mxu0 0.0
    %1932 = vmatprep.subr.mxu0 0.0
    %1933 = vmatpush1.msra.mxu0 0.0
    %1934 = vmatprep.subr.mxu0 0.0
    %1935 = vmatpush1.msra.mxu0 0.0
    %1936 = vmatprep.subr.mxu0 0.0
    %1937 = vmatpush1.msra.mxu0 0.0
    %1938 = vmatprep.subr.mxu0 0.0
    %1939 = vmatpush1.msra.mxu0 0.0
    %1940 = vmatprep.subr.mxu0 0.0
    %1941 = vmatpush1.msra.mxu0 0.0
    %1942 = vmatprep.subr.mxu0 0.0
    %1943 = vmatpush1.msra.mxu0 0.0
    %1944 = vmatprep.subr.mxu0 0.0
    %1945 = vmatpush1.msra.mxu0 0.0
    %1946 = vmatprep.subr.mxu0 0.0
    %1947 = vmatpush1.msra.mxu0 0.0
    %1948 = vmatprep.subr.mxu0 0.0
    %1949 = vmatpush1.msra.mxu0 0.0
    %1950 = vmatprep.subr.mxu0 0.0
    %1951 = vmatpush1.msra.mxu0 0.0
    %1952 = vmatprep.subr.mxu0 0.0
    %1953 = vmatpush1.msra.mxu0 0.0
    %1954 = vmatprep.subr.mxu0 0.0
    %1955 = vmatpush1.msra.mxu0 0.0
    %1956 = vmatprep.subr.mxu0 0.0
    %1957 = vmatpush1.msra.mxu0 0.0
    %1958 = vmatprep.subr.mxu0 0.0
    %1959 = vmatpush1.msra.mxu0 0.0
    %1960 = vmatprep.subr.mxu0 0.0
    %1961 = vmatpush1.msra.mxu0 0.0
    %1962 = vmatprep.subr.mxu0 0.0
    %1963 = vmatpush1.msra.mxu0 0.0
    %1964 = vmatprep.subr.mxu0 0.0
    %1965 = vmatpush1.msra.mxu0 0.0
    %1966 = vmatprep.subr.mxu0 0.0
    %1967 = vmatpush1.msra.mxu0 0.0
    %1968 = vmatprep.subr.mxu0 0.0
    %1969 = vmatpush1.msra.mxu0 0.0
    %1970 = vmatprep.subr.mxu0 0.0
    %1971 = vmatpush1.msra.mxu0 0.0
    %1972 = vmatprep.subr.mxu0 0.0
    %1973 = vmatpush1.msra.mxu0 0.0
    %1974 = vmatprep.subr.mxu0 0.0
    %1975 = vmatpush1.msra.mxu0 0.0
    %1976 = vmatprep.subr.mxu0 0.0
    %1977 = vmatpush1.msra.mxu0 0.0
    %1978 = vmatprep.subr.mxu0 0.0
    %1979 = vmatpush1.msra.mxu0 0.0
    %1980 = vmatprep.subr.mxu0 0.0
    %1981 = vmatpush1.msra.mxu0 0.0
    %1982 = vmatprep.mubr.f32.mxu0 0.0
    %1983 = vmatmul.mubr.f32.gmra.mrb[0].mxu0 %v1904
    %v1984 = vpop.f32.mrb[0].mxu0
    %v1985 = vadd.f32 0.0, %v1984
    %v1986 = vpop.f32.mrb[0].mxu0
    %1987 = vmatprep.mubr.f32.mxu0 0.0
    %1988 = vmatmul.mubr.f32.gmra.mrb[0].mxu0 %v1907
    %v1989 = vpop.f32.mrb[0].mxu0
    %v1990 = vadd.f32 0.0, %v1989
    %v1991 = vpop.f32.mrb[0].mxu0
    %1992 = vmatprep.mubr.f32.mxu0 0.0
    %1993 = vmatmul.mubr.f32.gmra.mrb[0].mxu0 %v1910
    %v1994 = vpop.f32.mrb[0].mxu0
    %v1995 = vadd.f32 0.0, %v1994
    %v1996 = vpop.f32.mrb[0].mxu0
    %1997 = vmatprep.mubr.f32.mxu0 0.0
    %1998 = vmatmul.mubr.f32.gmra.mrb[0].mxu0 %v1913
    %v1999 = vpop.f32.mrb[0].mxu0
    %v2000 = vadd.f32 0.0, %v1999
    %v2001 = vpop.f32.mrb[0].mxu0
    %2002 = vmatprep.mubr.f32.mxu0 0.0
    %2003 = vmatmul.mubr.f32.gmra.mrb[0].mxu0 %v1916
    %v2004 = vpop.f32.mrb[0].mxu0
    %v2005 = vadd.f32 0.0, %v2004
    %v2006 = vpop.f32.mrb[0].mxu0
    %2007 = vdwg.mxu0
    %v2008 = vadd.f32 %v1582, %v1985
    %v2009 = vadd.f32 %v1583, %v1990
    %v2010 = vadd.f32 %v1584, %v1995
    %v2011 = vadd.f32 %v1585, %v2000
    %v2012 = vadd.f32 %v1586, %v2005
    %v2013 = vld [vmem:[%s10] sm:$0x1]
    %v2015 = vlaneseq
    %v2016 = vshrl.u32 %v2015, 7
    %v2017 = vsub.s32 0, %v2016
    %v2018 = vrot.slane %v2013, %v2017
    %v2020 = vadd.f32 %v2008, %v2018
    %v2021 = vadd.f32 %v2009, %v2018
    %v2022 = vadd.f32 %v2010, %v2018
    %v2023 = vadd.f32 %v2011, %v2018
    %v2024 = vadd.f32 %v2012, %v2018
    %v2025 = vadd.f32 %v189, %v2020
    %v2026 = vadd.f32 %v190, %v2021
    %v2027 = vadd.f32 %v191, %v2022
    %v2028 = vadd.f32 %v192, %v2023
    %v2029 = vadd.f32 %v193, %v2024
    %v2030 = vld [vmem:[%s11] sm:$0x1]
    %v2031 = vld [vmem:[%s12] sm:$0x1]
    %v2032 = vsel %vm210, %v2025, 0.0
    %2033 = vadd.xlane.f32.xlu0 %v2032
    %v2034 = vpop.xlane.xlu0 %2033
    %v2035 = vsel %vm210, %v2026, 0.0
    %2036 = vadd.xlane.f32.xlu0 %v2035
    %v2037 = vpop.xlane.xlu0 %2036
    %v2038 = vsel %vm210, %v2027, 0.0
    %2039 = vadd.xlane.f32.xlu0 %v2038
    %v2040 = vpop.xlane.xlu0 %2039
    %v2041 = vsel %vm210, %v2028, 0.0
    %2042 = vadd.xlane.f32.xlu0 %v2041
    %v2043 = vpop.xlane.xlu0 %2042
    %vm2044 = vcmask 257024
    %v2045 = vsel %vm2044, %v2029, 0.0
    %2046 = vadd.xlane.f32.xlu0 %v2045
    %v2047 = vpop.xlane.xlu0 %2046
    %v2048 = vrcp.pop 32.0
    %v2049 = vmul.f32 %v2034, %v2048
    %v2050 = vmul.f32 %v2037, %v2048
    %v2051 = vmul.f32 %v2040, %v2048
    %v2052 = vmul.f32 %v2043, %v2048
    %v2053 = vmul.f32 %v2047, %v2048
    %v2054 = vsub.f32 %v2025, %v2049
    %v2055 = vsub.f32 %v2026, %v2050
    %v2056 = vsub.f32 %v2027, %v2051
    %v2057 = vsub.f32 %v2028, %v2052
    %v2058 = vsub.f32 %v2029, %v2053
    %v2059 = vmul.f32 %v2054, %v2054
    %v2060 = vmul.f32 %v2055, %v2055
    %v2061 = vmul.f32 %v2056, %v2056
    %v2062 = vmul.f32 %v2057, %v2057
    %v2063 = vmul.f32 %v2058, %v2058
    %v2064 = vsel %vm210, %v2059, 0.0
    %2065 = vadd.xlane.f32.xlu0 %v2064
    %v2066 = vpop.xlane.xlu0 %2065
    %v2067 = vsel %vm210, %v2060, 0.0
    %2068 = vadd.xlane.f32.xlu0 %v2067
    %v2069 = vpop.xlane.xlu0 %2068
    %v2070 = vsel %vm210, %v2061, 0.0
    %2071 = vadd.xlane.f32.xlu0 %v2070
    %v2072 = vpop.xlane.xlu0 %2071
    %v2073 = vsel %vm210, %v2062, 0.0
    %2074 = vadd.xlane.f32.xlu0 %v2073
    %v2075 = vpop.xlane.xlu0 %2074
    %v2076 = vsel %vm2044, %v2063, 0.0
    %2077 = vadd.xlane.f32.xlu0 %v2076
    %v2078 = vpop.xlane.xlu0 %2077
    %v2079 = vmul.f32 %v2066, %v2048
    %v2080 = vmul.f32 %v2069, %v2048
    %v2081 = vmul.f32 %v2072, %v2048
    %v2082 = vmul.f32 %v2075, %v2048
    %v2083 = vmul.f32 %v2078, %v2048
    %v2084 = vadd.f32 %v2079, 1e-05
    %v2085 = vadd.f32 %v2080, 1e-05
    %v2086 = vadd.f32 %v2081, 1e-05
    %v2087 = vadd.f32 %v2082, 1e-05
    %v2088 = vadd.f32 %v2083, 1e-05
    %v2089 = vrsqrt.pop %v2084
    %v2090 = vrsqrt.pop %v2085
    %v2091 = vrsqrt.pop %v2086
    %v2092 = vrsqrt.pop %v2087
    %v2093 = vrsqrt.pop %v2088
    %v2094 = vmul.f32 %v2054, %v2089
    %v2095 = vmul.f32 %v2055, %v2090
    %v2096 = vmul.f32 %v2056, %v2091
    %v2097 = vmul.f32 %v2057, %v2092
    %v2098 = vmul.f32 %v2058, %v2093
    %v2100 = vlaneseq
    %v2101 = vshrl.u32 %v2100, 7
    %v2102 = vsub.s32 0, %v2101
    %v2103 = vrot.slane %v2030, %v2102
    %v2105 = vmul.f32 %v2094, %v2103
    %v2106 = vmul.f32 %v2095, %v2103
    %v2107 = vmul.f32 %v2096, %v2103
    %v2108 = vmul.f32 %v2097, %v2103
    %v2109 = vmul.f32 %v2098, %v2103
    %v2111 = vlaneseq
    %v2112 = vshrl.u32 %v2111, 7
    %v2113 = vsub.s32 0, %v2112
    %v2114 = vrot.slane %v2031, %v2113
    %v2116 = vadd.f32 %v2105, %v2114
    %v2117 = vadd.f32 %v2106, %v2114
    %v2118 = vadd.f32 %v2107, %v2114
    %v2119 = vadd.f32 %v2108, %v2114
    %v2120 = vadd.f32 %v2109, %v2114
    %v2121 = vld [vmem:[%s15] sm:$0xff]
    %v2122 = vld [vmem:[%s15 + $0x8] sm:$0xff]
    %v2123 = vld [vmem:[%s15 + $0x10] sm:$0xff]
    %v2124 = vld [vmem:[%s15 + $0x18] sm:$0xff]
    %v2125 = vld [vmem:[%s16] sm:$0x1]
    %v2127 = vlaneseq
    %v2128 = vshrl.u32 %v2127, 7
    %v2129 = vsub.s32 0, %v2128
    %v2130 = vrot.slane %v2125, %v2129
    %v2133 = vsel %vm210, %v2116, 0
    %v2136 = vsel %vm210, %v2117, 0
    %v2139 = vsel %vm210, %v2118, 0
    %v2142 = vsel %vm210, %v2119, 0
    %v2145 = vsel %vm210, %v2120, 0
    %2147 = vmatprep.subr.mxu0 0.0
    %2148 = vmatpush1.msra.mxu0 %v2121
    %2149 = vmatprep.subr.mxu0 0.0
    %2150 = vmatpush1.msra.mxu0 %v2122
    %2151 = vmatprep.subr.mxu0 0.0
    %2152 = vmatpush1.msra.mxu0 %v2123
    %2153 = vmatprep.subr.mxu0 0.0
    %2154 = vmatpush1.msra.mxu0 %v2124
    %2155 = vmatprep.subr.mxu0 0.0
    %2156 = vmatpush1.msra.mxu0 0.0
    %2157 = vmatprep.subr.mxu0 0.0
    %2158 = vmatpush1.msra.mxu0 0.0
    %2159 = vmatprep.subr.mxu0 0.0
    %2160 = vmatpush1.msra.mxu0 0.0
    %2161 = vmatprep.subr.mxu0 0.0
    %2162 = vmatpush1.msra.mxu0 0.0
    %2163 = vmatprep.subr.mxu0 0.0
    %2164 = vmatpush1.msra.mxu0 0.0
    %2165 = vmatprep.subr.mxu0 0.0
    %2166 = vmatpush1.msra.mxu0 0.0
    %2167 = vmatprep.subr.mxu0 0.0
    %2168 = vmatpush1.msra.mxu0 0.0
    %2169 = vmatprep.subr.mxu0 0.0
    %2170 = vmatpush1.msra.mxu0 0.0
    %2171 = vmatprep.subr.mxu0 0.0
    %2172 = vmatpush1.msra.mxu0 0.0
    %2173 = vmatprep.subr.mxu0 0.0
    %2174 = vmatpush1.msra.mxu0 0.0
    %2175 = vmatprep.subr.mxu0 0.0
    %2176 = vmatpush1.msra.mxu0 0.0
    %2177 = vmatprep.subr.mxu0 0.0
    %2178 = vmatpush1.msra.mxu0 0.0
    %2179 = vmatprep.subr.mxu0 0.0
    %2180 = vmatpush1.msra.mxu0 0.0
    %2181 = vmatprep.subr.mxu0 0.0
    %2182 = vmatpush1.msra.mxu0 0.0
    %2183 = vmatprep.subr.mxu0 0.0
    %2184 = vmatpush1.msra.mxu0 0.0
    %2185 = vmatprep.subr.mxu0 0.0
    %2186 = vmatpush1.msra.mxu0 0.0
    %2187 = vmatprep.subr.mxu0 0.0
    %2188 = vmatpush1.msra.mxu0 0.0
    %2189 = vmatprep.subr.mxu0 0.0
    %2190 = vmatpush1.msra.mxu0 0.0
    %2191 = vmatprep.subr.mxu0 0.0
    %2192 = vmatpush1.msra.mxu0 0.0
    %2193 = vmatprep.subr.mxu0 0.0
    %2194 = vmatpush1.msra.mxu0 0.0
    %2195 = vmatprep.subr.mxu0 0.0
    %2196 = vmatpush1.msra.mxu0 0.0
    %2197 = vmatprep.subr.mxu0 0.0
    %2198 = vmatpush1.msra.mxu0 0.0
    %2199 = vmatprep.subr.mxu0 0.0
    %2200 = vmatpush1.msra.mxu0 0.0
    %2201 = vmatprep.subr.mxu0 0.0
    %2202 = vmatpush1.msra.mxu0 0.0
    %2203 = vmatprep.subr.mxu0 0.0
    %2204 = vmatpush1.msra.mxu0 0.0
    %2205 = vmatprep.subr.mxu0 0.0
    %2206 = vmatpush1.msra.mxu0 0.0
    %2207 = vmatprep.subr.mxu0 0.0
    %2208 = vmatpush1.msra.mxu0 0.0
    %2209 = vmatprep.subr.mxu0 0.0
    %2210 = vmatpush1.msra.mxu0 0.0
    %2211 = vmatprep.mubr.f32.mxu0 0.0
    %2212 = vmatmul.mubr.f32.gmra.mrb[0].mxu0 %v2133
    %v2213 = vpop.f32.mrb[0].mxu0
    %v2214 = vadd.f32 %v2130, %v2213
    %v2215 = vpop.f32.mrb[0].mxu0
    %2216 = vmatprep.mubr.f32.mxu0 0.0
    %2217 = vmatmul.mubr.f32.gmra.mrb[0].mxu0 %v2136
    %v2218 = vpop.f32.mrb[0].mxu0
    %v2219 = vadd.f32 %v2130, %v2218
    %v2220 = vpop.f32.mrb[0].mxu0
    %2221 = vmatprep.mubr.f32.mxu0 0.0
    %2222 = vmatmul.mubr.f32.gmra.mrb[0].mxu0 %v2139
    %v2223 = vpop.f32.mrb[0].mxu0
    %v2224 = vadd.f32 %v2130, %v2223
    %v2225 = vpop.f32.mrb[0].mxu0
    %2226 = vmatprep.mubr.f32.mxu0 0.0
    %2227 = vmatmul.mubr.f32.gmra.mrb[0].mxu0 %v2142
    %v2228 = vpop.f32.mrb[0].mxu0
    %v2229 = vadd.f32 %v2130, %v2228
    %v2230 = vpop.f32.mrb[0].mxu0
    %2231 = vmatprep.mubr.f32.mxu0 0.0
    %2232 = vmatmul.mubr.f32.gmra.mrb[0].mxu0 %v2145
    %v2233 = vpop.f32.mrb[0].mxu0
    %v2234 = vadd.f32 %v2130, %v2233
    %v2235 = vpop.f32.mrb[0].mxu0
    %2236 = vdwg.mxu0
    %v2237 = vmax.f32 %v2214, 0.0
    %v2238 = vmax.f32 %v2219, 0.0
    %v2239 = vmax.f32 %v2224, 0.0
    %v2240 = vmax.f32 %v2229, 0.0
    %v2241 = vmax.f32 %v2234, 0.0
    %v2242 = vld [vmem:[%s17] sm:$0xff]
    %v2243 = vld [vmem:[%s17 + $0x8] sm:$0xff]
    %v2244 = vld [vmem:[%s17 + $0x10] sm:$0xff]
    %v2245 = vld [vmem:[%s17 + $0x18] sm:$0xff]
    %v2246 = vld [vmem:[%s17 + $0x20] sm:$0xff]
    %v2247 = vld [vmem:[%s17 + $0x28] sm:$0xff]
    %v2248 = vld [vmem:[%s17 + $0x30] sm:$0xff]
    %v2249 = vld [vmem:[%s17 + $0x38] sm:$0xff]
    %v2250 = vld [vmem:[%s18] sm:$0x1]
    %v2252 = vlaneseq
    %v2253 = vshrl.u32 %v2252, 7
    %v2254 = vsub.s32 0, %v2253
    %v2255 = vrot.slane %v2250, %v2254
    %vm2257 = vcmask 523264
    %v2259 = vsel %vm2257, %v2237, 0
    %v2262 = vsel %vm2257, %v2238, 0
    %v2265 = vsel %vm2257, %v2239, 0
    %v2268 = vsel %vm2257, %v2240, 0
    %v2271 = vsel %vm2257, %v2241, 0
    %2273 = vmatprep.subr.mxu0 0.0
    %2274 = vmatpush1.msra.mxu0 %v2242
    %2275 = vmatprep.subr.mxu0 0.0
    %2276 = vmatpush1.msra.mxu0 %v2243
    %2277 = vmatprep.subr.mxu0 0.0
    %2278 = vmatpush1.msra.mxu0 %v2244
    %2279 = vmatprep.subr.mxu0 0.0
    %2280 = vmatpush1.msra.mxu0 %v2245
    %2281 = vmatprep.subr.mxu0 0.0
    %2282 = vmatpush1.msra.mxu0 %v2246
    %2283 = vmatprep.subr.mxu0 0.0
    %2284 = vmatpush1.msra.mxu0 %v2247
    %2285 = vmatprep.subr.mxu0 0.0
    %2286 = vmatpush1.msra.mxu0 %v2248
    %2287 = vmatprep.subr.mxu0 0.0
    %2288 = vmatpush1.msra.mxu0 %v2249
    %2289 = vmatprep.subr.mxu0 0.0
    %2290 = vmatpush1.msra.mxu0 0.0
    %2291 = vmatprep.subr.mxu0 0.0
    %2292 = vmatpush1.msra.mxu0 0.0
    %2293 = vmatprep.subr.mxu0 0.0
    %2294 = vmatpush1.msra.mxu0 0.0
    %2295 = vmatprep.subr.mxu0 0.0
    %2296 = vmatpush1.msra.mxu0 0.0
    %2297 = vmatprep.subr.mxu0 0.0
    %2298 = vmatpush1.msra.mxu0 0.0
    %2299 = vmatprep.subr.mxu0 0.0
    %2300 = vmatpush1.msra.mxu0 0.0
    %2301 = vmatprep.subr.mxu0 0.0
    %2302 = vmatpush1.msra.mxu0 0.0
    %2303 = vmatprep.subr.mxu0 0.0
    %2304 = vmatpush1.msra.mxu0 0.0
    %2305 = vmatprep.subr.mxu0 0.0
    %2306 = vmatpush1.msra.mxu0 0.0
    %2307 = vmatprep.subr.mxu0 0.0
    %2308 = vmatpush1.msra.mxu0 0.0
    %2309 = vmatprep.subr.mxu0 0.0
    %2310 = vmatpush1.msra.mxu0 0.0
    %2311 = vmatprep.subr.mxu0 0.0
    %2312 = vmatpush1.msra.mxu0 0.0
    %2313 = vmatprep.subr.mxu0 0.0
    %2314 = vmatpush1.msra.mxu0 0.0
    %2315 = vmatprep.subr.mxu0 0.0
    %2316 = vmatpush1.msra.mxu0 0.0
    %2317 = vmatprep.subr.mxu0 0.0
    %2318 = vmatpush1.msra.mxu0 0.0
    %2319 = vmatprep.subr.mxu0 0.0
    %2320 = vmatpush1.msra.mxu0 0.0
    %2321 = vmatprep.subr.mxu0 0.0
    %2322 = vmatpush1.msra.mxu0 0.0
    %2323 = vmatprep.subr.mxu0 0.0
    %2324 = vmatpush1.msra.mxu0 0.0
    %2325 = vmatprep.subr.mxu0 0.0
    %2326 = vmatpush1.msra.mxu0 0.0
    %2327 = vmatprep.subr.mxu0 0.0
    %2328 = vmatpush1.msra.mxu0 0.0
    %2329 = vmatprep.subr.mxu0 0.0
    %2330 = vmatpush1.msra.mxu0 0.0
    %2331 = vmatprep.subr.mxu0 0.0
    %2332 = vmatpush1.msra.mxu0 0.0
    %2333 = vmatprep.subr.mxu0 0.0
    %2334 = vmatpush1.msra.mxu0 0.0
    %2335 = vmatprep.subr.mxu0 0.0
    %2336 = vmatpush1.msra.mxu0 0.0
    %2337 = vmatprep.mubr.f32.mxu0 0.0
    %2338 = vmatmul.mubr.f32.gmra.mrb[0].mxu0 %v2259
    %v2339 = vpop.f32.mrb[0].mxu0
    %v2340 = vadd.f32 %v2255, %v2339
    %v2341 = vpop.f32.mrb[0].mxu0
    %2342 = vmatprep.mubr.f32.mxu0 0.0
    %2343 = vmatmul.mubr.f32.gmra.mrb[0].mxu0 %v2262
    %v2344 = vpop.f32.mrb[0].mxu0
    %v2345 = vadd.f32 %v2255, %v2344
    %v2346 = vpop.f32.mrb[0].mxu0
    %2347 = vmatprep.mubr.f32.mxu0 0.0
    %2348 = vmatmul.mubr.f32.gmra.mrb[0].mxu0 %v2265
    %v2349 = vpop.f32.mrb[0].mxu0
    %v2350 = vadd.f32 %v2255, %v2349
    %v2351 = vpop.f32.mrb[0].mxu0
    %2352 = vmatprep.mubr.f32.mxu0 0.0
    %2353 = vmatmul.mubr.f32.gmra.mrb[0].mxu0 %v2268
    %v2354 = vpop.f32.mrb[0].mxu0
    %v2355 = vadd.f32 %v2255, %v2354
    %v2356 = vpop.f32.mrb[0].mxu0
    %2357 = vmatprep.mubr.f32.mxu0 0.0
    %2358 = vmatmul.mubr.f32.gmra.mrb[0].mxu0 %v2271
    %v2359 = vpop.f32.mrb[0].mxu0
    %v2360 = vadd.f32 %v2255, %v2359
    %v2361 = vpop.f32.mrb[0].mxu0
    %2362 = vdwg.mxu0
    %v2363 = vadd.f32 %v2116, %v2340
    %v2364 = vadd.f32 %v2117, %v2345
    %v2365 = vadd.f32 %v2118, %v2350
    %v2366 = vadd.f32 %v2119, %v2355
    %v2367 = vadd.f32 %v2120, %v2360
    %v2368 = vld [vmem:[%s13] sm:$0x1]
    %v2369 = vld [vmem:[%s14] sm:$0x1]
    %v2370 = vsel %vm210, %v2363, 0.0
    %2371 = vadd.xlane.f32.xlu0 %v2370
    %v2372 = vpop.xlane.xlu0 %2371
    %v2373 = vsel %vm210, %v2364, 0.0
    %2374 = vadd.xlane.f32.xlu0 %v2373
    %v2375 = vpop.xlane.xlu0 %2374
    %v2376 = vsel %vm210, %v2365, 0.0
    %2377 = vadd.xlane.f32.xlu0 %v2376
    %v2378 = vpop.xlane.xlu0 %2377
    %v2379 = vsel %vm210, %v2366, 0.0
    %2380 = vadd.xlane.f32.xlu0 %v2379
    %v2381 = vpop.xlane.xlu0 %2380
    %v2382 = vsel %vm2044, %v2367, 0.0
    %2383 = vadd.xlane.f32.xlu0 %v2382
    %v2384 = vpop.xlane.xlu0 %2383
    %v2385 = vmul.f32 %v2372, %v2048
    %v2386 = vmul.f32 %v2375, %v2048
    %v2387 = vmul.f32 %v2378, %v2048
    %v2388 = vmul.f32 %v2381, %v2048
    %v2389 = vmul.f32 %v2384, %v2048
    %v2390 = vsub.f32 %v2363, %v2385
    %v2391 = vsub.f32 %v2364, %v2386
    %v2392 = vsub.f32 %v2365, %v2387
    %v2393 = vsub.f32 %v2366, %v2388
    %v2394 = vsub.f32 %v2367, %v2389
    %v2395 = vmul.f32 %v2390, %v2390
    %v2396 = vmul.f32 %v2391, %v2391
    %v2397 = vmul.f32 %v2392, %v2392
    %v2398 = vmul.f32 %v2393, %v2393
    %v2399 = vmul.f32 %v2394, %v2394
    %v2400 = vsel %vm210, %v2395, 0.0
    %2401 = vadd.xlane.f32.xlu0 %v2400
    %v2402 = vpop.xlane.xlu0 %2401
    %v2403 = vsel %vm210, %v2396, 0.0
    %2404 = vadd.xlane.f32.xlu0 %v2403
    %v2405 = vpop.xlane.xlu0 %2404
    %v2406 = vsel %vm210, %v2397, 0.0
    %2407 = vadd.xlane.f32.xlu0 %v2406
    %v2408 = vpop.xlane.xlu0 %2407
    %v2409 = vsel %vm210, %v2398, 0.0
    %2410 = vadd.xlane.f32.xlu0 %v2409
    %v2411 = vpop.xlane.xlu0 %2410
    %v2412 = vsel %vm2044, %v2399, 0.0
    %2413 = vadd.xlane.f32.xlu0 %v2412
    %v2414 = vpop.xlane.xlu0 %2413
    %v2415 = vmul.f32 %v2402, %v2048
    %v2416 = vmul.f32 %v2405, %v2048
    %v2417 = vmul.f32 %v2408, %v2048
    %v2418 = vmul.f32 %v2411, %v2048
    %v2419 = vmul.f32 %v2414, %v2048
    %v2420 = vadd.f32 %v2415, 1e-05
    %v2421 = vadd.f32 %v2416, 1e-05
    %v2422 = vadd.f32 %v2417, 1e-05
    %v2423 = vadd.f32 %v2418, 1e-05
    %v2424 = vadd.f32 %v2419, 1e-05
    %v2425 = vrsqrt.pop %v2420
    %v2426 = vrsqrt.pop %v2421
    %v2427 = vrsqrt.pop %v2422
    %v2428 = vrsqrt.pop %v2423
    %v2429 = vrsqrt.pop %v2424
    %v2430 = vmul.f32 %v2390, %v2425
    %v2431 = vmul.f32 %v2391, %v2426
    %v2432 = vmul.f32 %v2392, %v2427
    %v2433 = vmul.f32 %v2393, %v2428
    %v2434 = vmul.f32 %v2394, %v2429
    %v2436 = vlaneseq
    %v2437 = vshrl.u32 %v2436, 7
    %v2438 = vsub.s32 0, %v2437
    %v2439 = vrot.slane %v2368, %v2438
    %v2441 = vmul.f32 %v2430, %v2439
    %v2442 = vmul.f32 %v2431, %v2439
    %v2443 = vmul.f32 %v2432, %v2439
    %v2444 = vmul.f32 %v2433, %v2439
    %v2445 = vmul.f32 %v2434, %v2439
    %v2447 = vlaneseq
    %v2448 = vshrl.u32 %v2447, 7
    %v2449 = vsub.s32 0, %v2448
    %v2450 = vrot.slane %v2369, %v2449
    %v2452 = vadd.f32 %v2441, %v2450
    %v2453 = vadd.f32 %v2442, %v2450
    %v2454 = vadd.f32 %v2443, %v2450
    %v2455 = vadd.f32 %v2444, %v2450
    %v2456 = vadd.f32 %v2445, %v2450
    %s2457 = scalar_lea.vmem %s7, 32
    %v2458 = vld [vmem:[%s2457] sm:$0xff]
    %v2459 = vld [vmem:[%s2457 + $0x8] sm:$0xff]
    %v2460 = vld [vmem:[%s2457 + $0x10] sm:$0xff]
    %v2461 = vld [vmem:[%s2457 + $0x18] sm:$0xff]
    %s2462 = scalar_lea.vmem %s8, 1
    %v2463 = vld [vmem:[%s2462] sm:$0x1]
    %v2465 = vlaneseq
    %v2466 = vshrl.u32 %v2465, 7
    %v2467 = vsub.s32 0, %v2466
    %v2468 = vrot.slane %v2463, %v2467
    %v2471 = vsel %vm210, %v2452, 0
    %v2474 = vsel %vm210, %v2453, 0
    %v2477 = vsel %vm210, %v2454, 0
    %v2480 = vsel %vm210, %v2455, 0
    %v2483 = vsel %vm210, %v2456, 0
    %2485 = vmatprep.subr.mxu0 0.0
    %2486 = vmatpush1.msra.mxu0 %v2458
    %2487 = vmatprep.subr.mxu0 0.0
    %2488 = vmatpush1.msra.mxu0 %v2459
    %2489 = vmatprep.subr.mxu0 0.0
    %2490 = vmatpush1.msra.mxu0 %v2460
    %2491 = vmatprep.subr.mxu0 0.0
    %2492 = vmatpush1.msra.mxu0 %v2461
    %2493 = vmatprep.subr.mxu0 0.0
    %2494 = vmatpush1.msra.mxu0 0.0
    %2495 = vmatprep.subr.mxu0 0.0
    %2496 = vmatpush1.msra.mxu0 0.0
    %2497 = vmatprep.subr.mxu0 0.0
    %2498 = vmatpush1.msra.mxu0 0.0
    %2499 = vmatprep.subr.mxu0 0.0
    %2500 = vmatpush1.msra.mxu0 0.0
    %2501 = vmatprep.subr.mxu0 0.0
    %2502 = vmatpush1.msra.mxu0 0.0
    %2503 = vmatprep.subr.mxu0 0.0
    %2504 = vmatpush1.msra.mxu0 0.0
    %2505 = vmatprep.subr.mxu0 0.0
    %2506 = vmatpush1.msra.mxu0 0.0
    %2507 = vmatprep.subr.mxu0 0.0
    %2508 = vmatpush1.msra.mxu0 0.0
    %2509 = vmatprep.subr.mxu0 0.0
    %2510 = vmatpush1.msra.mxu0 0.0
    %2511 = vmatprep.subr.mxu0 0.0
    %2512 = vmatpush1.msra.mxu0 0.0
    %2513 = vmatprep.subr.mxu0 0.0
    %2514 = vmatpush1.msra.mxu0 0.0
    %2515 = vmatprep.subr.mxu0 0.0
    %2516 = vmatpush1.msra.mxu0 0.0
    %2517 = vmatprep.subr.mxu0 0.0
    %2518 = vmatpush1.msra.mxu0 0.0
    %2519 = vmatprep.subr.mxu0 0.0
    %2520 = vmatpush1.msra.mxu0 0.0
    %2521 = vmatprep.subr.mxu0 0.0
    %2522 = vmatpush1.msra.mxu0 0.0
    %2523 = vmatprep.subr.mxu0 0.0
    %2524 = vmatpush1.msra.mxu0 0.0
    %2525 = vmatprep.subr.mxu0 0.0
    %2526 = vmatpush1.msra.mxu0 0.0
    %2527 = vmatprep.subr.mxu0 0.0
    %2528 = vmatpush1.msra.mxu0 0.0
    %2529 = vmatprep.subr.mxu0 0.0
    %2530 = vmatpush1.msra.mxu0 0.0
    %2531 = vmatprep.subr.mxu0 0.0
    %2532 = vmatpush1.msra.mxu0 0.0
    %2533 = vmatprep.subr.mxu0 0.0
    %2534 = vmatpush1.msra.mxu0 0.0
    %2535 = vmatprep.subr.mxu0 0.0
    %2536 = vmatpush1.msra.mxu0 0.0
    %2537 = vmatprep.subr.mxu0 0.0
    %2538 = vmatpush1.msra.mxu0 0.0
    %2539 = vmatprep.subr.mxu0 0.0
    %2540 = vmatpush1.msra.mxu0 0.0
    %2541 = vmatprep.subr.mxu0 0.0
    %2542 = vmatpush1.msra.mxu0 0.0
    %2543 = vmatprep.subr.mxu0 0.0
    %2544 = vmatpush1.msra.mxu0 0.0
    %2545 = vmatprep.subr.mxu0 0.0
    %2546 = vmatpush1.msra.mxu0 0.0
    %2547 = vmatprep.subr.mxu0 0.0
    %2548 = vmatpush1.msra.mxu0 0.0
    %2549 = vmatprep.mubr.f32.mxu0 0.0
    %2550 = vmatmul.mubr.f32.gmra.mrb[0].mxu0 %v2471
    %v2551 = vpop.f32.mrb[0].mxu0
    %v2552 = vadd.f32 %v2468, %v2551
    %v2553 = vpop.f32.mrb[0].mxu0
    %2554 = vmatprep.mubr.f32.mxu0 0.0
    %2555 = vmatmul.mubr.f32.gmra.mrb[0].mxu0 %v2474
    %v2556 = vpop.f32.mrb[0].mxu0
    %v2557 = vadd.f32 %v2468, %v2556
    %v2558 = vpop.f32.mrb[0].mxu0
    %2559 = vmatprep.mubr.f32.mxu0 0.0
    %2560 = vmatmul.mubr.f32.gmra.mrb[0].mxu0 %v2477
    %v2561 = vpop.f32.mrb[0].mxu0
    %v2562 = vadd.f32 %v2468, %v2561
    %v2563 = vpop.f32.mrb[0].mxu0
    %2564 = vmatprep.mubr.f32.mxu0 0.0
    %2565 = vmatmul.mubr.f32.gmra.mrb[0].mxu0 %v2480
    %v2566 = vpop.f32.mrb[0].mxu0
    %v2567 = vadd.f32 %v2468, %v2566
    %v2568 = vpop.f32.mrb[0].mxu0
    %2569 = vmatprep.mubr.f32.mxu0 0.0
    %2570 = vmatmul.mubr.f32.gmra.mrb[0].mxu0 %v2483
    %v2571 = vpop.f32.mrb[0].mxu0
    %v2572 = vadd.f32 %v2468, %v2571
    %v2573 = vpop.f32.mrb[0].mxu0
    %2574 = vdwg.mxu0
    %2580 = vrot.lane.b32.xlu0 %v2552, 96
    %v2581 = vpop.permute.xlu0 %2580
    %2582 = vrot.lane.b32.xlu0 %v2557, 96
    %v2583 = vpop.permute.xlu0 %2582
    %2584 = vrot.lane.b32.xlu0 %v2562, 96
    %v2585 = vpop.permute.xlu0 %2584
    %2586 = vrot.lane.b32.xlu0 %v2567, 96
    %v2587 = vpop.permute.xlu0 %2586
    %2588 = vrot.lane.b32.xlu0 %v2572, 96
    %v2589 = vpop.permute.xlu0 %2588
    %v2590 = vsel %vm331, %v2552, 0
    %v2592 = vsel %vm331, %v2557, 0
    %v2594 = vsel %vm331, %v2562, 0
    %v2596 = vsel %vm331, %v2567, 0
    %v2598 = vsel %vm331, %v2572, 0
    %v2600 = vsel %vm331, %v2581, 0
    %v2602 = vsel %vm331, %v2583, 0
    %v2604 = vsel %vm331, %v2585, 0
    %v2606 = vsel %vm331, %v2587, 0
    %v2608 = vsel %vm331, %v2589, 0
    %2610 = vmatprep.subr.mxu0 0.0
    %2611 = vmatpush1.xpose.msra.mxu0 %v2600
    %2612 = vmatprep.subr.mxu0 0.0
    %2613 = vmatpush1.xpose.msra.mxu0 %v2602
    %2614 = vmatprep.subr.mxu0 0.0
    %2615 = vmatpush1.xpose.msra.mxu0 %v2604
    %2616 = vmatprep.subr.mxu0 0.0
    %2617 = vmatpush1.xpose.msra.mxu0 %v2606
    %2618 = vmatprep.subr.mxu0 0.0
    %2619 = vmatpush1.xpose.msra.mxu0 %v2608
    %2620 = vmatprep.subr.mxu0 0.0
    %2621 = vmatpush1.xpose.msra.mxu0 0.0
    %2622 = vmatprep.subr.mxu0 0.0
    %2623 = vmatpush1.xpose.msra.mxu0 0.0
    %2624 = vmatprep.subr.mxu0 0.0
    %2625 = vmatpush1.xpose.msra.mxu0 0.0
    %2626 = vmatprep.subr.mxu0 0.0
    %2627 = vmatpush1.xpose.msra.mxu0 0.0
    %2628 = vmatprep.subr.mxu0 0.0
    %2629 = vmatpush1.xpose.msra.mxu0 0.0
    %2630 = vmatprep.subr.mxu0 0.0
    %2631 = vmatpush1.xpose.msra.mxu0 0.0
    %2632 = vmatprep.subr.mxu0 0.0
    %2633 = vmatpush1.xpose.msra.mxu0 0.0
    %2634 = vmatprep.subr.mxu0 0.0
    %2635 = vmatpush1.xpose.msra.mxu0 0.0
    %2636 = vmatprep.subr.mxu0 0.0
    %2637 = vmatpush1.xpose.msra.mxu0 0.0
    %2638 = vmatprep.subr.mxu0 0.0
    %2639 = vmatpush1.xpose.msra.mxu0 0.0
    %2640 = vmatprep.subr.mxu0 0.0
    %2641 = vmatpush1.xpose.msra.mxu0 0.0
    %2642 = vmatprep.subr.mxu0 0.0
    %2643 = vmatpush1.xpose.msra.mxu0 0.0
    %2644 = vmatprep.subr.mxu0 0.0
    %2645 = vmatpush1.xpose.msra.mxu0 0.0
    %2646 = vmatprep.subr.mxu0 0.0
    %2647 = vmatpush1.xpose.msra.mxu0 0.0
    %2648 = vmatprep.subr.mxu0 0.0
    %2649 = vmatpush1.xpose.msra.mxu0 0.0
    %2650 = vmatprep.subr.mxu0 0.0
    %2651 = vmatpush1.xpose.msra.mxu0 0.0
    %2652 = vmatprep.subr.mxu0 0.0
    %2653 = vmatpush1.xpose.msra.mxu0 0.0
    %2654 = vmatprep.subr.mxu0 0.0
    %2655 = vmatpush1.xpose.msra.mxu0 0.0
    %2656 = vmatprep.subr.mxu0 0.0
    %2657 = vmatpush1.xpose.msra.mxu0 0.0
    %2658 = vmatprep.subr.mxu0 0.0
    %2659 = vmatpush1.xpose.msra.mxu0 0.0
    %2660 = vmatprep.subr.mxu0 0.0
    %2661 = vmatpush1.xpose.msra.mxu0 0.0
    %2662 = vmatprep.subr.mxu0 0.0
    %2663 = vmatpush1.xpose.msra.mxu0 0.0
    %2664 = vmatprep.subr.mxu0 0.0
    %2665 = vmatpush1.xpose.msra.mxu0 0.0
    %2666 = vmatprep.subr.mxu0 0.0
    %2667 = vmatpush1.xpose.msra.mxu0 0.0
    %2668 = vmatprep.subr.mxu0 0.0
    %2669 = vmatpush1.xpose.msra.mxu0 0.0
    %2670 = vmatprep.subr.mxu0 0.0
    %2671 = vmatpush1.xpose.msra.mxu0 0.0
    %2672 = vmatprep.subr.mxu0 0.0
    %2673 = vmatpush1.xpose.msra.mxu0 0.0
    %2674 = vmatprep.mubr.f32.mxu0 0.0
    %2675 = vmatmul.mubr.f32.gmra.mrb[0].mxu0 %v2590
    %v2676 = vpop.f32.mrb[0].mxu0
    %v2677 = vadd.f32 0.0, %v2676
    %v2678 = vpop.f32.mrb[0].mxu0
    %2679 = vmatprep.mubr.f32.mxu0 0.0
    %2680 = vmatmul.mubr.f32.gmra.mrb[0].mxu0 %v2592
    %v2681 = vpop.f32.mrb[0].mxu0
    %v2682 = vadd.f32 0.0, %v2681
    %v2683 = vpop.f32.mrb[0].mxu0
    %2684 = vmatprep.mubr.f32.mxu0 0.0
    %2685 = vmatmul.mubr.f32.gmra.mrb[0].mxu0 %v2594
    %v2686 = vpop.f32.mrb[0].mxu0
    %v2687 = vadd.f32 0.0, %v2686
    %v2688 = vpop.f32.mrb[0].mxu0
    %2689 = vmatprep.mubr.f32.mxu0 0.0
    %2690 = vmatmul.mubr.f32.gmra.mrb[0].mxu0 %v2596
    %v2691 = vpop.f32.mrb[0].mxu0
    %v2692 = vadd.f32 0.0, %v2691
    %v2693 = vpop.f32.mrb[0].mxu0
    %2694 = vmatprep.mubr.f32.mxu0 0.0
    %2695 = vmatmul.mubr.f32.gmra.mrb[0].mxu0 %v2598
    %v2696 = vpop.f32.mrb[0].mxu0
    %v2697 = vadd.f32 0.0, %v2696
    %v2698 = vpop.f32.mrb[0].mxu0
    %2699 = vdwg.mxu0
    %v2700 = vmul.f32 %v2677, 0.35355338
    %v2701 = vmul.f32 %v2682, 0.35355338
    %v2702 = vmul.f32 %v2687, 0.35355338
    %v2703 = vmul.f32 %v2692, 0.35355338
    %v2704 = vmul.f32 %v2697, 0.35355338
    %v2705 = vadd.f32 %v2700, %v194
    %v2706 = vadd.f32 %v2701, %v195
    %v2707 = vadd.f32 %v2702, %v196
    %v2708 = vadd.f32 %v2703, %v197
    %v2709 = vadd.f32 %v2704, %v198
    %v2710 = vsel %vm452, %v2705, -inf
    %2711 = vmax.xlane.f32.xlu0 %v2710
    %v2712 = vpop.xlane.xlu0 %2711
    %v2713 = vsel %vm452, %v2706, -inf
    %2714 = vmax.xlane.f32.xlu0 %v2713
    %v2715 = vpop.xlane.xlu0 %2714
    %v2716 = vsel %vm452, %v2707, -inf
    %2717 = vmax.xlane.f32.xlu0 %v2716
    %v2718 = vpop.xlane.xlu0 %2717
    %v2719 = vsel %vm452, %v2708, -inf
    %2720 = vmax.xlane.f32.xlu0 %v2719
    %v2721 = vpop.xlane.xlu0 %2720
    %v2722 = vsel %vm465, %v2709, -inf
    %2723 = vmax.xlane.f32.xlu0 %v2722
    %v2724 = vpop.xlane.xlu0 %2723
    %v2725 = vsub.f32 %v2705, %v2712
    %v2726 = vsub.f32 %v2706, %v2715
    %v2727 = vsub.f32 %v2707, %v2718
    %v2728 = vsub.f32 %v2708, %v2721
    %v2729 = vsub.f32 %v2709, %v2724
    %v2730 = vmul.f32 %v2725, 1.442695
    %v2731 = vpow.pop %v2730
    %v2732 = vmul.f32 %v2726, 1.442695
    %v2733 = vpow.pop %v2732
    %v2734 = vmul.f32 %v2727, 1.442695
    %v2735 = vpow.pop %v2734
    %v2736 = vmul.f32 %v2728, 1.442695
    %v2737 = vpow.pop %v2736
    %v2738 = vmul.f32 %v2729, 1.442695
    %v2739 = vpow.pop %v2738
    %v2740 = vsel %vm452, %v2731, 0.0
    %2741 = vadd.xlane.f32.xlu0 %v2740
    %v2742 = vpop.xlane.xlu0 %2741
    %v2743 = vsel %vm452, %v2733, 0.0
    %2744 = vadd.xlane.f32.xlu0 %v2743
    %v2745 = vpop.xlane.xlu0 %2744
    %v2746 = vsel %vm452, %v2735, 0.0
    %2747 = vadd.xlane.f32.xlu0 %v2746
    %v2748 = vpop.xlane.xlu0 %2747
    %v2749 = vsel %vm452, %v2737, 0.0
    %2750 = vadd.xlane.f32.xlu0 %v2749
    %v2751 = vpop.xlane.xlu0 %2750
    %v2752 = vsel %vm465, %v2739, 0.0
    %2753 = vadd.xlane.f32.xlu0 %v2752
    %v2754 = vpop.xlane.xlu0 %2753
    %v2755 = vrcp.pop %v2742
    %v2756 = vrcp.pop %v2745
    %v2757 = vrcp.pop %v2748
    %v2758 = vrcp.pop %v2751
    %v2759 = vrcp.pop %v2754
    %v2760 = vmul.f32 %v2731, %v2755
    %v2761 = vmul.f32 %v2733, %v2756
    %v2762 = vmul.f32 %v2735, %v2757
    %v2763 = vmul.f32 %v2737, %v2758
    %v2764 = vmul.f32 %v2739, %v2759
    %2765 = vrot.lane.b32.xlu0 %v2552, 64
    %v2766 = vpop.permute.xlu0 %2765
    %2767 = vrot.lane.b32.xlu0 %v2557, 64
    %v2768 = vpop.permute.xlu0 %2767
    %2769 = vrot.lane.b32.xlu0 %v2562, 64
    %v2770 = vpop.permute.xlu0 %2769
    %2771 = vrot.lane.b32.xlu0 %v2567, 64
    %v2772 = vpop.permute.xlu0 %2771
    %2773 = vrot.lane.b32.xlu0 %v2572, 64
    %v2774 = vpop.permute.xlu0 %2773
    %v2780 = vsel %vm452, %v2760, 0
    %v2783 = vsel %vm452, %v2761, 0
    %v2786 = vsel %vm452, %v2762, 0
    %v2789 = vsel %vm452, %v2763, 0
    %v2792 = vsel %vm452, %v2764, 0
    %v2794 = vsel %vm538, %v2774, 0
    %2796 = vmatprep.subr.mxu0 0.0
    %2797 = vmatpush1.msra.mxu0 %v2766
    %2798 = vmatprep.subr.mxu0 0.0
    %2799 = vmatpush1.msra.mxu0 %v2768
    %2800 = vmatprep.subr.mxu0 0.0
    %2801 = vmatpush1.msra.mxu0 %v2770
    %2802 = vmatprep.subr.mxu0 0.0
    %2803 = vmatpush1.msra.mxu0 %v2772
    %2804 = vmatprep.subr.mxu0 0.0
    %2805 = vmatpush1.msra.mxu0 %v2794
    %2806 = vmatprep.subr.mxu0 0.0
    %2807 = vmatpush1.msra.mxu0 0.0
    %2808 = vmatprep.subr.mxu0 0.0
    %2809 = vmatpush1.msra.mxu0 0.0
    %2810 = vmatprep.subr.mxu0 0.0
    %2811 = vmatpush1.msra.mxu0 0.0
    %2812 = vmatprep.subr.mxu0 0.0
    %2813 = vmatpush1.msra.mxu0 0.0
    %2814 = vmatprep.subr.mxu0 0.0
    %2815 = vmatpush1.msra.mxu0 0.0
    %2816 = vmatprep.subr.mxu0 0.0
    %2817 = vmatpush1.msra.mxu0 0.0
    %2818 = vmatprep.subr.mxu0 0.0
    %2819 = vmatpush1.msra.mxu0 0.0
    %2820 = vmatprep.subr.mxu0 0.0
    %2821 = vmatpush1.msra.mxu0 0.0
    %2822 = vmatprep.subr.mxu0 0.0
    %2823 = vmatpush1.msra.mxu0 0.0
    %2824 = vmatprep.subr.mxu0 0.0
    %2825 = vmatpush1.msra.mxu0 0.0
    %2826 = vmatprep.subr.mxu0 0.0
    %2827 = vmatpush1.msra.mxu0 0.0
    %2828 = vmatprep.subr.mxu0 0.0
    %2829 = vmatpush1.msra.mxu0 0.0
    %2830 = vmatprep.subr.mxu0 0.0
    %2831 = vmatpush1.msra.mxu0 0.0
    %2832 = vmatprep.subr.mxu0 0.0
    %2833 = vmatpush1.msra.mxu0 0.0
    %2834 = vmatprep.subr.mxu0 0.0
    %2835 = vmatpush1.msra.mxu0 0.0
    %2836 = vmatprep.subr.mxu0 0.0
    %2837 = vmatpush1.msra.mxu0 0.0
    %2838 = vmatprep.subr.mxu0 0.0
    %2839 = vmatpush1.msra.mxu0 0.0
    %2840 = vmatprep.subr.mxu0 0.0
    %2841 = vmatpush1.msra.mxu0 0.0
    %2842 = vmatprep.subr.mxu0 0.0
    %2843 = vmatpush1.msra.mxu0 0.0
    %2844 = vmatprep.subr.mxu0 0.0
    %2845 = vmatpush1.msra.mxu0 0.0
    %2846 = vmatprep.subr.mxu0 0.0
    %2847 = vmatpush1.msra.mxu0 0.0
    %2848 = vmatprep.subr.mxu0 0.0
    %2849 = vmatpush1.msra.mxu0 0.0
    %2850 = vmatprep.subr.mxu0 0.0
    %2851 = vmatpush1.msra.mxu0 0.0
    %2852 = vmatprep.subr.mxu0 0.0
    %2853 = vmatpush1.msra.mxu0 0.0
    %2854 = vmatprep.subr.mxu0 0.0
    %2855 = vmatpush1.msra.mxu0 0.0
    %2856 = vmatprep.subr.mxu0 0.0
    %2857 = vmatpush1.msra.mxu0 0.0
    %2858 = vmatprep.subr.mxu0 0.0
    %2859 = vmatpush1.msra.mxu0 0.0
    %2860 = vmatprep.mubr.f32.mxu0 0.0
    %2861 = vmatmul.mubr.f32.gmra.mrb[0].mxu0 %v2780
    %v2862 = vpop.f32.mrb[0].mxu0
    %v2863 = vadd.f32 0.0, %v2862
    %v2864 = vpop.f32.mrb[0].mxu0
    %2865 = vmatprep.mubr.f32.mxu0 0.0
    %2866 = vmatmul.mubr.f32.gmra.mrb[0].mxu0 %v2783
    %v2867 = vpop.f32.mrb[0].mxu0
    %v2868 = vadd.f32 0.0, %v2867
    %v2869 = vpop.f32.mrb[0].mxu0
    %2870 = vmatprep.mubr.f32.mxu0 0.0
    %2871 = vmatmul.mubr.f32.gmra.mrb[0].mxu0 %v2786
    %v2872 = vpop.f32.mrb[0].mxu0
    %v2873 = vadd.f32 0.0, %v2872
    %v2874 = vpop.f32.mrb[0].mxu0
    %2875 = vmatprep.mubr.f32.mxu0 0.0
    %2876 = vmatmul.mubr.f32.gmra.mrb[0].mxu0 %v2789
    %v2877 = vpop.f32.mrb[0].mxu0
    %v2878 = vadd.f32 0.0, %v2877
    %v2879 = vpop.f32.mrb[0].mxu0
    %2880 = vmatprep.mubr.f32.mxu0 0.0
    %2881 = vmatmul.mubr.f32.gmra.mrb[0].mxu0 %v2792
    %v2882 = vpop.f32.mrb[0].mxu0
    %v2883 = vadd.f32 0.0, %v2882
    %v2884 = vpop.f32.mrb[0].mxu0
    %2885 = vdwg.mxu0
    %s2886 = scalar_lea.vmem %s9, 32
    %v2887 = vld [vmem:[%s2886] sm:$0xff]
    %v2888 = vld [vmem:[%s2886 + $0x8] sm:$0xff]
    %v2889 = vld [vmem:[%s2886 + $0x10] sm:$0xff]
    %v2890 = vld [vmem:[%s2886 + $0x18] sm:$0xff]
    %2891 = vrot.lane.b32.xlu0 %v2552, 120
    %v2892 = vpop.permute.xlu0 %2891
    %2893 = vrot.lane.b32.xlu0 %v2557, 120
    %v2894 = vpop.permute.xlu0 %2893
    %2895 = vrot.lane.b32.xlu0 %v2562, 120
    %v2896 = vpop.permute.xlu0 %2895
    %2897 = vrot.lane.b32.xlu0 %v2567, 120
    %v2898 = vpop.permute.xlu0 %2897
    %2899 = vrot.lane.b32.xlu0 %v2572, 120
    %v2900 = vpop.permute.xlu0 %2899
    %2901 = vrot.lane.b32.xlu0 %v2552, 88
    %v2902 = vpop.permute.xlu0 %2901
    %2903 = vrot.lane.b32.xlu0 %v2557, 88
    %v2904 = vpop.permute.xlu0 %2903
    %2905 = vrot.lane.b32.xlu0 %v2562, 88
    %v2906 = vpop.permute.xlu0 %2905
    %2907 = vrot.lane.b32.xlu0 %v2567, 88
    %v2908 = vpop.permute.xlu0 %2907
    %2909 = vrot.lane.b32.xlu0 %v2572, 88
    %v2910 = vpop.permute.xlu0 %2909
    %v2911 = vsel %vm331, %v2892, 0
    %v2913 = vsel %vm331, %v2894, 0
    %v2915 = vsel %vm331, %v2896, 0
    %v2917 = vsel %vm331, %v2898, 0
    %v2919 = vsel %vm331, %v2900, 0
    %v2921 = vsel %vm331, %v2902, 0
    %v2923 = vsel %vm331, %v2904, 0
    %v2925 = vsel %vm331, %v2906, 0
    %v2927 = vsel %vm331, %v2908, 0
    %v2929 = vsel %vm331, %v2910, 0
    %2931 = vmatprep.subr.mxu0 0.0
    %2932 = vmatpush1.xpose.msra.mxu0 %v2921
    %2933 = vmatprep.subr.mxu0 0.0
    %2934 = vmatpush1.xpose.msra.mxu0 %v2923
    %2935 = vmatprep.subr.mxu0 0.0
    %2936 = vmatpush1.xpose.msra.mxu0 %v2925
    %2937 = vmatprep.subr.mxu0 0.0
    %2938 = vmatpush1.xpose.msra.mxu0 %v2927
    %2939 = vmatprep.subr.mxu0 0.0
    %2940 = vmatpush1.xpose.msra.mxu0 %v2929
    %2941 = vmatprep.subr.mxu0 0.0
    %2942 = vmatpush1.xpose.msra.mxu0 0.0
    %2943 = vmatprep.subr.mxu0 0.0
    %2944 = vmatpush1.xpose.msra.mxu0 0.0
    %2945 = vmatprep.subr.mxu0 0.0
    %2946 = vmatpush1.xpose.msra.mxu0 0.0
    %2947 = vmatprep.subr.mxu0 0.0
    %2948 = vmatpush1.xpose.msra.mxu0 0.0
    %2949 = vmatprep.subr.mxu0 0.0
    %2950 = vmatpush1.xpose.msra.mxu0 0.0
    %2951 = vmatprep.subr.mxu0 0.0
    %2952 = vmatpush1.xpose.msra.mxu0 0.0
    %2953 = vmatprep.subr.mxu0 0.0
    %2954 = vmatpush1.xpose.msra.mxu0 0.0
    %2955 = vmatprep.subr.mxu0 0.0
    %2956 = vmatpush1.xpose.msra.mxu0 0.0
    %2957 = vmatprep.subr.mxu0 0.0
    %2958 = vmatpush1.xpose.msra.mxu0 0.0
    %2959 = vmatprep.subr.mxu0 0.0
    %2960 = vmatpush1.xpose.msra.mxu0 0.0
    %2961 = vmatprep.subr.mxu0 0.0
    %2962 = vmatpush1.xpose.msra.mxu0 0.0
    %2963 = vmatprep.subr.mxu0 0.0
    %2964 = vmatpush1.xpose.msra.mxu0 0.0
    %2965 = vmatprep.subr.mxu0 0.0
    %2966 = vmatpush1.xpose.msra.mxu0 0.0
    %2967 = vmatprep.subr.mxu0 0.0
    %2968 = vmatpush1.xpose.msra.mxu0 0.0
    %2969 = vmatprep.subr.mxu0 0.0
    %2970 = vmatpush1.xpose.msra.mxu0 0.0
    %2971 = vmatprep.subr.mxu0 0.0
    %2972 = vmatpush1.xpose.msra.mxu0 0.0
    %2973 = vmatprep.subr.mxu0 0.0
    %2974 = vmatpush1.xpose.msra.mxu0 0.0
    %2975 = vmatprep.subr.mxu0 0.0
    %2976 = vmatpush1.xpose.msra.mxu0 0.0
    %2977 = vmatprep.subr.mxu0 0.0
    %2978 = vmatpush1.xpose.msra.mxu0 0.0
    %2979 = vmatprep.subr.mxu0 0.0
    %2980 = vmatpush1.xpose.msra.mxu0 0.0
    %2981 = vmatprep.subr.mxu0 0.0
    %2982 = vmatpush1.xpose.msra.mxu0 0.0
    %2983 = vmatprep.subr.mxu0 0.0
    %2984 = vmatpush1.xpose.msra.mxu0 0.0
    %2985 = vmatprep.subr.mxu0 0.0
    %2986 = vmatpush1.xpose.msra.mxu0 0.0
    %2987 = vmatprep.subr.mxu0 0.0
    %2988 = vmatpush1.xpose.msra.mxu0 0.0
    %2989 = vmatprep.subr.mxu0 0.0
    %2990 = vmatpush1.xpose.msra.mxu0 0.0
    %2991 = vmatprep.subr.mxu0 0.0
    %2992 = vmatpush1.xpose.msra.mxu0 0.0
    %2993 = vmatprep.subr.mxu0 0.0
    %2994 = vmatpush1.xpose.msra.mxu0 0.0
    %2995 = vmatprep.mubr.f32.mxu0 0.0
    %2996 = vmatmul.mubr.f32.gmra.mrb[0].mxu0 %v2911
    %v2997 = vpop.f32.mrb[0].mxu0
    %v2998 = vadd.f32 0.0, %v2997
    %v2999 = vpop.f32.mrb[0].mxu0
    %3000 = vmatprep.mubr.f32.mxu0 0.0
    %3001 = vmatmul.mubr.f32.gmra.mrb[0].mxu0 %v2913
    %v3002 = vpop.f32.mrb[0].mxu0
    %v3003 = vadd.f32 0.0, %v3002
    %v3004 = vpop.f32.mrb[0].mxu0
    %3005 = vmatprep.mubr.f32.mxu0 0.0
    %3006 = vmatmul.mubr.f32.gmra.mrb[0].mxu0 %v2915
    %v3007 = vpop.f32.mrb[0].mxu0
    %v3008 = vadd.f32 0.0, %v3007
    %v3009 = vpop.f32.mrb[0].mxu0
    %3010 = vmatprep.mubr.f32.mxu0 0.0
    %3011 = vmatmul.mubr.f32.gmra.mrb[0].mxu0 %v2917
    %v3012 = vpop.f32.mrb[0].mxu0
    %v3013 = vadd.f32 0.0, %v3012
    %v3014 = vpop.f32.mrb[0].mxu0
    %3015 = vmatprep.mubr.f32.mxu0 0.0
    %3016 = vmatmul.mubr.f32.gmra.mrb[0].mxu0 %v2919
    %v3017 = vpop.f32.mrb[0].mxu0
    %v3018 = vadd.f32 0.0, %v3017
    %v3019 = vpop.f32.mrb[0].mxu0
    %3020 = vdwg.mxu0
    %v3021 = vmul.f32 %v2998, 0.35355338
    %v3022 = vmul.f32 %v3003, 0.35355338
    %v3023 = vmul.f32 %v3008, 0.35355338
    %v3024 = vmul.f32 %v3013, 0.35355338
    %v3025 = vmul.f32 %v3018, 0.35355338
    %v3026 = vadd.f32 %v3021, %v194
    %v3027 = vadd.f32 %v3022, %v195
    %v3028 = vadd.f32 %v3023, %v196
    %v3029 = vadd.f32 %v3024, %v197
    %v3030 = vadd.f32 %v3025, %v198
    %v3031 = vsel %vm452, %v3026, -inf
    %3032 = vmax.xlane.f32.xlu0 %v3031
    %v3033 = vpop.xlane.xlu0 %3032
    %v3034 = vsel %vm452, %v3027, -inf
    %3035 = vmax.xlane.f32.xlu0 %v3034
    %v3036 = vpop.xlane.xlu0 %3035
    %v3037 = vsel %vm452, %v3028, -inf
    %3038 = vmax.xlane.f32.xlu0 %v3037
    %v3039 = vpop.xlane.xlu0 %3038
    %v3040 = vsel %vm452, %v3029, -inf
    %3041 = vmax.xlane.f32.xlu0 %v3040
    %v3042 = vpop.xlane.xlu0 %3041
    %v3043 = vsel %vm465, %v3030, -inf
    %3044 = vmax.xlane.f32.xlu0 %v3043
    %v3045 = vpop.xlane.xlu0 %3044
    %v3046 = vsub.f32 %v3026, %v3033
    %v3047 = vsub.f32 %v3027, %v3036
    %v3048 = vsub.f32 %v3028, %v3039
    %v3049 = vsub.f32 %v3029, %v3042
    %v3050 = vsub.f32 %v3030, %v3045
    %v3051 = vmul.f32 %v3046, 1.442695
    %v3052 = vpow.pop %v3051
    %v3053 = vmul.f32 %v3047, 1.442695
    %v3054 = vpow.pop %v3053
    %v3055 = vmul.f32 %v3048, 1.442695
    %v3056 = vpow.pop %v3055
    %v3057 = vmul.f32 %v3049, 1.442695
    %v3058 = vpow.pop %v3057
    %v3059 = vmul.f32 %v3050, 1.442695
    %v3060 = vpow.pop %v3059
    %v3061 = vsel %vm452, %v3052, 0.0
    %3062 = vadd.xlane.f32.xlu0 %v3061
    %v3063 = vpop.xlane.xlu0 %3062
    %v3064 = vsel %vm452, %v3054, 0.0
    %3065 = vadd.xlane.f32.xlu0 %v3064
    %v3066 = vpop.xlane.xlu0 %3065
    %v3067 = vsel %vm452, %v3056, 0.0
    %3068 = vadd.xlane.f32.xlu0 %v3067
    %v3069 = vpop.xlane.xlu0 %3068
    %v3070 = vsel %vm452, %v3058, 0.0
    %3071 = vadd.xlane.f32.xlu0 %v3070
    %v3072 = vpop.xlane.xlu0 %3071
    %v3073 = vsel %vm465, %v3060, 0.0
    %3074 = vadd.xlane.f32.xlu0 %v3073
    %v3075 = vpop.xlane.xlu0 %3074
    %v3076 = vrcp.pop %v3063
    %v3077 = vrcp.pop %v3066
    %v3078 = vrcp.pop %v3069
    %v3079 = vrcp.pop %v3072
    %v3080 = vrcp.pop %v3075
    %v3081 = vmul.f32 %v3052, %v3076
    %v3082 = vmul.f32 %v3054, %v3077
    %v3083 = vmul.f32 %v3056, %v3078
    %v3084 = vmul.f32 %v3058, %v3079
    %v3085 = vmul.f32 %v3060, %v3080
    %3086 = vrot.lane.b32.xlu0 %v2552, 56
    %v3087 = vpop.permute.xlu0 %3086
    %3088 = vrot.lane.b32.xlu0 %v2557, 56
    %v3089 = vpop.permute.xlu0 %3088
    %3090 = vrot.lane.b32.xlu0 %v2562, 56
    %v3091 = vpop.permute.xlu0 %3090
    %3092 = vrot.lane.b32.xlu0 %v2567, 56
    %v3093 = vpop.permute.xlu0 %3092
    %3094 = vrot.lane.b32.xlu0 %v2572, 56
    %v3095 = vpop.permute.xlu0 %3094
    %v3101 = vsel %vm452, %v3081, 0
    %v3104 = vsel %vm452, %v3082, 0
    %v3107 = vsel %vm452, %v3083, 0
    %v3110 = vsel %vm452, %v3084, 0
    %v3113 = vsel %vm452, %v3085, 0
    %v3115 = vsel %vm538, %v3095, 0
    %3117 = vmatprep.subr.mxu0 0.0
    %3118 = vmatpush1.msra.mxu0 %v3087
    %3119 = vmatprep.subr.mxu0 0.0
    %3120 = vmatpush1.msra.mxu0 %v3089
    %3121 = vmatprep.subr.mxu0 0.0
    %3122 = vmatpush1.msra.mxu0 %v3091
    %3123 = vmatprep.subr.mxu0 0.0
    %3124 = vmatpush1.msra.mxu0 %v3093
    %3125 = vmatprep.subr.mxu0 0.0
    %3126 = vmatpush1.msra.mxu0 %v3115
    %3127 = vmatprep.subr.mxu0 0.0
    %3128 = vmatpush1.msra.mxu0 0.0
    %3129 = vmatprep.subr.mxu0 0.0
    %3130 = vmatpush1.msra.mxu0 0.0
    %3131 = vmatprep.subr.mxu0 0.0
    %3132 = vmatpush1.msra.mxu0 0.0
    %3133 = vmatprep.subr.mxu0 0.0
    %3134 = vmatpush1.msra.mxu0 0.0
    %3135 = vmatprep.subr.mxu0 0.0
    %3136 = vmatpush1.msra.mxu0 0.0
    %3137 = vmatprep.subr.mxu0 0.0
    %3138 = vmatpush1.msra.mxu0 0.0
    %3139 = vmatprep.subr.mxu0 0.0
    %3140 = vmatpush1.msra.mxu0 0.0
    %3141 = vmatprep.subr.mxu0 0.0
    %3142 = vmatpush1.msra.mxu0 0.0
    %3143 = vmatprep.subr.mxu0 0.0
    %3144 = vmatpush1.msra.mxu0 0.0
    %3145 = vmatprep.subr.mxu0 0.0
    %3146 = vmatpush1.msra.mxu0 0.0
    %3147 = vmatprep.subr.mxu0 0.0
    %3148 = vmatpush1.msra.mxu0 0.0
    %3149 = vmatprep.subr.mxu0 0.0
    %3150 = vmatpush1.msra.mxu0 0.0
    %3151 = vmatprep.subr.mxu0 0.0
    %3152 = vmatpush1.msra.mxu0 0.0
    %3153 = vmatprep.subr.mxu0 0.0
    %3154 = vmatpush1.msra.mxu0 0.0
    %3155 = vmatprep.subr.mxu0 0.0
    %3156 = vmatpush1.msra.mxu0 0.0
    %3157 = vmatprep.subr.mxu0 0.0
    %3158 = vmatpush1.msra.mxu0 0.0
    %3159 = vmatprep.subr.mxu0 0.0
    %3160 = vmatpush1.msra.mxu0 0.0
    %3161 = vmatprep.subr.mxu0 0.0
    %3162 = vmatpush1.msra.mxu0 0.0
    %3163 = vmatprep.subr.mxu0 0.0
    %3164 = vmatpush1.msra.mxu0 0.0
    %3165 = vmatprep.subr.mxu0 0.0
    %3166 = vmatpush1.msra.mxu0 0.0
    %3167 = vmatprep.subr.mxu0 0.0
    %3168 = vmatpush1.msra.mxu0 0.0
    %3169 = vmatprep.subr.mxu0 0.0
    %3170 = vmatpush1.msra.mxu0 0.0
    %3171 = vmatprep.subr.mxu0 0.0
    %3172 = vmatpush1.msra.mxu0 0.0
    %3173 = vmatprep.subr.mxu0 0.0
    %3174 = vmatpush1.msra.mxu0 0.0
    %3175 = vmatprep.subr.mxu0 0.0
    %3176 = vmatpush1.msra.mxu0 0.0
    %3177 = vmatprep.subr.mxu0 0.0
    %3178 = vmatpush1.msra.mxu0 0.0
    %3179 = vmatprep.subr.mxu0 0.0
    %3180 = vmatpush1.msra.mxu0 0.0
    %3181 = vmatprep.mubr.f32.mxu0 0.0
    %3182 = vmatmul.mubr.f32.gmra.mrb[0].mxu0 %v3101
    %v3183 = vpop.f32.mrb[0].mxu0
    %v3184 = vadd.f32 0.0, %v3183
    %v3185 = vpop.f32.mrb[0].mxu0
    %3186 = vmatprep.mubr.f32.mxu0 0.0
    %3187 = vmatmul.mubr.f32.gmra.mrb[0].mxu0 %v3104
    %v3188 = vpop.f32.mrb[0].mxu0
    %v3189 = vadd.f32 0.0, %v3188
    %v3190 = vpop.f32.mrb[0].mxu0
    %3191 = vmatprep.mubr.f32.mxu0 0.0
    %3192 = vmatmul.mubr.f32.gmra.mrb[0].mxu0 %v3107
    %v3193 = vpop.f32.mrb[0].mxu0
    %v3194 = vadd.f32 0.0, %v3193
    %v3195 = vpop.f32.mrb[0].mxu0
    %3196 = vmatprep.mubr.f32.mxu0 0.0
    %3197 = vmatmul.mubr.f32.gmra.mrb[0].mxu0 %v3110
    %v3198 = vpop.f32.mrb[0].mxu0
    %v3199 = vadd.f32 0.0, %v3198
    %v3200 = vpop.f32.mrb[0].mxu0
    %3201 = vmatprep.mubr.f32.mxu0 0.0
    %3202 = vmatmul.mubr.f32.gmra.mrb[0].mxu0 %v3113
    %v3203 = vpop.f32.mrb[0].mxu0
    %v3204 = vadd.f32 0.0, %v3203
    %v3205 = vpop.f32.mrb[0].mxu0
    %3206 = vdwg.mxu0
    %v3208 = vsel %vm331, %v3184, 0
    %v3211 = vsel %vm331, %v3189, 0
    %v3214 = vsel %vm331, %v3194, 0
    %v3217 = vsel %vm331, %v3199, 0
    %v3220 = vsel %vm331, %v3204, 0
    %3222 = vmatprep.subr.mxu0 0.0
    %3223 = vmatpush1.msra.mxu0 %v2888
    %3224 = vmatprep.subr.mxu0 0.0
    %3225 = vmatpush1.msra.mxu0 0.0
    %3226 = vmatprep.subr.mxu0 0.0
    %3227 = vmatpush1.msra.mxu0 0.0
    %3228 = vmatprep.subr.mxu0 0.0
    %3229 = vmatpush1.msra.mxu0 0.0
    %3230 = vmatprep.subr.mxu0 0.0
    %3231 = vmatpush1.msra.mxu0 0.0
    %3232 = vmatprep.subr.mxu0 0.0
    %3233 = vmatpush1.msra.mxu0 0.0
    %3234 = vmatprep.subr.mxu0 0.0
    %3235 = vmatpush1.msra.mxu0 0.0
    %3236 = vmatprep.subr.mxu0 0.0
    %3237 = vmatpush1.msra.mxu0 0.0
    %3238 = vmatprep.subr.mxu0 0.0
    %3239 = vmatpush1.msra.mxu0 0.0
    %3240 = vmatprep.subr.mxu0 0.0
    %3241 = vmatpush1.msra.mxu0 0.0
    %3242 = vmatprep.subr.mxu0 0.0
    %3243 = vmatpush1.msra.mxu0 0.0
    %3244 = vmatprep.subr.mxu0 0.0
    %3245 = vmatpush1.msra.mxu0 0.0
    %3246 = vmatprep.subr.mxu0 0.0
    %3247 = vmatpush1.msra.mxu0 0.0
    %3248 = vmatprep.subr.mxu0 0.0
    %3249 = vmatpush1.msra.mxu0 0.0
    %3250 = vmatprep.subr.mxu0 0.0
    %3251 = vmatpush1.msra.mxu0 0.0
    %3252 = vmatprep.subr.mxu0 0.0
    %3253 = vmatpush1.msra.mxu0 0.0
    %3254 = vmatprep.subr.mxu0 0.0
    %3255 = vmatpush1.msra.mxu0 0.0
    %3256 = vmatprep.subr.mxu0 0.0
    %3257 = vmatpush1.msra.mxu0 0.0
    %3258 = vmatprep.subr.mxu0 0.0
    %3259 = vmatpush1.msra.mxu0 0.0
    %3260 = vmatprep.subr.mxu0 0.0
    %3261 = vmatpush1.msra.mxu0 0.0
    %3262 = vmatprep.subr.mxu0 0.0
    %3263 = vmatpush1.msra.mxu0 0.0
    %3264 = vmatprep.subr.mxu0 0.0
    %3265 = vmatpush1.msra.mxu0 0.0
    %3266 = vmatprep.subr.mxu0 0.0
    %3267 = vmatpush1.msra.mxu0 0.0
    %3268 = vmatprep.subr.mxu0 0.0
    %3269 = vmatpush1.msra.mxu0 0.0
    %3270 = vmatprep.subr.mxu0 0.0
    %3271 = vmatpush1.msra.mxu0 0.0
    %3272 = vmatprep.subr.mxu0 0.0
    %3273 = vmatpush1.msra.mxu0 0.0
    %3274 = vmatprep.subr.mxu0 0.0
    %3275 = vmatpush1.msra.mxu0 0.0
    %3276 = vmatprep.subr.mxu0 0.0
    %3277 = vmatpush1.msra.mxu0 0.0
    %3278 = vmatprep.subr.mxu0 0.0
    %3279 = vmatpush1.msra.mxu0 0.0
    %3280 = vmatprep.subr.mxu0 0.0
    %3281 = vmatpush1.msra.mxu0 0.0
    %3282 = vmatprep.subr.mxu0 0.0
    %3283 = vmatpush1.msra.mxu0 0.0
    %3284 = vmatprep.subr.mxu0 0.0
    %3285 = vmatpush1.msra.mxu0 0.0
    %3286 = vmatprep.mubr.f32.mxu0 0.0
    %3287 = vmatmul.mubr.f32.gmra.mrb[0].mxu0 %v3208
    %v3288 = vpop.f32.mrb[0].mxu0
    %v3289 = vadd.f32 0.0, %v3288
    %v3290 = vpop.f32.mrb[0].mxu0
    %3291 = vmatprep.mubr.f32.mxu0 0.0
    %3292 = vmatmul.mubr.f32.gmra.mrb[0].mxu0 %v3211
    %v3293 = vpop.f32.mrb[0].mxu0
    %v3294 = vadd.f32 0.0, %v3293
    %v3295 = vpop.f32.mrb[0].mxu0
    %3296 = vmatprep.mubr.f32.mxu0 0.0
    %3297 = vmatmul.mubr.f32.gmra.mrb[0].mxu0 %v3214
    %v3298 = vpop.f32.mrb[0].mxu0
    %v3299 = vadd.f32 0.0, %v3298
    %v3300 = vpop.f32.mrb[0].mxu0
    %3301 = vmatprep.mubr.f32.mxu0 0.0
    %3302 = vmatmul.mubr.f32.gmra.mrb[0].mxu0 %v3217
    %v3303 = vpop.f32.mrb[0].mxu0
    %v3304 = vadd.f32 0.0, %v3303
    %v3305 = vpop.f32.mrb[0].mxu0
    %3306 = vmatprep.mubr.f32.mxu0 0.0
    %3307 = vmatmul.mubr.f32.gmra.mrb[0].mxu0 %v3220
    %v3308 = vpop.f32.mrb[0].mxu0
    %v3309 = vadd.f32 0.0, %v3308
    %v3310 = vpop.f32.mrb[0].mxu0
    %3311 = vdwg.mxu0
    %v3313 = vsel %vm331, %v2863, 0
    %v3316 = vsel %vm331, %v2868, 0
    %v3319 = vsel %vm331, %v2873, 0
    %v3322 = vsel %vm331, %v2878, 0
    %v3325 = vsel %vm331, %v2883, 0
    %3327 = vmatprep.subr.mxu0 0.0
    %3328 = vmatpush1.msra.mxu0 %v2887
    %3329 = vmatprep.subr.mxu0 0.0
    %3330 = vmatpush1.msra.mxu0 0.0
    %3331 = vmatprep.subr.mxu0 0.0
    %3332 = vmatpush1.msra.mxu0 0.0
    %3333 = vmatprep.subr.mxu0 0.0
    %3334 = vmatpush1.msra.mxu0 0.0
    %3335 = vmatprep.subr.mxu0 0.0
    %3336 = vmatpush1.msra.mxu0 0.0
    %3337 = vmatprep.subr.mxu0 0.0
    %3338 = vmatpush1.msra.mxu0 0.0
    %3339 = vmatprep.subr.mxu0 0.0
    %3340 = vmatpush1.msra.mxu0 0.0
    %3341 = vmatprep.subr.mxu0 0.0
    %3342 = vmatpush1.msra.mxu0 0.0
    %3343 = vmatprep.subr.mxu0 0.0
    %3344 = vmatpush1.msra.mxu0 0.0
    %3345 = vmatprep.subr.mxu0 0.0
    %3346 = vmatpush1.msra.mxu0 0.0
    %3347 = vmatprep.subr.mxu0 0.0
    %3348 = vmatpush1.msra.mxu0 0.0
    %3349 = vmatprep.subr.mxu0 0.0
    %3350 = vmatpush1.msra.mxu0 0.0
    %3351 = vmatprep.subr.mxu0 0.0
    %3352 = vmatpush1.msra.mxu0 0.0
    %3353 = vmatprep.subr.mxu0 0.0
    %3354 = vmatpush1.msra.mxu0 0.0
    %3355 = vmatprep.subr.mxu0 0.0
    %3356 = vmatpush1.msra.mxu0 0.0
    %3357 = vmatprep.subr.mxu0 0.0
    %3358 = vmatpush1.msra.mxu0 0.0
    %3359 = vmatprep.subr.mxu0 0.0
    %3360 = vmatpush1.msra.mxu0 0.0
    %3361 = vmatprep.subr.mxu0 0.0
    %3362 = vmatpush1.msra.mxu0 0.0
    %3363 = vmatprep.subr.mxu0 0.0
    %3364 = vmatpush1.msra.mxu0 0.0
    %3365 = vmatprep.subr.mxu0 0.0
    %3366 = vmatpush1.msra.mxu0 0.0
    %3367 = vmatprep.subr.mxu0 0.0
    %3368 = vmatpush1.msra.mxu0 0.0
    %3369 = vmatprep.subr.mxu0 0.0
    %3370 = vmatpush1.msra.mxu0 0.0
    %3371 = vmatprep.subr.mxu0 0.0
    %3372 = vmatpush1.msra.mxu0 0.0
    %3373 = vmatprep.subr.mxu0 0.0
    %3374 = vmatpush1.msra.mxu0 0.0
    %3375 = vmatprep.subr.mxu0 0.0
    %3376 = vmatpush1.msra.mxu0 0.0
    %3377 = vmatprep.subr.mxu0 0.0
    %3378 = vmatpush1.msra.mxu0 0.0
    %3379 = vmatprep.subr.mxu0 0.0
    %3380 = vmatpush1.msra.mxu0 0.0
    %3381 = vmatprep.subr.mxu0 0.0
    %3382 = vmatpush1.msra.mxu0 0.0
    %3383 = vmatprep.subr.mxu0 0.0
    %3384 = vmatpush1.msra.mxu0 0.0
    %3385 = vmatprep.subr.mxu0 0.0
    %3386 = vmatpush1.msra.mxu0 0.0
    %3387 = vmatprep.subr.mxu0 0.0
    %3388 = vmatpush1.msra.mxu0 0.0
    %3389 = vmatprep.subr.mxu0 0.0
    %3390 = vmatpush1.msra.mxu0 0.0
    %3391 = vmatprep.mubr.f32.mxu0 0.0
    %3392 = vmatmul.mubr.f32.gmra.mrb[0].mxu0 %v3313
    %v3393 = vpop.f32.mrb[0].mxu0
    %v3394 = vadd.f32 %v3289, %v3393
    %v3395 = vpop.f32.mrb[0].mxu0
    %3396 = vmatprep.mubr.f32.mxu0 0.0
    %3397 = vmatmul.mubr.f32.gmra.mrb[0].mxu0 %v3316
    %v3398 = vpop.f32.mrb[0].mxu0
    %v3399 = vadd.f32 %v3294, %v3398
    %v3400 = vpop.f32.mrb[0].mxu0
    %3401 = vmatprep.mubr.f32.mxu0 0.0
    %3402 = vmatmul.mubr.f32.gmra.mrb[0].mxu0 %v3319
    %v3403 = vpop.f32.mrb[0].mxu0
    %v3404 = vadd.f32 %v3299, %v3403
    %v3405 = vpop.f32.mrb[0].mxu0
    %3406 = vmatprep.mubr.f32.mxu0 0.0
    %3407 = vmatmul.mubr.f32.gmra.mrb[0].mxu0 %v3322
    %v3408 = vpop.f32.mrb[0].mxu0
    %v3409 = vadd.f32 %v3304, %v3408
    %v3410 = vpop.f32.mrb[0].mxu0
    %3411 = vmatprep.mubr.f32.mxu0 0.0
    %3412 = vmatmul.mubr.f32.gmra.mrb[0].mxu0 %v3325
    %v3413 = vpop.f32.mrb[0].mxu0
    %v3414 = vadd.f32 %v3309, %v3413
    %v3415 = vpop.f32.mrb[0].mxu0
    %3416 = vdwg.mxu0
    %3417 = vrot.lane.b32.xlu0 %v2552, 112
    %v3418 = vpop.permute.xlu0 %3417
    %3419 = vrot.lane.b32.xlu0 %v2557, 112
    %v3420 = vpop.permute.xlu0 %3419
    %3421 = vrot.lane.b32.xlu0 %v2562, 112
    %v3422 = vpop.permute.xlu0 %3421
    %3423 = vrot.lane.b32.xlu0 %v2567, 112
    %v3424 = vpop.permute.xlu0 %3423
    %3425 = vrot.lane.b32.xlu0 %v2572, 112
    %v3426 = vpop.permute.xlu0 %3425
    %3427 = vrot.lane.b32.xlu0 %v2552, 80
    %v3428 = vpop.permute.xlu0 %3427
    %3429 = vrot.lane.b32.xlu0 %v2557, 80
    %v3430 = vpop.permute.xlu0 %3429
    %3431 = vrot.lane.b32.xlu0 %v2562, 80
    %v3432 = vpop.permute.xlu0 %3431
    %3433 = vrot.lane.b32.xlu0 %v2567, 80
    %v3434 = vpop.permute.xlu0 %3433
    %3435 = vrot.lane.b32.xlu0 %v2572, 80
    %v3436 = vpop.permute.xlu0 %3435
    %v3437 = vsel %vm331, %v3418, 0
    %v3439 = vsel %vm331, %v3420, 0
    %v3441 = vsel %vm331, %v3422, 0
    %v3443 = vsel %vm331, %v3424, 0
    %v3445 = vsel %vm331, %v3426, 0
    %v3447 = vsel %vm331, %v3428, 0
    %v3449 = vsel %vm331, %v3430, 0
    %v3451 = vsel %vm331, %v3432, 0
    %v3453 = vsel %vm331, %v3434, 0
    %v3455 = vsel %vm331, %v3436, 0
    %3457 = vmatprep.subr.mxu0 0.0
    %3458 = vmatpush1.xpose.msra.mxu0 %v3447
    %3459 = vmatprep.subr.mxu0 0.0
    %3460 = vmatpush1.xpose.msra.mxu0 %v3449
    %3461 = vmatprep.subr.mxu0 0.0
    %3462 = vmatpush1.xpose.msra.mxu0 %v3451
    %3463 = vmatprep.subr.mxu0 0.0
    %3464 = vmatpush1.xpose.msra.mxu0 %v3453
    %3465 = vmatprep.subr.mxu0 0.0
    %3466 = vmatpush1.xpose.msra.mxu0 %v3455
    %3467 = vmatprep.subr.mxu0 0.0
    %3468 = vmatpush1.xpose.msra.mxu0 0.0
    %3469 = vmatprep.subr.mxu0 0.0
    %3470 = vmatpush1.xpose.msra.mxu0 0.0
    %3471 = vmatprep.subr.mxu0 0.0
    %3472 = vmatpush1.xpose.msra.mxu0 0.0
    %3473 = vmatprep.subr.mxu0 0.0
    %3474 = vmatpush1.xpose.msra.mxu0 0.0
    %3475 = vmatprep.subr.mxu0 0.0
    %3476 = vmatpush1.xpose.msra.mxu0 0.0
    %3477 = vmatprep.subr.mxu0 0.0
    %3478 = vmatpush1.xpose.msra.mxu0 0.0
    %3479 = vmatprep.subr.mxu0 0.0
    %3480 = vmatpush1.xpose.msra.mxu0 0.0
    %3481 = vmatprep.subr.mxu0 0.0
    %3482 = vmatpush1.xpose.msra.mxu0 0.0
    %3483 = vmatprep.subr.mxu0 0.0
    %3484 = vmatpush1.xpose.msra.mxu0 0.0
    %3485 = vmatprep.subr.mxu0 0.0
    %3486 = vmatpush1.xpose.msra.mxu0 0.0
    %3487 = vmatprep.subr.mxu0 0.0
    %3488 = vmatpush1.xpose.msra.mxu0 0.0
    %3489 = vmatprep.subr.mxu0 0.0
    %3490 = vmatpush1.xpose.msra.mxu0 0.0
    %3491 = vmatprep.subr.mxu0 0.0
    %3492 = vmatpush1.xpose.msra.mxu0 0.0
    %3493 = vmatprep.subr.mxu0 0.0
    %3494 = vmatpush1.xpose.msra.mxu0 0.0
    %3495 = vmatprep.subr.mxu0 0.0
    %3496 = vmatpush1.xpose.msra.mxu0 0.0
    %3497 = vmatprep.subr.mxu0 0.0
    %3498 = vmatpush1.xpose.msra.mxu0 0.0
    %3499 = vmatprep.subr.mxu0 0.0
    %3500 = vmatpush1.xpose.msra.mxu0 0.0
    %3501 = vmatprep.subr.mxu0 0.0
    %3502 = vmatpush1.xpose.msra.mxu0 0.0
    %3503 = vmatprep.subr.mxu0 0.0
    %3504 = vmatpush1.xpose.msra.mxu0 0.0
    %3505 = vmatprep.subr.mxu0 0.0
    %3506 = vmatpush1.xpose.msra.mxu0 0.0
    %3507 = vmatprep.subr.mxu0 0.0
    %3508 = vmatpush1.xpose.msra.mxu0 0.0
    %3509 = vmatprep.subr.mxu0 0.0
    %3510 = vmatpush1.xpose.msra.mxu0 0.0
    %3511 = vmatprep.subr.mxu0 0.0
    %3512 = vmatpush1.xpose.msra.mxu0 0.0
    %3513 = vmatprep.subr.mxu0 0.0
    %3514 = vmatpush1.xpose.msra.mxu0 0.0
    %3515 = vmatprep.subr.mxu0 0.0
    %3516 = vmatpush1.xpose.msra.mxu0 0.0
    %3517 = vmatprep.subr.mxu0 0.0
    %3518 = vmatpush1.xpose.msra.mxu0 0.0
    %3519 = vmatprep.subr.mxu0 0.0
    %3520 = vmatpush1.xpose.msra.mxu0 0.0
    %3521 = vmatprep.mubr.f32.mxu0 0.0
    %3522 = vmatmul.mubr.f32.gmra.mrb[0].mxu0 %v3437
    %v3523 = vpop.f32.mrb[0].mxu0
    %v3524 = vadd.f32 0.0, %v3523
    %v3525 = vpop.f32.mrb[0].mxu0
    %3526 = vmatprep.mubr.f32.mxu0 0.0
    %3527 = vmatmul.mubr.f32.gmra.mrb[0].mxu0 %v3439
    %v3528 = vpop.f32.mrb[0].mxu0
    %v3529 = vadd.f32 0.0, %v3528
    %v3530 = vpop.f32.mrb[0].mxu0
    %3531 = vmatprep.mubr.f32.mxu0 0.0
    %3532 = vmatmul.mubr.f32.gmra.mrb[0].mxu0 %v3441
    %v3533 = vpop.f32.mrb[0].mxu0
    %v3534 = vadd.f32 0.0, %v3533
    %v3535 = vpop.f32.mrb[0].mxu0
    %3536 = vmatprep.mubr.f32.mxu0 0.0
    %3537 = vmatmul.mubr.f32.gmra.mrb[0].mxu0 %v3443
    %v3538 = vpop.f32.mrb[0].mxu0
    %v3539 = vadd.f32 0.0, %v3538
    %v3540 = vpop.f32.mrb[0].mxu0
    %3541 = vmatprep.mubr.f32.mxu0 0.0
    %3542 = vmatmul.mubr.f32.gmra.mrb[0].mxu0 %v3445
    %v3543 = vpop.f32.mrb[0].mxu0
    %v3544 = vadd.f32 0.0, %v3543
    %v3545 = vpop.f32.mrb[0].mxu0
    %3546 = vdwg.mxu0
    %v3547 = vmul.f32 %v3524, 0.35355338
    %v3548 = vmul.f32 %v3529, 0.35355338
    %v3549 = vmul.f32 %v3534, 0.35355338
    %v3550 = vmul.f32 %v3539, 0.35355338
    %v3551 = vmul.f32 %v3544, 0.35355338
    %v3552 = vadd.f32 %v3547, %v194
    %v3553 = vadd.f32 %v3548, %v195
    %v3554 = vadd.f32 %v3549, %v196
    %v3555 = vadd.f32 %v3550, %v197
    %v3556 = vadd.f32 %v3551, %v198
    %v3557 = vsel %vm452, %v3552, -inf
    %3558 = vmax.xlane.f32.xlu0 %v3557
    %v3559 = vpop.xlane.xlu0 %3558
    %v3560 = vsel %vm452, %v3553, -inf
    %3561 = vmax.xlane.f32.xlu0 %v3560
    %v3562 = vpop.xlane.xlu0 %3561
    %v3563 = vsel %vm452, %v3554, -inf
    %3564 = vmax.xlane.f32.xlu0 %v3563
    %v3565 = vpop.xlane.xlu0 %3564
    %v3566 = vsel %vm452, %v3555, -inf
    %3567 = vmax.xlane.f32.xlu0 %v3566
    %v3568 = vpop.xlane.xlu0 %3567
    %v3569 = vsel %vm465, %v3556, -inf
    %3570 = vmax.xlane.f32.xlu0 %v3569
    %v3571 = vpop.xlane.xlu0 %3570
    %v3572 = vsub.f32 %v3552, %v3559
    %v3573 = vsub.f32 %v3553, %v3562
    %v3574 = vsub.f32 %v3554, %v3565
    %v3575 = vsub.f32 %v3555, %v3568
    %v3576 = vsub.f32 %v3556, %v3571
    %v3577 = vmul.f32 %v3572, 1.442695
    %v3578 = vpow.pop %v3577
    %v3579 = vmul.f32 %v3573, 1.442695
    %v3580 = vpow.pop %v3579
    %v3581 = vmul.f32 %v3574, 1.442695
    %v3582 = vpow.pop %v3581
    %v3583 = vmul.f32 %v3575, 1.442695
    %v3584 = vpow.pop %v3583
    %v3585 = vmul.f32 %v3576, 1.442695
    %v3586 = vpow.pop %v3585
    %v3587 = vsel %vm452, %v3578, 0.0
    %3588 = vadd.xlane.f32.xlu0 %v3587
    %v3589 = vpop.xlane.xlu0 %3588
    %v3590 = vsel %vm452, %v3580, 0.0
    %3591 = vadd.xlane.f32.xlu0 %v3590
    %v3592 = vpop.xlane.xlu0 %3591
    %v3593 = vsel %vm452, %v3582, 0.0
    %3594 = vadd.xlane.f32.xlu0 %v3593
    %v3595 = vpop.xlane.xlu0 %3594
    %v3596 = vsel %vm452, %v3584, 0.0
    %3597 = vadd.xlane.f32.xlu0 %v3596
    %v3598 = vpop.xlane.xlu0 %3597
    %v3599 = vsel %vm465, %v3586, 0.0
    %3600 = vadd.xlane.f32.xlu0 %v3599
    %v3601 = vpop.xlane.xlu0 %3600
    %v3602 = vrcp.pop %v3589
    %v3603 = vrcp.pop %v3592
    %v3604 = vrcp.pop %v3595
    %v3605 = vrcp.pop %v3598
    %v3606 = vrcp.pop %v3601
    %v3607 = vmul.f32 %v3578, %v3602
    %v3608 = vmul.f32 %v3580, %v3603
    %v3609 = vmul.f32 %v3582, %v3604
    %v3610 = vmul.f32 %v3584, %v3605
    %v3611 = vmul.f32 %v3586, %v3606
    %3612 = vrot.lane.b32.xlu0 %v2552, 48
    %v3613 = vpop.permute.xlu0 %3612
    %3614 = vrot.lane.b32.xlu0 %v2557, 48
    %v3615 = vpop.permute.xlu0 %3614
    %3616 = vrot.lane.b32.xlu0 %v2562, 48
    %v3617 = vpop.permute.xlu0 %3616
    %3618 = vrot.lane.b32.xlu0 %v2567, 48
    %v3619 = vpop.permute.xlu0 %3618
    %3620 = vrot.lane.b32.xlu0 %v2572, 48
    %v3621 = vpop.permute.xlu0 %3620
    %v3627 = vsel %vm452, %v3607, 0
    %v3630 = vsel %vm452, %v3608, 0
    %v3633 = vsel %vm452, %v3609, 0
    %v3636 = vsel %vm452, %v3610, 0
    %v3639 = vsel %vm452, %v3611, 0
    %v3641 = vsel %vm538, %v3621, 0
    %3643 = vmatprep.subr.mxu0 0.0
    %3644 = vmatpush1.msra.mxu0 %v3613
    %3645 = vmatprep.subr.mxu0 0.0
    %3646 = vmatpush1.msra.mxu0 %v3615
    %3647 = vmatprep.subr.mxu0 0.0
    %3648 = vmatpush1.msra.mxu0 %v3617
    %3649 = vmatprep.subr.mxu0 0.0
    %3650 = vmatpush1.msra.mxu0 %v3619
    %3651 = vmatprep.subr.mxu0 0.0
    %3652 = vmatpush1.msra.mxu0 %v3641
    %3653 = vmatprep.subr.mxu0 0.0
    %3654 = vmatpush1.msra.mxu0 0.0
    %3655 = vmatprep.subr.mxu0 0.0
    %3656 = vmatpush1.msra.mxu0 0.0
    %3657 = vmatprep.subr.mxu0 0.0
    %3658 = vmatpush1.msra.mxu0 0.0
    %3659 = vmatprep.subr.mxu0 0.0
    %3660 = vmatpush1.msra.mxu0 0.0
    %3661 = vmatprep.subr.mxu0 0.0
    %3662 = vmatpush1.msra.mxu0 0.0
    %3663 = vmatprep.subr.mxu0 0.0
    %3664 = vmatpush1.msra.mxu0 0.0
    %3665 = vmatprep.subr.mxu0 0.0
    %3666 = vmatpush1.msra.mxu0 0.0
    %3667 = vmatprep.subr.mxu0 0.0
    %3668 = vmatpush1.msra.mxu0 0.0
    %3669 = vmatprep.subr.mxu0 0.0
    %3670 = vmatpush1.msra.mxu0 0.0
    %3671 = vmatprep.subr.mxu0 0.0
    %3672 = vmatpush1.msra.mxu0 0.0
    %3673 = vmatprep.subr.mxu0 0.0
    %3674 = vmatpush1.msra.mxu0 0.0
    %3675 = vmatprep.subr.mxu0 0.0
    %3676 = vmatpush1.msra.mxu0 0.0
    %3677 = vmatprep.subr.mxu0 0.0
    %3678 = vmatpush1.msra.mxu0 0.0
    %3679 = vmatprep.subr.mxu0 0.0
    %3680 = vmatpush1.msra.mxu0 0.0
    %3681 = vmatprep.subr.mxu0 0.0
    %3682 = vmatpush1.msra.mxu0 0.0
    %3683 = vmatprep.subr.mxu0 0.0
    %3684 = vmatpush1.msra.mxu0 0.0
    %3685 = vmatprep.subr.mxu0 0.0
    %3686 = vmatpush1.msra.mxu0 0.0
    %3687 = vmatprep.subr.mxu0 0.0
    %3688 = vmatpush1.msra.mxu0 0.0
    %3689 = vmatprep.subr.mxu0 0.0
    %3690 = vmatpush1.msra.mxu0 0.0
    %3691 = vmatprep.subr.mxu0 0.0
    %3692 = vmatpush1.msra.mxu0 0.0
    %3693 = vmatprep.subr.mxu0 0.0
    %3694 = vmatpush1.msra.mxu0 0.0
    %3695 = vmatprep.subr.mxu0 0.0
    %3696 = vmatpush1.msra.mxu0 0.0
    %3697 = vmatprep.subr.mxu0 0.0
    %3698 = vmatpush1.msra.mxu0 0.0
    %3699 = vmatprep.subr.mxu0 0.0
    %3700 = vmatpush1.msra.mxu0 0.0
    %3701 = vmatprep.subr.mxu0 0.0
    %3702 = vmatpush1.msra.mxu0 0.0
    %3703 = vmatprep.subr.mxu0 0.0
    %3704 = vmatpush1.msra.mxu0 0.0
    %3705 = vmatprep.subr.mxu0 0.0
    %3706 = vmatpush1.msra.mxu0 0.0
    %3707 = vmatprep.mubr.f32.mxu0 0.0
    %3708 = vmatmul.mubr.f32.gmra.mrb[0].mxu0 %v3627
    %v3709 = vpop.f32.mrb[0].mxu0
    %v3710 = vadd.f32 0.0, %v3709
    %v3711 = vpop.f32.mrb[0].mxu0
    %3712 = vmatprep.mubr.f32.mxu0 0.0
    %3713 = vmatmul.mubr.f32.gmra.mrb[0].mxu0 %v3630
    %v3714 = vpop.f32.mrb[0].mxu0
    %v3715 = vadd.f32 0.0, %v3714
    %v3716 = vpop.f32.mrb[0].mxu0
    %3717 = vmatprep.mubr.f32.mxu0 0.0
    %3718 = vmatmul.mubr.f32.gmra.mrb[0].mxu0 %v3633
    %v3719 = vpop.f32.mrb[0].mxu0
    %v3720 = vadd.f32 0.0, %v3719
    %v3721 = vpop.f32.mrb[0].mxu0
    %3722 = vmatprep.mubr.f32.mxu0 0.0
    %3723 = vmatmul.mubr.f32.gmra.mrb[0].mxu0 %v3636
    %v3724 = vpop.f32.mrb[0].mxu0
    %v3725 = vadd.f32 0.0, %v3724
    %v3726 = vpop.f32.mrb[0].mxu0
    %3727 = vmatprep.mubr.f32.mxu0 0.0
    %3728 = vmatmul.mubr.f32.gmra.mrb[0].mxu0 %v3639
    %v3729 = vpop.f32.mrb[0].mxu0
    %v3730 = vadd.f32 0.0, %v3729
    %v3731 = vpop.f32.mrb[0].mxu0
    %3732 = vdwg.mxu0
    %v3734 = vsel %vm331, %v3710, 0
    %v3737 = vsel %vm331, %v3715, 0
    %v3740 = vsel %vm331, %v3720, 0
    %v3743 = vsel %vm331, %v3725, 0
    %v3746 = vsel %vm331, %v3730, 0
    %3748 = vmatprep.subr.mxu0 0.0
    %3749 = vmatpush1.msra.mxu0 %v2889
    %3750 = vmatprep.subr.mxu0 0.0
    %3751 = vmatpush1.msra.mxu0 0.0
    %3752 = vmatprep.subr.mxu0 0.0
    %3753 = vmatpush1.msra.mxu0 0.0
    %3754 = vmatprep.subr.mxu0 0.0
    %3755 = vmatpush1.msra.mxu0 0.0
    %3756 = vmatprep.subr.mxu0 0.0
    %3757 = vmatpush1.msra.mxu0 0.0
    %3758 = vmatprep.subr.mxu0 0.0
    %3759 = vmatpush1.msra.mxu0 0.0
    %3760 = vmatprep.subr.mxu0 0.0
    %3761 = vmatpush1.msra.mxu0 0.0
    %3762 = vmatprep.subr.mxu0 0.0
    %3763 = vmatpush1.msra.mxu0 0.0
    %3764 = vmatprep.subr.mxu0 0.0
    %3765 = vmatpush1.msra.mxu0 0.0
    %3766 = vmatprep.subr.mxu0 0.0
    %3767 = vmatpush1.msra.mxu0 0.0
    %3768 = vmatprep.subr.mxu0 0.0
    %3769 = vmatpush1.msra.mxu0 0.0
    %3770 = vmatprep.subr.mxu0 0.0
    %3771 = vmatpush1.msra.mxu0 0.0
    %3772 = vmatprep.subr.mxu0 0.0
    %3773 = vmatpush1.msra.mxu0 0.0
    %3774 = vmatprep.subr.mxu0 0.0
    %3775 = vmatpush1.msra.mxu0 0.0
    %3776 = vmatprep.subr.mxu0 0.0
    %3777 = vmatpush1.msra.mxu0 0.0
    %3778 = vmatprep.subr.mxu0 0.0
    %3779 = vmatpush1.msra.mxu0 0.0
    %3780 = vmatprep.subr.mxu0 0.0
    %3781 = vmatpush1.msra.mxu0 0.0
    %3782 = vmatprep.subr.mxu0 0.0
    %3783 = vmatpush1.msra.mxu0 0.0
    %3784 = vmatprep.subr.mxu0 0.0
    %3785 = vmatpush1.msra.mxu0 0.0
    %3786 = vmatprep.subr.mxu0 0.0
    %3787 = vmatpush1.msra.mxu0 0.0
    %3788 = vmatprep.subr.mxu0 0.0
    %3789 = vmatpush1.msra.mxu0 0.0
    %3790 = vmatprep.subr.mxu0 0.0
    %3791 = vmatpush1.msra.mxu0 0.0
    %3792 = vmatprep.subr.mxu0 0.0
    %3793 = vmatpush1.msra.mxu0 0.0
    %3794 = vmatprep.subr.mxu0 0.0
    %3795 = vmatpush1.msra.mxu0 0.0
    %3796 = vmatprep.subr.mxu0 0.0
    %3797 = vmatpush1.msra.mxu0 0.0
    %3798 = vmatprep.subr.mxu0 0.0
    %3799 = vmatpush1.msra.mxu0 0.0
    %3800 = vmatprep.subr.mxu0 0.0
    %3801 = vmatpush1.msra.mxu0 0.0
    %3802 = vmatprep.subr.mxu0 0.0
    %3803 = vmatpush1.msra.mxu0 0.0
    %3804 = vmatprep.subr.mxu0 0.0
    %3805 = vmatpush1.msra.mxu0 0.0
    %3806 = vmatprep.subr.mxu0 0.0
    %3807 = vmatpush1.msra.mxu0 0.0
    %3808 = vmatprep.subr.mxu0 0.0
    %3809 = vmatpush1.msra.mxu0 0.0
    %3810 = vmatprep.subr.mxu0 0.0
    %3811 = vmatpush1.msra.mxu0 0.0
    %3812 = vmatprep.mubr.f32.mxu0 0.0
    %3813 = vmatmul.mubr.f32.gmra.mrb[0].mxu0 %v3734
    %v3814 = vpop.f32.mrb[0].mxu0
    %v3815 = vadd.f32 0.0, %v3814
    %v3816 = vpop.f32.mrb[0].mxu0
    %3817 = vmatprep.mubr.f32.mxu0 0.0
    %3818 = vmatmul.mubr.f32.gmra.mrb[0].mxu0 %v3737
    %v3819 = vpop.f32.mrb[0].mxu0
    %v3820 = vadd.f32 0.0, %v3819
    %v3821 = vpop.f32.mrb[0].mxu0
    %3822 = vmatprep.mubr.f32.mxu0 0.0
    %3823 = vmatmul.mubr.f32.gmra.mrb[0].mxu0 %v3740
    %v3824 = vpop.f32.mrb[0].mxu0
    %v3825 = vadd.f32 0.0, %v3824
    %v3826 = vpop.f32.mrb[0].mxu0
    %3827 = vmatprep.mubr.f32.mxu0 0.0
    %3828 = vmatmul.mubr.f32.gmra.mrb[0].mxu0 %v3743
    %v3829 = vpop.f32.mrb[0].mxu0
    %v3830 = vadd.f32 0.0, %v3829
    %v3831 = vpop.f32.mrb[0].mxu0
    %3832 = vmatprep.mubr.f32.mxu0 0.0
    %3833 = vmatmul.mubr.f32.gmra.mrb[0].mxu0 %v3746
    %v3834 = vpop.f32.mrb[0].mxu0
    %v3835 = vadd.f32 0.0, %v3834
    %v3836 = vpop.f32.mrb[0].mxu0
    %3837 = vdwg.mxu0
    %v3838 = vadd.f32 %v3394, %v3815
    %v3839 = vadd.f32 %v3399, %v3820
    %v3840 = vadd.f32 %v3404, %v3825
    %v3841 = vadd.f32 %v3409, %v3830
    %v3842 = vadd.f32 %v3414, %v3835
    %3843 = vrot.lane.b32.xlu0 %v2552, 104
    %v3844 = vpop.permute.xlu0 %3843
    %3845 = vrot.lane.b32.xlu0 %v2557, 104
    %v3846 = vpop.permute.xlu0 %3845
    %3847 = vrot.lane.b32.xlu0 %v2562, 104
    %v3848 = vpop.permute.xlu0 %3847
    %3849 = vrot.lane.b32.xlu0 %v2567, 104
    %v3850 = vpop.permute.xlu0 %3849
    %3851 = vrot.lane.b32.xlu0 %v2572, 104
    %v3852 = vpop.permute.xlu0 %3851
    %3853 = vrot.lane.b32.xlu0 %v2552, 72
    %v3854 = vpop.permute.xlu0 %3853
    %3855 = vrot.lane.b32.xlu0 %v2557, 72
    %v3856 = vpop.permute.xlu0 %3855
    %3857 = vrot.lane.b32.xlu0 %v2562, 72
    %v3858 = vpop.permute.xlu0 %3857
    %3859 = vrot.lane.b32.xlu0 %v2567, 72
    %v3860 = vpop.permute.xlu0 %3859
    %3861 = vrot.lane.b32.xlu0 %v2572, 72
    %v3862 = vpop.permute.xlu0 %3861
    %v3863 = vsel %vm331, %v3844, 0
    %v3865 = vsel %vm331, %v3846, 0
    %v3867 = vsel %vm331, %v3848, 0
    %v3869 = vsel %vm331, %v3850, 0
    %v3871 = vsel %vm331, %v3852, 0
    %v3873 = vsel %vm331, %v3854, 0
    %v3875 = vsel %vm331, %v3856, 0
    %v3877 = vsel %vm331, %v3858, 0
    %v3879 = vsel %vm331, %v3860, 0
    %v3881 = vsel %vm331, %v3862, 0
    %3883 = vmatprep.subr.mxu0 0.0
    %3884 = vmatpush1.xpose.msra.mxu0 %v3873
    %3885 = vmatprep.subr.mxu0 0.0
    %3886 = vmatpush1.xpose.msra.mxu0 %v3875
    %3887 = vmatprep.subr.mxu0 0.0
    %3888 = vmatpush1.xpose.msra.mxu0 %v3877
    %3889 = vmatprep.subr.mxu0 0.0
    %3890 = vmatpush1.xpose.msra.mxu0 %v3879
    %3891 = vmatprep.subr.mxu0 0.0
    %3892 = vmatpush1.xpose.msra.mxu0 %v3881
    %3893 = vmatprep.subr.mxu0 0.0
    %3894 = vmatpush1.xpose.msra.mxu0 0.0
    %3895 = vmatprep.subr.mxu0 0.0
    %3896 = vmatpush1.xpose.msra.mxu0 0.0
    %3897 = vmatprep.subr.mxu0 0.0
    %3898 = vmatpush1.xpose.msra.mxu0 0.0
    %3899 = vmatprep.subr.mxu0 0.0
    %3900 = vmatpush1.xpose.msra.mxu0 0.0
    %3901 = vmatprep.subr.mxu0 0.0
    %3902 = vmatpush1.xpose.msra.mxu0 0.0
    %3903 = vmatprep.subr.mxu0 0.0
    %3904 = vmatpush1.xpose.msra.mxu0 0.0
    %3905 = vmatprep.subr.mxu0 0.0
    %3906 = vmatpush1.xpose.msra.mxu0 0.0
    %3907 = vmatprep.subr.mxu0 0.0
    %3908 = vmatpush1.xpose.msra.mxu0 0.0
    %3909 = vmatprep.subr.mxu0 0.0
    %3910 = vmatpush1.xpose.msra.mxu0 0.0
    %3911 = vmatprep.subr.mxu0 0.0
    %3912 = vmatpush1.xpose.msra.mxu0 0.0
    %3913 = vmatprep.subr.mxu0 0.0
    %3914 = vmatpush1.xpose.msra.mxu0 0.0
    %3915 = vmatprep.subr.mxu0 0.0
    %3916 = vmatpush1.xpose.msra.mxu0 0.0
    %3917 = vmatprep.subr.mxu0 0.0
    %3918 = vmatpush1.xpose.msra.mxu0 0.0
    %3919 = vmatprep.subr.mxu0 0.0
    %3920 = vmatpush1.xpose.msra.mxu0 0.0
    %3921 = vmatprep.subr.mxu0 0.0
    %3922 = vmatpush1.xpose.msra.mxu0 0.0
    %3923 = vmatprep.subr.mxu0 0.0
    %3924 = vmatpush1.xpose.msra.mxu0 0.0
    %3925 = vmatprep.subr.mxu0 0.0
    %3926 = vmatpush1.xpose.msra.mxu0 0.0
    %3927 = vmatprep.subr.mxu0 0.0
    %3928 = vmatpush1.xpose.msra.mxu0 0.0
    %3929 = vmatprep.subr.mxu0 0.0
    %3930 = vmatpush1.xpose.msra.mxu0 0.0
    %3931 = vmatprep.subr.mxu0 0.0
    %3932 = vmatpush1.xpose.msra.mxu0 0.0
    %3933 = vmatprep.subr.mxu0 0.0
    %3934 = vmatpush1.xpose.msra.mxu0 0.0
    %3935 = vmatprep.subr.mxu0 0.0
    %3936 = vmatpush1.xpose.msra.mxu0 0.0
    %3937 = vmatprep.subr.mxu0 0.0
    %3938 = vmatpush1.xpose.msra.mxu0 0.0
    %3939 = vmatprep.subr.mxu0 0.0
    %3940 = vmatpush1.xpose.msra.mxu0 0.0
    %3941 = vmatprep.subr.mxu0 0.0
    %3942 = vmatpush1.xpose.msra.mxu0 0.0
    %3943 = vmatprep.subr.mxu0 0.0
    %3944 = vmatpush1.xpose.msra.mxu0 0.0
    %3945 = vmatprep.subr.mxu0 0.0
    %3946 = vmatpush1.xpose.msra.mxu0 0.0
    %3947 = vmatprep.mubr.f32.mxu0 0.0
    %3948 = vmatmul.mubr.f32.gmra.mrb[0].mxu0 %v3863
    %v3949 = vpop.f32.mrb[0].mxu0
    %v3950 = vadd.f32 0.0, %v3949
    %v3951 = vpop.f32.mrb[0].mxu0
    %3952 = vmatprep.mubr.f32.mxu0 0.0
    %3953 = vmatmul.mubr.f32.gmra.mrb[0].mxu0 %v3865
    %v3954 = vpop.f32.mrb[0].mxu0
    %v3955 = vadd.f32 0.0, %v3954
    %v3956 = vpop.f32.mrb[0].mxu0
    %3957 = vmatprep.mubr.f32.mxu0 0.0
    %3958 = vmatmul.mubr.f32.gmra.mrb[0].mxu0 %v3867
    %v3959 = vpop.f32.mrb[0].mxu0
    %v3960 = vadd.f32 0.0, %v3959
    %v3961 = vpop.f32.mrb[0].mxu0
    %3962 = vmatprep.mubr.f32.mxu0 0.0
    %3963 = vmatmul.mubr.f32.gmra.mrb[0].mxu0 %v3869
    %v3964 = vpop.f32.mrb[0].mxu0
    %v3965 = vadd.f32 0.0, %v3964
    %v3966 = vpop.f32.mrb[0].mxu0
    %3967 = vmatprep.mubr.f32.mxu0 0.0
    %3968 = vmatmul.mubr.f32.gmra.mrb[0].mxu0 %v3871
    %v3969 = vpop.f32.mrb[0].mxu0
    %v3970 = vadd.f32 0.0, %v3969
    %v3971 = vpop.f32.mrb[0].mxu0
    %3972 = vdwg.mxu0
    %v3973 = vmul.f32 %v3950, 0.35355338
    %v3974 = vmul.f32 %v3955, 0.35355338
    %v3975 = vmul.f32 %v3960, 0.35355338
    %v3976 = vmul.f32 %v3965, 0.35355338
    %v3977 = vmul.f32 %v3970, 0.35355338
    %v3978 = vadd.f32 %v3973, %v194
    %v3979 = vadd.f32 %v3974, %v195
    %v3980 = vadd.f32 %v3975, %v196
    %v3981 = vadd.f32 %v3976, %v197
    %v3982 = vadd.f32 %v3977, %v198
    %v3983 = vsel %vm452, %v3978, -inf
    %3984 = vmax.xlane.f32.xlu0 %v3983
    %v3985 = vpop.xlane.xlu0 %3984
    %v3986 = vsel %vm452, %v3979, -inf
    %3987 = vmax.xlane.f32.xlu0 %v3986
    %v3988 = vpop.xlane.xlu0 %3987
    %v3989 = vsel %vm452, %v3980, -inf
    %3990 = vmax.xlane.f32.xlu0 %v3989
    %v3991 = vpop.xlane.xlu0 %3990
    %v3992 = vsel %vm452, %v3981, -inf
    %3993 = vmax.xlane.f32.xlu0 %v3992
    %v3994 = vpop.xlane.xlu0 %3993
    %v3995 = vsel %vm465, %v3982, -inf
    %3996 = vmax.xlane.f32.xlu0 %v3995
    %v3997 = vpop.xlane.xlu0 %3996
    %v3998 = vsub.f32 %v3978, %v3985
    %v3999 = vsub.f32 %v3979, %v3988
    %v4000 = vsub.f32 %v3980, %v3991
    %v4001 = vsub.f32 %v3981, %v3994
    %v4002 = vsub.f32 %v3982, %v3997
    %v4003 = vmul.f32 %v3998, 1.442695
    %v4004 = vpow.pop %v4003
    %v4005 = vmul.f32 %v3999, 1.442695
    %v4006 = vpow.pop %v4005
    %v4007 = vmul.f32 %v4000, 1.442695
    %v4008 = vpow.pop %v4007
    %v4009 = vmul.f32 %v4001, 1.442695
    %v4010 = vpow.pop %v4009
    %v4011 = vmul.f32 %v4002, 1.442695
    %v4012 = vpow.pop %v4011
    %v4013 = vsel %vm452, %v4004, 0.0
    %4014 = vadd.xlane.f32.xlu0 %v4013
    %v4015 = vpop.xlane.xlu0 %4014
    %v4016 = vsel %vm452, %v4006, 0.0
    %4017 = vadd.xlane.f32.xlu0 %v4016
    %v4018 = vpop.xlane.xlu0 %4017
    %v4019 = vsel %vm452, %v4008, 0.0
    %4020 = vadd.xlane.f32.xlu0 %v4019
    %v4021 = vpop.xlane.xlu0 %4020
    %v4022 = vsel %vm452, %v4010, 0.0
    %4023 = vadd.xlane.f32.xlu0 %v4022
    %v4024 = vpop.xlane.xlu0 %4023
    %v4025 = vsel %vm465, %v4012, 0.0
    %4026 = vadd.xlane.f32.xlu0 %v4025
    %v4027 = vpop.xlane.xlu0 %4026
    %v4028 = vrcp.pop %v4015
    %v4029 = vrcp.pop %v4018
    %v4030 = vrcp.pop %v4021
    %v4031 = vrcp.pop %v4024
    %v4032 = vrcp.pop %v4027
    %v4033 = vmul.f32 %v4004, %v4028
    %v4034 = vmul.f32 %v4006, %v4029
    %v4035 = vmul.f32 %v4008, %v4030
    %v4036 = vmul.f32 %v4010, %v4031
    %v4037 = vmul.f32 %v4012, %v4032
    %4038 = vrot.lane.b32.xlu0 %v2552, 40
    %v4039 = vpop.permute.xlu0 %4038
    %4040 = vrot.lane.b32.xlu0 %v2557, 40
    %v4041 = vpop.permute.xlu0 %4040
    %4042 = vrot.lane.b32.xlu0 %v2562, 40
    %v4043 = vpop.permute.xlu0 %4042
    %4044 = vrot.lane.b32.xlu0 %v2567, 40
    %v4045 = vpop.permute.xlu0 %4044
    %4046 = vrot.lane.b32.xlu0 %v2572, 40
    %v4047 = vpop.permute.xlu0 %4046
    %v4053 = vsel %vm452, %v4033, 0
    %v4056 = vsel %vm452, %v4034, 0
    %v4059 = vsel %vm452, %v4035, 0
    %v4062 = vsel %vm452, %v4036, 0
    %v4065 = vsel %vm452, %v4037, 0
    %v4067 = vsel %vm538, %v4047, 0
    %4069 = vmatprep.subr.mxu0 0.0
    %4070 = vmatpush1.msra.mxu0 %v4039
    %4071 = vmatprep.subr.mxu0 0.0
    %4072 = vmatpush1.msra.mxu0 %v4041
    %4073 = vmatprep.subr.mxu0 0.0
    %4074 = vmatpush1.msra.mxu0 %v4043
    %4075 = vmatprep.subr.mxu0 0.0
    %4076 = vmatpush1.msra.mxu0 %v4045
    %4077 = vmatprep.subr.mxu0 0.0
    %4078 = vmatpush1.msra.mxu0 %v4067
    %4079 = vmatprep.subr.mxu0 0.0
    %4080 = vmatpush1.msra.mxu0 0.0
    %4081 = vmatprep.subr.mxu0 0.0
    %4082 = vmatpush1.msra.mxu0 0.0
    %4083 = vmatprep.subr.mxu0 0.0
    %4084 = vmatpush1.msra.mxu0 0.0
    %4085 = vmatprep.subr.mxu0 0.0
    %4086 = vmatpush1.msra.mxu0 0.0
    %4087 = vmatprep.subr.mxu0 0.0
    %4088 = vmatpush1.msra.mxu0 0.0
    %4089 = vmatprep.subr.mxu0 0.0
    %4090 = vmatpush1.msra.mxu0 0.0
    %4091 = vmatprep.subr.mxu0 0.0
    %4092 = vmatpush1.msra.mxu0 0.0
    %4093 = vmatprep.subr.mxu0 0.0
    %4094 = vmatpush1.msra.mxu0 0.0
    %4095 = vmatprep.subr.mxu0 0.0
    %4096 = vmatpush1.msra.mxu0 0.0
    %4097 = vmatprep.subr.mxu0 0.0
    %4098 = vmatpush1.msra.mxu0 0.0
    %4099 = vmatprep.subr.mxu0 0.0
    %4100 = vmatpush1.msra.mxu0 0.0
    %4101 = vmatprep.subr.mxu0 0.0
    %4102 = vmatpush1.msra.mxu0 0.0
    %4103 = vmatprep.subr.mxu0 0.0
    %4104 = vmatpush1.msra.mxu0 0.0
    %4105 = vmatprep.subr.mxu0 0.0
    %4106 = vmatpush1.msra.mxu0 0.0
    %4107 = vmatprep.subr.mxu0 0.0
    %4108 = vmatpush1.msra.mxu0 0.0
    %4109 = vmatprep.subr.mxu0 0.0
    %4110 = vmatpush1.msra.mxu0 0.0
    %4111 = vmatprep.subr.mxu0 0.0
    %4112 = vmatpush1.msra.mxu0 0.0
    %4113 = vmatprep.subr.mxu0 0.0
    %4114 = vmatpush1.msra.mxu0 0.0
    %4115 = vmatprep.subr.mxu0 0.0
    %4116 = vmatpush1.msra.mxu0 0.0
    %4117 = vmatprep.subr.mxu0 0.0
    %4118 = vmatpush1.msra.mxu0 0.0
    %4119 = vmatprep.subr.mxu0 0.0
    %4120 = vmatpush1.msra.mxu0 0.0
    %4121 = vmatprep.subr.mxu0 0.0
    %4122 = vmatpush1.msra.mxu0 0.0
    %4123 = vmatprep.subr.mxu0 0.0
    %4124 = vmatpush1.msra.mxu0 0.0
    %4125 = vmatprep.subr.mxu0 0.0
    %4126 = vmatpush1.msra.mxu0 0.0
    %4127 = vmatprep.subr.mxu0 0.0
    %4128 = vmatpush1.msra.mxu0 0.0
    %4129 = vmatprep.subr.mxu0 0.0
    %4130 = vmatpush1.msra.mxu0 0.0
    %4131 = vmatprep.subr.mxu0 0.0
    %4132 = vmatpush1.msra.mxu0 0.0
    %4133 = vmatprep.mubr.f32.mxu0 0.0
    %4134 = vmatmul.mubr.f32.gmra.mrb[0].mxu0 %v4053
    %v4135 = vpop.f32.mrb[0].mxu0
    %v4136 = vadd.f32 0.0, %v4135
    %v4137 = vpop.f32.mrb[0].mxu0
    %4138 = vmatprep.mubr.f32.mxu0 0.0
    %4139 = vmatmul.mubr.f32.gmra.mrb[0].mxu0 %v4056
    %v4140 = vpop.f32.mrb[0].mxu0
    %v4141 = vadd.f32 0.0, %v4140
    %v4142 = vpop.f32.mrb[0].mxu0
    %4143 = vmatprep.mubr.f32.mxu0 0.0
    %4144 = vmatmul.mubr.f32.gmra.mrb[0].mxu0 %v4059
    %v4145 = vpop.f32.mrb[0].mxu0
    %v4146 = vadd.f32 0.0, %v4145
    %v4147 = vpop.f32.mrb[0].mxu0
    %4148 = vmatprep.mubr.f32.mxu0 0.0
    %4149 = vmatmul.mubr.f32.gmra.mrb[0].mxu0 %v4062
    %v4150 = vpop.f32.mrb[0].mxu0
    %v4151 = vadd.f32 0.0, %v4150
    %v4152 = vpop.f32.mrb[0].mxu0
    %4153 = vmatprep.mubr.f32.mxu0 0.0
    %4154 = vmatmul.mubr.f32.gmra.mrb[0].mxu0 %v4065
    %v4155 = vpop.f32.mrb[0].mxu0
    %v4156 = vadd.f32 0.0, %v4155
    %v4157 = vpop.f32.mrb[0].mxu0
    %4158 = vdwg.mxu0
    %v4160 = vsel %vm331, %v4136, 0
    %v4163 = vsel %vm331, %v4141, 0
    %v4166 = vsel %vm331, %v4146, 0
    %v4169 = vsel %vm331, %v4151, 0
    %v4172 = vsel %vm331, %v4156, 0
    %4174 = vmatprep.subr.mxu0 0.0
    %4175 = vmatpush1.msra.mxu0 %v2890
    %4176 = vmatprep.subr.mxu0 0.0
    %4177 = vmatpush1.msra.mxu0 0.0
    %4178 = vmatprep.subr.mxu0 0.0
    %4179 = vmatpush1.msra.mxu0 0.0
    %4180 = vmatprep.subr.mxu0 0.0
    %4181 = vmatpush1.msra.mxu0 0.0
    %4182 = vmatprep.subr.mxu0 0.0
    %4183 = vmatpush1.msra.mxu0 0.0
    %4184 = vmatprep.subr.mxu0 0.0
    %4185 = vmatpush1.msra.mxu0 0.0
    %4186 = vmatprep.subr.mxu0 0.0
    %4187 = vmatpush1.msra.mxu0 0.0
    %4188 = vmatprep.subr.mxu0 0.0
    %4189 = vmatpush1.msra.mxu0 0.0
    %4190 = vmatprep.subr.mxu0 0.0
    %4191 = vmatpush1.msra.mxu0 0.0
    %4192 = vmatprep.subr.mxu0 0.0
    %4193 = vmatpush1.msra.mxu0 0.0
    %4194 = vmatprep.subr.mxu0 0.0
    %4195 = vmatpush1.msra.mxu0 0.0
    %4196 = vmatprep.subr.mxu0 0.0
    %4197 = vmatpush1.msra.mxu0 0.0
    %4198 = vmatprep.subr.mxu0 0.0
    %4199 = vmatpush1.msra.mxu0 0.0
    %4200 = vmatprep.subr.mxu0 0.0
    %4201 = vmatpush1.msra.mxu0 0.0
    %4202 = vmatprep.subr.mxu0 0.0
    %4203 = vmatpush1.msra.mxu0 0.0
    %4204 = vmatprep.subr.mxu0 0.0
    %4205 = vmatpush1.msra.mxu0 0.0
    %4206 = vmatprep.subr.mxu0 0.0
    %4207 = vmatpush1.msra.mxu0 0.0
    %4208 = vmatprep.subr.mxu0 0.0
    %4209 = vmatpush1.msra.mxu0 0.0
    %4210 = vmatprep.subr.mxu0 0.0
    %4211 = vmatpush1.msra.mxu0 0.0
    %4212 = vmatprep.subr.mxu0 0.0
    %4213 = vmatpush1.msra.mxu0 0.0
    %4214 = vmatprep.subr.mxu0 0.0
    %4215 = vmatpush1.msra.mxu0 0.0
    %4216 = vmatprep.subr.mxu0 0.0
    %4217 = vmatpush1.msra.mxu0 0.0
    %4218 = vmatprep.subr.mxu0 0.0
    %4219 = vmatpush1.msra.mxu0 0.0
    %4220 = vmatprep.subr.mxu0 0.0
    %4221 = vmatpush1.msra.mxu0 0.0
    %4222 = vmatprep.subr.mxu0 0.0
    %4223 = vmatpush1.msra.mxu0 0.0
    %4224 = vmatprep.subr.mxu0 0.0
    %4225 = vmatpush1.msra.mxu0 0.0
    %4226 = vmatprep.subr.mxu0 0.0
    %4227 = vmatpush1.msra.mxu0 0.0
    %4228 = vmatprep.subr.mxu0 0.0
    %4229 = vmatpush1.msra.mxu0 0.0
    %4230 = vmatprep.subr.mxu0 0.0
    %4231 = vmatpush1.msra.mxu0 0.0
    %4232 = vmatprep.subr.mxu0 0.0
    %4233 = vmatpush1.msra.mxu0 0.0
    %4234 = vmatprep.subr.mxu0 0.0
    %4235 = vmatpush1.msra.mxu0 0.0
    %4236 = vmatprep.subr.mxu0 0.0
    %4237 = vmatpush1.msra.mxu0 0.0
    %4238 = vmatprep.mubr.f32.mxu0 0.0
    %4239 = vmatmul.mubr.f32.gmra.mrb[0].mxu0 %v4160
    %v4240 = vpop.f32.mrb[0].mxu0
    %v4241 = vadd.f32 0.0, %v4240
    %v4242 = vpop.f32.mrb[0].mxu0
    %4243 = vmatprep.mubr.f32.mxu0 0.0
    %4244 = vmatmul.mubr.f32.gmra.mrb[0].mxu0 %v4163
    %v4245 = vpop.f32.mrb[0].mxu0
    %v4246 = vadd.f32 0.0, %v4245
    %v4247 = vpop.f32.mrb[0].mxu0
    %4248 = vmatprep.mubr.f32.mxu0 0.0
    %4249 = vmatmul.mubr.f32.gmra.mrb[0].mxu0 %v4166
    %v4250 = vpop.f32.mrb[0].mxu0
    %v4251 = vadd.f32 0.0, %v4250
    %v4252 = vpop.f32.mrb[0].mxu0
    %4253 = vmatprep.mubr.f32.mxu0 0.0
    %4254 = vmatmul.mubr.f32.gmra.mrb[0].mxu0 %v4169
    %v4255 = vpop.f32.mrb[0].mxu0
    %v4256 = vadd.f32 0.0, %v4255
    %v4257 = vpop.f32.mrb[0].mxu0
    %4258 = vmatprep.mubr.f32.mxu0 0.0
    %4259 = vmatmul.mubr.f32.gmra.mrb[0].mxu0 %v4172
    %v4260 = vpop.f32.mrb[0].mxu0
    %v4261 = vadd.f32 0.0, %v4260
    %v4262 = vpop.f32.mrb[0].mxu0
    %4263 = vdwg.mxu0
    %v4264 = vadd.f32 %v3838, %v4241
    %v4265 = vadd.f32 %v3839, %v4246
    %v4266 = vadd.f32 %v3840, %v4251
    %v4267 = vadd.f32 %v3841, %v4256
    %v4268 = vadd.f32 %v3842, %v4261
    %s4269 = scalar_lea.vmem %s10, 1
    %v4270 = vld [vmem:[%s4269] sm:$0x1]
    %v4272 = vlaneseq
    %v4273 = vshrl.u32 %v4272, 7
    %v4274 = vsub.s32 0, %v4273
    %v4275 = vrot.slane %v4270, %v4274
    %v4277 = vadd.f32 %v4264, %v4275
    %v4278 = vadd.f32 %v4265, %v4275
    %v4279 = vadd.f32 %v4266, %v4275
    %v4280 = vadd.f32 %v4267, %v4275
    %v4281 = vadd.f32 %v4268, %v4275
    %v4282 = vadd.f32 %v2452, %v4277
    %v4283 = vadd.f32 %v2453, %v4278
    %v4284 = vadd.f32 %v2454, %v4279
    %v4285 = vadd.f32 %v2455, %v4280
    %v4286 = vadd.f32 %v2456, %v4281
    %s4287 = scalar_lea.vmem %s11, 1
    %v4288 = vld [vmem:[%s4287] sm:$0x1]
    %s4289 = scalar_lea.vmem %s12, 1
    %v4290 = vld [vmem:[%s4289] sm:$0x1]
    %v4291 = vsel %vm210, %v4282, 0.0
    %4292 = vadd.xlane.f32.xlu0 %v4291
    %v4293 = vpop.xlane.xlu0 %4292
    %v4294 = vsel %vm210, %v4283, 0.0
    %4295 = vadd.xlane.f32.xlu0 %v4294
    %v4296 = vpop.xlane.xlu0 %4295
    %v4297 = vsel %vm210, %v4284, 0.0
    %4298 = vadd.xlane.f32.xlu0 %v4297
    %v4299 = vpop.xlane.xlu0 %4298
    %v4300 = vsel %vm210, %v4285, 0.0
    %4301 = vadd.xlane.f32.xlu0 %v4300
    %v4302 = vpop.xlane.xlu0 %4301
    %v4303 = vsel %vm2044, %v4286, 0.0
    %4304 = vadd.xlane.f32.xlu0 %v4303
    %v4305 = vpop.xlane.xlu0 %4304
    %v4306 = vmul.f32 %v4293, %v2048
    %v4307 = vmul.f32 %v4296, %v2048
    %v4308 = vmul.f32 %v4299, %v2048
    %v4309 = vmul.f32 %v4302, %v2048
    %v4310 = vmul.f32 %v4305, %v2048
    %v4311 = vsub.f32 %v4282, %v4306
    %v4312 = vsub.f32 %v4283, %v4307
    %v4313 = vsub.f32 %v4284, %v4308
    %v4314 = vsub.f32 %v4285, %v4309
    %v4315 = vsub.f32 %v4286, %v4310
    %v4316 = vmul.f32 %v4311, %v4311
    %v4317 = vmul.f32 %v4312, %v4312
    %v4318 = vmul.f32 %v4313, %v4313
    %v4319 = vmul.f32 %v4314, %v4314
    %v4320 = vmul.f32 %v4315, %v4315
    %v4321 = vsel %vm210, %v4316, 0.0
    %4322 = vadd.xlane.f32.xlu0 %v4321
    %v4323 = vpop.xlane.xlu0 %4322
    %v4324 = vsel %vm210, %v4317, 0.0
    %4325 = vadd.xlane.f32.xlu0 %v4324
    %v4326 = vpop.xlane.xlu0 %4325
    %v4327 = vsel %vm210, %v4318, 0.0
    %4328 = vadd.xlane.f32.xlu0 %v4327
    %v4329 = vpop.xlane.xlu0 %4328
    %v4330 = vsel %vm210, %v4319, 0.0
    %4331 = vadd.xlane.f32.xlu0 %v4330
    %v4332 = vpop.xlane.xlu0 %4331
    %v4333 = vsel %vm2044, %v4320, 0.0
    %4334 = vadd.xlane.f32.xlu0 %v4333
    %v4335 = vpop.xlane.xlu0 %4334
    %v4336 = vmul.f32 %v4323, %v2048
    %v4337 = vmul.f32 %v4326, %v2048
    %v4338 = vmul.f32 %v4329, %v2048
    %v4339 = vmul.f32 %v4332, %v2048
    %v4340 = vmul.f32 %v4335, %v2048
    %v4341 = vadd.f32 %v4336, 1e-05
    %v4342 = vadd.f32 %v4337, 1e-05
    %v4343 = vadd.f32 %v4338, 1e-05
    %v4344 = vadd.f32 %v4339, 1e-05
    %v4345 = vadd.f32 %v4340, 1e-05
    %v4346 = vrsqrt.pop %v4341
    %v4347 = vrsqrt.pop %v4342
    %v4348 = vrsqrt.pop %v4343
    %v4349 = vrsqrt.pop %v4344
    %v4350 = vrsqrt.pop %v4345
    %v4351 = vmul.f32 %v4311, %v4346
    %v4352 = vmul.f32 %v4312, %v4347
    %v4353 = vmul.f32 %v4313, %v4348
    %v4354 = vmul.f32 %v4314, %v4349
    %v4355 = vmul.f32 %v4315, %v4350
    %v4357 = vlaneseq
    %v4358 = vshrl.u32 %v4357, 7
    %v4359 = vsub.s32 0, %v4358
    %v4360 = vrot.slane %v4288, %v4359
    %v4362 = vmul.f32 %v4351, %v4360
    %v4363 = vmul.f32 %v4352, %v4360
    %v4364 = vmul.f32 %v4353, %v4360
    %v4365 = vmul.f32 %v4354, %v4360
    %v4366 = vmul.f32 %v4355, %v4360
    %v4368 = vlaneseq
    %v4369 = vshrl.u32 %v4368, 7
    %v4370 = vsub.s32 0, %v4369
    %v4371 = vrot.slane %v4290, %v4370
    %v4373 = vadd.f32 %v4362, %v4371
    %v4374 = vadd.f32 %v4363, %v4371
    %v4375 = vadd.f32 %v4364, %v4371
    %v4376 = vadd.f32 %v4365, %v4371
    %v4377 = vadd.f32 %v4366, %v4371
    %s4378 = scalar_lea.vmem %s15, 32
    %v4379 = vld [vmem:[%s4378] sm:$0xff]
    %v4380 = vld [vmem:[%s4378 + $0x8] sm:$0xff]
    %v4381 = vld [vmem:[%s4378 + $0x10] sm:$0xff]
    %v4382 = vld [vmem:[%s4378 + $0x18] sm:$0xff]
    %s4383 = scalar_lea.vmem %s16, 1
    %v4384 = vld [vmem:[%s4383] sm:$0x1]
    %v4386 = vlaneseq
    %v4387 = vshrl.u32 %v4386, 7
    %v4388 = vsub.s32 0, %v4387
    %v4389 = vrot.slane %v4384, %v4388
    %v4392 = vsel %vm210, %v4373, 0
    %v4395 = vsel %vm210, %v4374, 0
    %v4398 = vsel %vm210, %v4375, 0
    %v4401 = vsel %vm210, %v4376, 0
    %v4404 = vsel %vm210, %v4377, 0
    %4406 = vmatprep.subr.mxu0 0.0
    %4407 = vmatpush1.msra.mxu0 %v4379
    %4408 = vmatprep.subr.mxu0 0.0
    %4409 = vmatpush1.msra.mxu0 %v4380
    %4410 = vmatprep.subr.mxu0 0.0
    %4411 = vmatpush1.msra.mxu0 %v4381
    %4412 = vmatprep.subr.mxu0 0.0
    %4413 = vmatpush1.msra.mxu0 %v4382
    %4414 = vmatprep.subr.mxu0 0.0
    %4415 = vmatpush1.msra.mxu0 0.0
    %4416 = vmatprep.subr.mxu0 0.0
    %4417 = vmatpush1.msra.mxu0 0.0
    %4418 = vmatprep.subr.mxu0 0.0
    %4419 = vmatpush1.msra.mxu0 0.0
    %4420 = vmatprep.subr.mxu0 0.0
    %4421 = vmatpush1.msra.mxu0 0.0
    %4422 = vmatprep.subr.mxu0 0.0
    %4423 = vmatpush1.msra.mxu0 0.0
    %4424 = vmatprep.subr.mxu0 0.0
    %4425 = vmatpush1.msra.mxu0 0.0
    %4426 = vmatprep.subr.mxu0 0.0
    %4427 = vmatpush1.msra.mxu0 0.0
    %4428 = vmatprep.subr.mxu0 0.0
    %4429 = vmatpush1.msra.mxu0 0.0
    %4430 = vmatprep.subr.mxu0 0.0
    %4431 = vmatpush1.msra.mxu0 0.0
    %4432 = vmatprep.subr.mxu0 0.0
    %4433 = vmatpush1.msra.mxu0 0.0
    %4434 = vmatprep.subr.mxu0 0.0
    %4435 = vmatpush1.msra.mxu0 0.0
    %4436 = vmatprep.subr.mxu0 0.0
    %4437 = vmatpush1.msra.mxu0 0.0
    %4438 = vmatprep.subr.mxu0 0.0
    %4439 = vmatpush1.msra.mxu0 0.0
    %4440 = vmatprep.subr.mxu0 0.0
    %4441 = vmatpush1.msra.mxu0 0.0
    %4442 = vmatprep.subr.mxu0 0.0
    %4443 = vmatpush1.msra.mxu0 0.0
    %4444 = vmatprep.subr.mxu0 0.0
    %4445 = vmatpush1.msra.mxu0 0.0
    %4446 = vmatprep.subr.mxu0 0.0
    %4447 = vmatpush1.msra.mxu0 0.0
    %4448 = vmatprep.subr.mxu0 0.0
    %4449 = vmatpush1.msra.mxu0 0.0
    %4450 = vmatprep.subr.mxu0 0.0
    %4451 = vmatpush1.msra.mxu0 0.0
    %4452 = vmatprep.subr.mxu0 0.0
    %4453 = vmatpush1.msra.mxu0 0.0
    %4454 = vmatprep.subr.mxu0 0.0
    %4455 = vmatpush1.msra.mxu0 0.0
    %4456 = vmatprep.subr.mxu0 0.0
    %4457 = vmatpush1.msra.mxu0 0.0
    %4458 = vmatprep.subr.mxu0 0.0
    %4459 = vmatpush1.msra.mxu0 0.0
    %4460 = vmatprep.subr.mxu0 0.0
    %4461 = vmatpush1.msra.mxu0 0.0
    %4462 = vmatprep.subr.mxu0 0.0
    %4463 = vmatpush1.msra.mxu0 0.0
    %4464 = vmatprep.subr.mxu0 0.0
    %4465 = vmatpush1.msra.mxu0 0.0
    %4466 = vmatprep.subr.mxu0 0.0
    %4467 = vmatpush1.msra.mxu0 0.0
    %4468 = vmatprep.subr.mxu0 0.0
    %4469 = vmatpush1.msra.mxu0 0.0
    %4470 = vmatprep.mubr.f32.mxu0 0.0
    %4471 = vmatmul.mubr.f32.gmra.mrb[0].mxu0 %v4392
    %v4472 = vpop.f32.mrb[0].mxu0
    %v4473 = vadd.f32 %v4389, %v4472
    %v4474 = vpop.f32.mrb[0].mxu0
    %4475 = vmatprep.mubr.f32.mxu0 0.0
    %4476 = vmatmul.mubr.f32.gmra.mrb[0].mxu0 %v4395
    %v4477 = vpop.f32.mrb[0].mxu0
    %v4478 = vadd.f32 %v4389, %v4477
    %v4479 = vpop.f32.mrb[0].mxu0
    %4480 = vmatprep.mubr.f32.mxu0 0.0
    %4481 = vmatmul.mubr.f32.gmra.mrb[0].mxu0 %v4398
    %v4482 = vpop.f32.mrb[0].mxu0
    %v4483 = vadd.f32 %v4389, %v4482
    %v4484 = vpop.f32.mrb[0].mxu0
    %4485 = vmatprep.mubr.f32.mxu0 0.0
    %4486 = vmatmul.mubr.f32.gmra.mrb[0].mxu0 %v4401
    %v4487 = vpop.f32.mrb[0].mxu0
    %v4488 = vadd.f32 %v4389, %v4487
    %v4489 = vpop.f32.mrb[0].mxu0
    %4490 = vmatprep.mubr.f32.mxu0 0.0
    %4491 = vmatmul.mubr.f32.gmra.mrb[0].mxu0 %v4404
    %v4492 = vpop.f32.mrb[0].mxu0
    %v4493 = vadd.f32 %v4389, %v4492
    %v4494 = vpop.f32.mrb[0].mxu0
    %4495 = vdwg.mxu0
    %v4496 = vmax.f32 %v4473, 0.0
    %v4497 = vmax.f32 %v4478, 0.0
    %v4498 = vmax.f32 %v4483, 0.0
    %v4499 = vmax.f32 %v4488, 0.0
    %v4500 = vmax.f32 %v4493, 0.0
    %s4501 = scalar_lea.vmem %s17, 64
    %v4502 = vld [vmem:[%s4501] sm:$0xff]
    %v4503 = vld [vmem:[%s4501 + $0x8] sm:$0xff]
    %v4504 = vld [vmem:[%s4501 + $0x10] sm:$0xff]
    %v4505 = vld [vmem:[%s4501 + $0x18] sm:$0xff]
    %v4506 = vld [vmem:[%s4501 + $0x20] sm:$0xff]
    %v4507 = vld [vmem:[%s4501 + $0x28] sm:$0xff]
    %v4508 = vld [vmem:[%s4501 + $0x30] sm:$0xff]
    %v4509 = vld [vmem:[%s4501 + $0x38] sm:$0xff]
    %s4510 = scalar_lea.vmem %s18, 1
    %v4511 = vld [vmem:[%s4510] sm:$0x1]
    %v4513 = vlaneseq
    %v4514 = vshrl.u32 %v4513, 7
    %v4515 = vsub.s32 0, %v4514
    %v4516 = vrot.slane %v4511, %v4515
    %v4519 = vsel %vm2257, %v4496, 0
    %v4522 = vsel %vm2257, %v4497, 0
    %v4525 = vsel %vm2257, %v4498, 0
    %v4528 = vsel %vm2257, %v4499, 0
    %v4531 = vsel %vm2257, %v4500, 0
    %4533 = vmatprep.subr.mxu0 0.0
    %4534 = vmatpush1.msra.mxu0 %v4502
    %4535 = vmatprep.subr.mxu0 0.0
    %4536 = vmatpush1.msra.mxu0 %v4503
    %4537 = vmatprep.subr.mxu0 0.0
    %4538 = vmatpush1.msra.mxu0 %v4504
    %4539 = vmatprep.subr.mxu0 0.0
    %4540 = vmatpush1.msra.mxu0 %v4505
    %4541 = vmatprep.subr.mxu0 0.0
    %4542 = vmatpush1.msra.mxu0 %v4506
    %4543 = vmatprep.subr.mxu0 0.0
    %4544 = vmatpush1.msra.mxu0 %v4507
    %4545 = vmatprep.subr.mxu0 0.0
    %4546 = vmatpush1.msra.mxu0 %v4508
    %4547 = vmatprep.subr.mxu0 0.0
    %4548 = vmatpush1.msra.mxu0 %v4509
    %4549 = vmatprep.subr.mxu0 0.0
    %4550 = vmatpush1.msra.mxu0 0.0
    %4551 = vmatprep.subr.mxu0 0.0
    %4552 = vmatpush1.msra.mxu0 0.0
    %4553 = vmatprep.subr.mxu0 0.0
    %4554 = vmatpush1.msra.mxu0 0.0
    %4555 = vmatprep.subr.mxu0 0.0
    %4556 = vmatpush1.msra.mxu0 0.0
    %4557 = vmatprep.subr.mxu0 0.0
    %4558 = vmatpush1.msra.mxu0 0.0
    %4559 = vmatprep.subr.mxu0 0.0
    %4560 = vmatpush1.msra.mxu0 0.0
    %4561 = vmatprep.subr.mxu0 0.0
    %4562 = vmatpush1.msra.mxu0 0.0
    %4563 = vmatprep.subr.mxu0 0.0
    %4564 = vmatpush1.msra.mxu0 0.0
    %4565 = vmatprep.subr.mxu0 0.0
    %4566 = vmatpush1.msra.mxu0 0.0
    %4567 = vmatprep.subr.mxu0 0.0
    %4568 = vmatpush1.msra.mxu0 0.0
    %4569 = vmatprep.subr.mxu0 0.0
    %4570 = vmatpush1.msra.mxu0 0.0
    %4571 = vmatprep.subr.mxu0 0.0
    %4572 = vmatpush1.msra.mxu0 0.0
    %4573 = vmatprep.subr.mxu0 0.0
    %4574 = vmatpush1.msra.mxu0 0.0
    %4575 = vmatprep.subr.mxu0 0.0
    %4576 = vmatpush1.msra.mxu0 0.0
    %4577 = vmatprep.subr.mxu0 0.0
    %4578 = vmatpush1.msra.mxu0 0.0
    %4579 = vmatprep.subr.mxu0 0.0
    %4580 = vmatpush1.msra.mxu0 0.0
    %4581 = vmatprep.subr.mxu0 0.0
    %4582 = vmatpush1.msra.mxu0 0.0
    %4583 = vmatprep.subr.mxu0 0.0
    %4584 = vmatpush1.msra.mxu0 0.0
    %4585 = vmatprep.subr.mxu0 0.0
    %4586 = vmatpush1.msra.mxu0 0.0
    %4587 = vmatprep.subr.mxu0 0.0
    %4588 = vmatpush1.msra.mxu0 0.0
    %4589 = vmatprep.subr.mxu0 0.0
    %4590 = vmatpush1.msra.mxu0 0.0
    %4591 = vmatprep.subr.mxu0 0.0
    %4592 = vmatpush1.msra.mxu0 0.0
    %4593 = vmatprep.subr.mxu0 0.0
    %4594 = vmatpush1.msra.mxu0 0.0
    %4595 = vmatprep.subr.mxu0 0.0
    %4596 = vmatpush1.msra.mxu0 0.0
    %4597 = vmatprep.mubr.f32.mxu0 0.0
    %4598 = vmatmul.mubr.f32.gmra.mrb[0].mxu0 %v4519
    %v4599 = vpop.f32.mrb[0].mxu0
    %v4600 = vadd.f32 %v4516, %v4599
    %v4601 = vpop.f32.mrb[0].mxu0
    %4602 = vmatprep.mubr.f32.mxu0 0.0
    %4603 = vmatmul.mubr.f32.gmra.mrb[0].mxu0 %v4522
    %v4604 = vpop.f32.mrb[0].mxu0
    %v4605 = vadd.f32 %v4516, %v4604
    %v4606 = vpop.f32.mrb[0].mxu0
    %4607 = vmatprep.mubr.f32.mxu0 0.0
    %4608 = vmatmul.mubr.f32.gmra.mrb[0].mxu0 %v4525
    %v4609 = vpop.f32.mrb[0].mxu0
    %v4610 = vadd.f32 %v4516, %v4609
    %v4611 = vpop.f32.mrb[0].mxu0
    %4612 = vmatprep.mubr.f32.mxu0 0.0
    %4613 = vmatmul.mubr.f32.gmra.mrb[0].mxu0 %v4528
    %v4614 = vpop.f32.mrb[0].mxu0
    %v4615 = vadd.f32 %v4516, %v4614
    %v4616 = vpop.f32.mrb[0].mxu0
    %4617 = vmatprep.mubr.f32.mxu0 0.0
    %4618 = vmatmul.mubr.f32.gmra.mrb[0].mxu0 %v4531
    %v4619 = vpop.f32.mrb[0].mxu0
    %v4620 = vadd.f32 %v4516, %v4619
    %v4621 = vpop.f32.mrb[0].mxu0
    %4622 = vdwg.mxu0
    %v4623 = vadd.f32 %v4373, %v4600
    %v4624 = vadd.f32 %v4374, %v4605
    %v4625 = vadd.f32 %v4375, %v4610
    %v4626 = vadd.f32 %v4376, %v4615
    %v4627 = vadd.f32 %v4377, %v4620
    %s4628 = scalar_lea.vmem %s13, 1
    %v4629 = vld [vmem:[%s4628] sm:$0x1]
    %s4630 = scalar_lea.vmem %s14, 1
    %v4631 = vld [vmem:[%s4630] sm:$0x1]
    %v4632 = vsel %vm210, %v4623, 0.0
    %4633 = vadd.xlane.f32.xlu0 %v4632
    %v4634 = vpop.xlane.xlu0 %4633
    %v4635 = vsel %vm210, %v4624, 0.0
    %4636 = vadd.xlane.f32.xlu0 %v4635
    %v4637 = vpop.xlane.xlu0 %4636
    %v4638 = vsel %vm210, %v4625, 0.0
    %4639 = vadd.xlane.f32.xlu0 %v4638
    %v4640 = vpop.xlane.xlu0 %4639
    %v4641 = vsel %vm210, %v4626, 0.0
    %4642 = vadd.xlane.f32.xlu0 %v4641
    %v4643 = vpop.xlane.xlu0 %4642
    %v4644 = vsel %vm2044, %v4627, 0.0
    %4645 = vadd.xlane.f32.xlu0 %v4644
    %v4646 = vpop.xlane.xlu0 %4645
    %v4647 = vmul.f32 %v4634, %v2048
    %v4648 = vmul.f32 %v4637, %v2048
    %v4649 = vmul.f32 %v4640, %v2048
    %v4650 = vmul.f32 %v4643, %v2048
    %v4651 = vmul.f32 %v4646, %v2048
    %v4652 = vsub.f32 %v4623, %v4647
    %v4653 = vsub.f32 %v4624, %v4648
    %v4654 = vsub.f32 %v4625, %v4649
    %v4655 = vsub.f32 %v4626, %v4650
    %v4656 = vsub.f32 %v4627, %v4651
    %v4657 = vmul.f32 %v4652, %v4652
    %v4658 = vmul.f32 %v4653, %v4653
    %v4659 = vmul.f32 %v4654, %v4654
    %v4660 = vmul.f32 %v4655, %v4655
    %v4661 = vmul.f32 %v4656, %v4656
    %v4662 = vsel %vm210, %v4657, 0.0
    %4663 = vadd.xlane.f32.xlu0 %v4662
    %v4664 = vpop.xlane.xlu0 %4663
    %v4665 = vsel %vm210, %v4658, 0.0
    %4666 = vadd.xlane.f32.xlu0 %v4665
    %v4667 = vpop.xlane.xlu0 %4666
    %v4668 = vsel %vm210, %v4659, 0.0
    %4669 = vadd.xlane.f32.xlu0 %v4668
    %v4670 = vpop.xlane.xlu0 %4669
    %v4671 = vsel %vm210, %v4660, 0.0
    %4672 = vadd.xlane.f32.xlu0 %v4671
    %v4673 = vpop.xlane.xlu0 %4672
    %v4674 = vsel %vm2044, %v4661, 0.0
    %4675 = vadd.xlane.f32.xlu0 %v4674
    %v4676 = vpop.xlane.xlu0 %4675
    %v4677 = vmul.f32 %v4664, %v2048
    %v4678 = vmul.f32 %v4667, %v2048
    %v4679 = vmul.f32 %v4670, %v2048
    %v4680 = vmul.f32 %v4673, %v2048
    %v4681 = vmul.f32 %v4676, %v2048
    %v4682 = vadd.f32 %v4677, 1e-05
    %v4683 = vadd.f32 %v4678, 1e-05
    %v4684 = vadd.f32 %v4679, 1e-05
    %v4685 = vadd.f32 %v4680, 1e-05
    %v4686 = vadd.f32 %v4681, 1e-05
    %v4687 = vrsqrt.pop %v4682
    %v4688 = vrsqrt.pop %v4683
    %v4689 = vrsqrt.pop %v4684
    %v4690 = vrsqrt.pop %v4685
    %v4691 = vrsqrt.pop %v4686
    %v4692 = vmul.f32 %v4652, %v4687
    %v4693 = vmul.f32 %v4653, %v4688
    %v4694 = vmul.f32 %v4654, %v4689
    %v4695 = vmul.f32 %v4655, %v4690
    %v4696 = vmul.f32 %v4656, %v4691
    %v4698 = vlaneseq
    %v4699 = vshrl.u32 %v4698, 7
    %v4700 = vsub.s32 0, %v4699
    %v4701 = vrot.slane %v4629, %v4700
    %v4703 = vmul.f32 %v4692, %v4701
    %v4704 = vmul.f32 %v4693, %v4701
    %v4705 = vmul.f32 %v4694, %v4701
    %v4706 = vmul.f32 %v4695, %v4701
    %v4707 = vmul.f32 %v4696, %v4701
    %v4709 = vlaneseq
    %v4710 = vshrl.u32 %v4709, 7
    %v4711 = vsub.s32 0, %v4710
    %v4712 = vrot.slane %v4631, %v4711
    %v4714 = vadd.f32 %v4703, %v4712
    %v4715 = vadd.f32 %v4704, %v4712
    %v4716 = vadd.f32 %v4705, %v4712
    %v4717 = vadd.f32 %v4706, %v4712
    %v4718 = vadd.f32 %v4707, %v4712
    %v4719 = vld [vmem:[%s19] sm:$0xff]
    %v4720 = vld [vmem:[%s19 + $0x8] sm:$0xff]
    %v4721 = vld [vmem:[%s19 + $0x10] sm:$0xff]
    %v4722 = vld [vmem:[%s19 + $0x18] sm:$0xff]
    %v4723 = vld [vmem:[%s20] sm:$0x1]
    %v4725 = vlaneseq
    %v4726 = vshrl.u32 %v4725, 7
    %v4727 = vsub.s32 0, %v4726
    %v4728 = vrot.slane %v4723, %v4727
    %v4731 = vsel %vm210, %v4714, 0
    %4733 = vmatprep.subr.mxu0 0.0
    %4734 = vmatpush1.msra.mxu0 %v4719
    %4735 = vmatprep.subr.mxu0 0.0
    %4736 = vmatpush1.msra.mxu0 %v4720
    %4737 = vmatprep.subr.mxu0 0.0
    %4738 = vmatpush1.msra.mxu0 %v4721
    %4739 = vmatprep.subr.mxu0 0.0
    %4740 = vmatpush1.msra.mxu0 %v4722
    %4741 = vmatprep.subr.mxu0 0.0
    %4742 = vmatpush1.msra.mxu0 0.0
    %4743 = vmatprep.subr.mxu0 0.0
    %4744 = vmatpush1.msra.mxu0 0.0
    %4745 = vmatprep.subr.mxu0 0.0
    %4746 = vmatpush1.msra.mxu0 0.0
    %4747 = vmatprep.subr.mxu0 0.0
    %4748 = vmatpush1.msra.mxu0 0.0
    %4749 = vmatprep.subr.mxu0 0.0
    %4750 = vmatpush1.msra.mxu0 0.0
    %4751 = vmatprep.subr.mxu0 0.0
    %4752 = vmatpush1.msra.mxu0 0.0
    %4753 = vmatprep.subr.mxu0 0.0
    %4754 = vmatpush1.msra.mxu0 0.0
    %4755 = vmatprep.subr.mxu0 0.0
    %4756 = vmatpush1.msra.mxu0 0.0
    %4757 = vmatprep.subr.mxu0 0.0
    %4758 = vmatpush1.msra.mxu0 0.0
    %4759 = vmatprep.subr.mxu0 0.0
    %4760 = vmatpush1.msra.mxu0 0.0
    %4761 = vmatprep.subr.mxu0 0.0
    %4762 = vmatpush1.msra.mxu0 0.0
    %4763 = vmatprep.subr.mxu0 0.0
    %4764 = vmatpush1.msra.mxu0 0.0
    %4765 = vmatprep.subr.mxu0 0.0
    %4766 = vmatpush1.msra.mxu0 0.0
    %4767 = vmatprep.subr.mxu0 0.0
    %4768 = vmatpush1.msra.mxu0 0.0
    %4769 = vmatprep.subr.mxu0 0.0
    %4770 = vmatpush1.msra.mxu0 0.0
    %4771 = vmatprep.subr.mxu0 0.0
    %4772 = vmatpush1.msra.mxu0 0.0
    %4773 = vmatprep.subr.mxu0 0.0
    %4774 = vmatpush1.msra.mxu0 0.0
    %4775 = vmatprep.subr.mxu0 0.0
    %4776 = vmatpush1.msra.mxu0 0.0
    %4777 = vmatprep.subr.mxu0 0.0
    %4778 = vmatpush1.msra.mxu0 0.0
    %4779 = vmatprep.subr.mxu0 0.0
    %4780 = vmatpush1.msra.mxu0 0.0
    %4781 = vmatprep.subr.mxu0 0.0
    %4782 = vmatpush1.msra.mxu0 0.0
    %4783 = vmatprep.subr.mxu0 0.0
    %4784 = vmatpush1.msra.mxu0 0.0
    %4785 = vmatprep.subr.mxu0 0.0
    %4786 = vmatpush1.msra.mxu0 0.0
    %4787 = vmatprep.subr.mxu0 0.0
    %4788 = vmatpush1.msra.mxu0 0.0
    %4789 = vmatprep.subr.mxu0 0.0
    %4790 = vmatpush1.msra.mxu0 0.0
    %4791 = vmatprep.subr.mxu0 0.0
    %4792 = vmatpush1.msra.mxu0 0.0
    %4793 = vmatprep.subr.mxu0 0.0
    %4794 = vmatpush1.msra.mxu0 0.0
    %4795 = vmatprep.subr.mxu0 0.0
    %4796 = vmatpush1.msra.mxu0 0.0
    %4797 = vmatprep.mubr.f32.mxu0 0.0
    %4798 = vmatmul.mubr.f32.gmra.mrb[0].mxu0 %v4731
    %v4799 = vpop.f32.mrb[0].mxu0
    %v4800 = vadd.f32 %v4728, %v4799
    %v4801 = vpop.f32.mrb[0].mxu0
    %4802 = vdwg.mxu0
    %v4803 = vld [vmem:[%s21] sm:$0xff]
    %v4804 = vld [vmem:[%s21 + $0x8] sm:$0xff]
    %v4805 = vld [vmem:[%s21 + $0x10] sm:$0xff]
    %v4806 = vld [vmem:[%s21 + $0x18] sm:$0xff]
    %v4807 = vld [vmem:[#allocation2] sm:$0x1]
    %v4809 = vlaneseq
    %v4810 = vshrl.u32 %v4809, 7
    %v4811 = vsub.s32 0, %v4810
    %v4812 = vrot.slane %v4807, %v4811
    %v4818 = vrot.slane %v4714, 4
    %v4819 = vrot.slane %v4715, 4
    %v4820 = vsel %vm538, %v4818, %v4819
    %v4821 = vrot.slane %v4716, 4
    %v4822 = vsel %vm538, %v4819, %v4821
    %v4823 = vrot.slane %v4717, 4
    %v4824 = vsel %vm538, %v4821, %v4823
    %v4825 = vrot.slane %v4718, 4
    %v4826 = vsel %vm538, %v4823, %v4825
    %v4827 = vsel %vm210, %v4820, 0
    %v4829 = vsel %vm210, %v4822, 0
    %v4831 = vsel %vm210, %v4824, 0
    %v4833 = vsel %vm210, %v4826, 0
    %4835 = vmatprep.subr.mxu0 0.0
    %4836 = vmatpush1.msra.mxu0 %v4803
    %4837 = vmatprep.subr.mxu0 0.0
    %4838 = vmatpush1.msra.mxu0 %v4804
    %4839 = vmatprep.subr.mxu0 0.0
    %4840 = vmatpush1.msra.mxu0 %v4805
    %4841 = vmatprep.subr.mxu0 0.0
    %4842 = vmatpush1.msra.mxu0 %v4806
    %4843 = vmatprep.subr.mxu0 0.0
    %4844 = vmatpush1.msra.mxu0 0.0
    %4845 = vmatprep.subr.mxu0 0.0
    %4846 = vmatpush1.msra.mxu0 0.0
    %4847 = vmatprep.subr.mxu0 0.0
    %4848 = vmatpush1.msra.mxu0 0.0
    %4849 = vmatprep.subr.mxu0 0.0
    %4850 = vmatpush1.msra.mxu0 0.0
    %4851 = vmatprep.subr.mxu0 0.0
    %4852 = vmatpush1.msra.mxu0 0.0
    %4853 = vmatprep.subr.mxu0 0.0
    %4854 = vmatpush1.msra.mxu0 0.0
    %4855 = vmatprep.subr.mxu0 0.0
    %4856 = vmatpush1.msra.mxu0 0.0
    %4857 = vmatprep.subr.mxu0 0.0
    %4858 = vmatpush1.msra.mxu0 0.0
    %4859 = vmatprep.subr.mxu0 0.0
    %4860 = vmatpush1.msra.mxu0 0.0
    %4861 = vmatprep.subr.mxu0 0.0
    %4862 = vmatpush1.msra.mxu0 0.0
    %4863 = vmatprep.subr.mxu0 0.0
    %4864 = vmatpush1.msra.mxu0 0.0
    %4865 = vmatprep.subr.mxu0 0.0
    %4866 = vmatpush1.msra.mxu0 0.0
    %4867 = vmatprep.subr.mxu0 0.0
    %4868 = vmatpush1.msra.mxu0 0.0
    %4869 = vmatprep.subr.mxu0 0.0
    %4870 = vmatpush1.msra.mxu0 0.0
    %4871 = vmatprep.subr.mxu0 0.0
    %4872 = vmatpush1.msra.mxu0 0.0
    %4873 = vmatprep.subr.mxu0 0.0
    %4874 = vmatpush1.msra.mxu0 0.0
    %4875 = vmatprep.subr.mxu0 0.0
    %4876 = vmatpush1.msra.mxu0 0.0
    %4877 = vmatprep.subr.mxu0 0.0
    %4878 = vmatpush1.msra.mxu0 0.0
    %4879 = vmatprep.subr.mxu0 0.0
    %4880 = vmatpush1.msra.mxu0 0.0
    %4881 = vmatprep.subr.mxu0 0.0
    %4882 = vmatpush1.msra.mxu0 0.0
    %4883 = vmatprep.subr.mxu0 0.0
    %4884 = vmatpush1.msra.mxu0 0.0
    %4885 = vmatprep.subr.mxu0 0.0
    %4886 = vmatpush1.msra.mxu0 0.0
    %4887 = vmatprep.subr.mxu0 0.0
    %4888 = vmatpush1.msra.mxu0 0.0
    %4889 = vmatprep.subr.mxu0 0.0
    %4890 = vmatpush1.msra.mxu0 0.0
    %4891 = vmatprep.subr.mxu0 0.0
    %4892 = vmatpush1.msra.mxu0 0.0
    %4893 = vmatprep.subr.mxu0 0.0
    %4894 = vmatpush1.msra.mxu0 0.0
    %4895 = vmatprep.subr.mxu0 0.0
    %4896 = vmatpush1.msra.mxu0 0.0
    %4897 = vmatprep.subr.mxu0 0.0
    %4898 = vmatpush1.msra.mxu0 0.0
    %4899 = vmatprep.mubr.f32.mxu0 0.0
    %4900 = vmatmul.mubr.f32.gmra.mrb[0].mxu0 %v4827
    %v4901 = vpop.f32.mrb[0].mxu0
    %v4902 = vadd.f32 %v4812, %v4901
    %v4903 = vpop.f32.mrb[0].mxu0
    %4904 = vmatprep.mubr.f32.mxu0 0.0
    %4905 = vmatmul.mubr.f32.gmra.mrb[0].mxu0 %v4829
    %v4906 = vpop.f32.mrb[0].mxu0
    %v4907 = vadd.f32 %v4812, %v4906
    %v4908 = vpop.f32.mrb[0].mxu0
    %4909 = vmatprep.mubr.f32.mxu0 0.0
    %4910 = vmatmul.mubr.f32.gmra.mrb[0].mxu0 %v4831
    %v4911 = vpop.f32.mrb[0].mxu0
    %v4912 = vadd.f32 %v4812, %v4911
    %v4913 = vpop.f32.mrb[0].mxu0
    %4914 = vmatprep.mubr.f32.mxu0 0.0
    %4915 = vmatmul.mubr.f32.gmra.mrb[0].mxu0 %v4833
    %v4916 = vpop.f32.mrb[0].mxu0
    %v4917 = vadd.f32 %v4812, %v4916
    %v4918 = vpop.f32.mrb[0].mxu0
    %4919 = vdwg.mxu0
    %v4920 = vld [vmem:[%s23] sm:$0xf]
    %v4921 = vld [vmem:[%s24] sm:$0xff]
    %v4922 = vld [vmem:[%s24 + $0x8] sm:$0xff]
    %v4923 = vld [vmem:[%s24 + $0x10] sm:$0xff]
    %v4924 = vld [vmem:[%s24 + $0x18] sm:$0xff]
    %4926 = vset.pattern.permute.xlu0 0
    %4927 = vperm.xlu0 %4926, %v4902
    %v4928 = vpop.permute.xlu0 %4927
    %4931 = vset.pattern.permute.xlu0 0
    %4932 = vperm.xlu0 %4931, %v4907
    %v4933 = vpop.permute.xlu0 %4932
    %4936 = vset.pattern.permute.xlu0 0
    %4937 = vperm.xlu0 %4936, %v4912
    %v4938 = vpop.permute.xlu0 %4937
    %4941 = vset.pattern.permute.xlu0 0
    %4942 = vperm.xlu0 %4941, %v4917
    %v4943 = vpop.permute.xlu0 %4942
    %v4945 = vmul.f32 %v4928, %v4921
    %v4946 = vmul.f32 %v4933, %v4922
    %v4947 = vmul.f32 %v4938, %v4923
    %v4948 = vmul.f32 %v4943, %v4924
    %v4950 = vsel %vm210, %v4920, 0
    %4952 = vmatprep.subr.mxu0 0.0
    %4953 = vmatpush1.msra.mxu0 %v4945
    %4954 = vmatprep.subr.mxu0 0.0
    %4955 = vmatpush1.msra.mxu0 %v4946
    %4956 = vmatprep.subr.mxu0 0.0
    %4957 = vmatpush1.msra.mxu0 %v4947
    %4958 = vmatprep.subr.mxu0 0.0
    %4959 = vmatpush1.msra.mxu0 %v4948
    %4960 = vmatprep.subr.mxu0 0.0
    %4961 = vmatpush1.msra.mxu0 0.0
    %4962 = vmatprep.subr.mxu0 0.0
    %4963 = vmatpush1.msra.mxu0 0.0
    %4964 = vmatprep.subr.mxu0 0.0
    %4965 = vmatpush1.msra.mxu0 0.0
    %4966 = vmatprep.subr.mxu0 0.0
    %4967 = vmatpush1.msra.mxu0 0.0
    %4968 = vmatprep.subr.mxu0 0.0
    %4969 = vmatpush1.msra.mxu0 0.0
    %4970 = vmatprep.subr.mxu0 0.0
    %4971 = vmatpush1.msra.mxu0 0.0
    %4972 = vmatprep.subr.mxu0 0.0
    %4973 = vmatpush1.msra.mxu0 0.0
    %4974 = vmatprep.subr.mxu0 0.0
    %4975 = vmatpush1.msra.mxu0 0.0
    %4976 = vmatprep.subr.mxu0 0.0
    %4977 = vmatpush1.msra.mxu0 0.0
    %4978 = vmatprep.subr.mxu0 0.0
    %4979 = vmatpush1.msra.mxu0 0.0
    %4980 = vmatprep.subr.mxu0 0.0
    %4981 = vmatpush1.msra.mxu0 0.0
    %4982 = vmatprep.subr.mxu0 0.0
    %4983 = vmatpush1.msra.mxu0 0.0
    %4984 = vmatprep.subr.mxu0 0.0
    %4985 = vmatpush1.msra.mxu0 0.0
    %4986 = vmatprep.subr.mxu0 0.0
    %4987 = vmatpush1.msra.mxu0 0.0
    %4988 = vmatprep.subr.mxu0 0.0
    %4989 = vmatpush1.msra.mxu0 0.0
    %4990 = vmatprep.subr.mxu0 0.0
    %4991 = vmatpush1.msra.mxu0 0.0
    %4992 = vmatprep.subr.mxu0 0.0
    %4993 = vmatpush1.msra.mxu0 0.0
    %4994 = vmatprep.subr.mxu0 0.0
    %4995 = vmatpush1.msra.mxu0 0.0
    %4996 = vmatprep.subr.mxu0 0.0
    %4997 = vmatpush1.msra.mxu0 0.0
    %4998 = vmatprep.subr.mxu0 0.0
    %4999 = vmatpush1.msra.mxu0 0.0
    %5000 = vmatprep.subr.mxu0 0.0
    %5001 = vmatpush1.msra.mxu0 0.0
    %5002 = vmatprep.subr.mxu0 0.0
    %5003 = vmatpush1.msra.mxu0 0.0
    %5004 = vmatprep.subr.mxu0 0.0
    %5005 = vmatpush1.msra.mxu0 0.0
    %5006 = vmatprep.subr.mxu0 0.0
    %5007 = vmatpush1.msra.mxu0 0.0
    %5008 = vmatprep.subr.mxu0 0.0
    %5009 = vmatpush1.msra.mxu0 0.0
    %5010 = vmatprep.subr.mxu0 0.0
    %5011 = vmatpush1.msra.mxu0 0.0
    %5012 = vmatprep.subr.mxu0 0.0
    %5013 = vmatpush1.msra.mxu0 0.0
    %5014 = vmatprep.subr.mxu0 0.0
    %5015 = vmatpush1.msra.mxu0 0.0
    %5016 = vmatprep.mubr.f32.mxu0 0.0
    %5017 = vmatmul.mubr.f32.gmra.mrb[0].mxu0 %v4950
    %v5018 = vpop.f32.mrb[0].mxu0
    %v5019 = vadd.f32 0.0, %v5018
    %v5020 = vpop.f32.mrb[0].mxu0
    %5021 = vdwg.mxu0
    %v5022 = vadd.f32 %v4800, %v5019
    %5023 = vst [vmem:[#allocation3] sm:$0xf] %v5022
    // Predicated region
    $region102: #{tpu_custom_call.1} parent=1 // pred_check
      _
    $region103: #{tpu_custom_call.1} parent=1 // pred_check_branch
      %5025 = sbr.rel (0) target = $region105
    $region104: #{tpu_custom_call.1} parent=1 // pred_region
      %s5027 = ssub.s32 64, 64
      %5028 = vsyncadd [#allocation4], %s5027
      %s5030 = sshll.u32 [#allocation3], 4
      %s5031 = int_to_ptr.vmem [resolvable:$true] %s5030
      %5033 = dma.vmem_to_hbm [thread:$0]  %s5031, 64, %s25, [#allocation4]
    $region105: #{tpu_custom_call.1} parent=1 // pred_fallthru
      _
    // Predicated region
    $region106: #{tpu_custom_call.1} parent=1 // pred_check
      _
    $region107: #{tpu_custom_call.1} parent=1 // pred_check_branch
      %5035 = sbr.rel (0) target = $region109
    $region108: #{tpu_custom_call.1} parent=1 // pred_region
      %5036 = dma.done [#allocation4], 64
    $region109: #{tpu_custom_call.1} parent=1 // pred_fallthru
      _
    %5037 = vsyncpa [#allocation4], 1

</llo_original>
